<compile_context>
chip_gen: v5e
topology: v5e:2x2
jax: 0.10.0
libtpu: 0.0.40
codegen_flags: <defaults>
</compile_context>

<pallas_src>
from functools import partial

import jax
import jax.numpy as jnp
import numpy as np
from jax.experimental import pallas as pl
from jax.experimental.pallas import tpu as pltpu

EPS = 1e-5


# ----------------------------- in-kernel helpers -----------------------------
def _tile_moments(o):
    """Per-tile first moment (sum) and centred second moment of a (rows, C)
    block, returned as a (2, C) f32 array.  Combined across tiles on the host
    so BN statistics stay global over N*H*W without E[x^2]-E[x]^2
    cancellation."""
    rows = o.shape[0]
    s = jnp.sum(o, axis=0, keepdims=True)                       # (1, C)
    mu = s * (1.0 / rows)
    c2 = jnp.sum(jnp.square(o - mu), axis=0, keepdims=True)     # (1, C)
    return jnp.concatenate([s, c2], axis=0)                     # (2, C)


def _bn_apply(o, mean_ref, var_ref):
    """BatchNorm normalization (affine=False) with precomputed batch stats."""
    return (o - mean_ref[...]) * jax.lax.rsqrt(var_ref[...] + EPS)


# --------------------------------- kernels -----------------------------------
def _conv1_kernel(x_ref, w1_ref, o1_ref, st_ref):
    # 1x1 conv == row-tile matmul; bf16 multiplicands, f32 accumulation.
    o = jnp.dot(x_ref[...].astype(jnp.bfloat16), w1_ref[...],
                preferred_element_type=jnp.float32)
    o1_ref[...] = o
    st_ref[...] = _tile_moments(o)[None]


def _make_conv2_kernel(H, W):
    HW = H * W
    offsets = [(dh, dw) for dh in (-1, 0, 1) for dw in (-1, 0, 1)]

    def conv2_kernel(o1_ref, mask_ref, m_ref, v_ref, w2_ref, o2_ref, st_ref):
        # One full image per grid step: BN1 + ReLU, then 3x3 conv (pad=1,
        # stride=1) as ONE K = 9*width im2col matmul.
        x = jnp.maximum(_bn_apply(o1_ref[0], m_ref, v_ref), 0.0)  # (HW, width)
        mask = mask_ref[...]                                      # (HW, 9) 0/1
        taps = []
        for t, (dh, dw) in enumerate(offsets):
            off = dh * W + dw
            if off == 0:
                src = x                                   # centre tap: no mask
            else:
                # Cyclic roll within the image; wrapped rows are exactly the
                # boundary-masked ones, so zero padding is reproduced.
                src = pltpu.roll(x, shift=(-off) % HW, axis=0)
                src = src * mask[:, t:t + 1]              # (HW,1) lane-bcast
            taps.append(src.astype(jnp.bfloat16))
        im2col = jnp.concatenate(taps, axis=1)            # (HW, 9*width) bf16
        o = jnp.dot(im2col, w2_ref[...], preferred_element_type=jnp.float32)
        o2_ref[...] = o[None]
        st_ref[...] = _tile_moments(o)[None]

    return conv2_kernel


def _conv3_kernel(o2_ref, m_ref, v_ref, w3_ref, o3_ref, st_ref):
    x = jnp.maximum(_bn_apply(o2_ref[...], m_ref, v_ref), 0.0)
    o = jnp.dot(x.astype(jnp.bfloat16), w3_ref[...],
                preferred_element_type=jnp.float32)
    o3_ref[...] = o
    st_ref[...] = _tile_moments(o)[None]


def _bn3_residual_kernel(o3_ref, x_ref, m_ref, v_ref, out_ref):
    out_ref[...] = jnp.maximum(_bn_apply(o3_ref[...], m_ref, v_ref)
                               + x_ref[...], 0.0)


# ------------------------------- host helpers --------------------------------
def _combine_moments(parts, rows_per_tile, total_rows):
    """Chan et al. combination of per-tile (sum, centred SS) -> global biased
    mean/var (matching PyTorch BN training normalization)."""
    s_t = parts[:, 0, :]                                   # (T, C)
    c2_t = parts[:, 1, :]                                  # (T, C)
    mean = jnp.sum(s_t, axis=0, keepdims=True) / total_rows
    mu_t = s_t / rows_per_tile
    var = (jnp.sum(c2_t, axis=0, keepdims=True)
           + rows_per_tile * jnp.sum(jnp.square(mu_t - mean), axis=0,
                                     keepdims=True)) / total_rows
    return mean, jnp.maximum(var, 0.0)


def _tap_mask9(H, W):
    """Compact (H*W, 9) 0/1 mask: column t = (kh*3 + kw) is 1 where source
    pixel (h+kh-1, w+kw-1) lies inside the HxW image (pad=1 zero padding)."""
    hh, ww = np.meshgrid(np.arange(H), np.arange(W), indexing="ij")
    hh = hh.reshape(-1)
    ww = ww.reshape(-1)
    cols = []
    for dh in (-1, 0, 1):
        for dw in (-1, 0, 1):
            cols.append(((hh + dh >= 0) & (hh + dh < H) &
                         (ww + dw >= 0) & (ww + dw < W)).astype(np.float32))
    return jnp.asarray(np.stack(cols, axis=1))             # (H*W, 9) f32


def _pick_row_tile(m, target):
    """Largest divisor of m that is <= target and a multiple of 8."""
    for t in range(min(target, m), 7, -1):
        if m % t == 0 and t % 8 == 0:
            return t
    return m


# --------------------------------- wrapper -----------------------------------
def bottleneck_pallas(x_nhwc, w1, w2, w3, *, row_tile=512):
    # row_tile: flattened rows per grid step for the 1x1-conv passes.  >=512
    # reaches ~85% of HBM roofline on v5e/v6e; per-step VMEM here is a few
    # hundred KiB so the same tile is comfortably under v7x's 64 MiB VMEM.
    N, H, W, Cin = x_nhwc.shape
    width = w1.shape[1]
    Cout = w3.shape[1]
    assert Cin == Cout, "identity path requires inplanes == planes*expansion"
    M = N * H * W
    HW = H * W
    TM = _pick_row_tile(M, row_tile)
    T = M // TM

    x2d = x_nhwc.reshape(M, Cin)
    w1b = w1.astype(jnp.bfloat16)
    w2b = w2.reshape(9 * width, width).astype(jnp.bfloat16)   # HWIO -> im2col
    w3b = w3.astype(jnp.bfloat16)
    mask9 = _tap_mask9(H, W)

    cparams = pltpu.CompilerParams(
        dimension_semantics=("parallel",),          # shard across v7x's 2 TCs
        vmem_limit_bytes=32 * 1024 * 1024)          # explicit; v7x headroom

    def row_spec(c):
        return pl.BlockSpec((TM, c), lambda i: (i, 0))

    def const_spec(r, c):
        return pl.BlockSpec((r, c), lambda i: (0, 0))       # resident operand

    def stat_spec(c):
        return pl.BlockSpec((1, 2, c), lambda i: (i, 0, 0))

    def img_spec(c):
        return pl.BlockSpec((1, HW, c), lambda n: (n, 0, 0))

    # ---- pass 1: conv1 (1x1) + per-tile BN1 moments ----
    o1, st1 = pl.pallas_call(
        _conv1_kernel,
        grid=(T,),
        in_specs=[row_spec(Cin), const_spec(Cin, width)],
        out_specs=[row_spec(width), stat_spec(width)],
        out_shape=[jax.ShapeDtypeStruct((M, width), jnp.float32),
                   jax.ShapeDtypeStruct((T, 2, width), jnp.float32)],
        compiler_params=cparams,
    )(x2d, w1b)
    m1, v1 = _combine_moments(st1, TM, M)

    # ---- pass 2: BN1+ReLU -> conv2 (3x3, pad=1) + per-image BN2 moments ----
    o2, st2 = pl.pallas_call(
        _make_conv2_kernel(H, W),
        grid=(N,),
        in_specs=[img_spec(width),
                  const_spec(HW, 9),
                  const_spec(1, width),
                  const_spec(1, width),
                  const_spec(9 * width, width)],
        out_specs=[img_spec(width),
                   pl.BlockSpec((1, 2, width), lambda n: (n, 0, 0))],
        out_shape=[jax.ShapeDtypeStruct((N, HW, width), jnp.float32),
                   jax.ShapeDtypeStruct((N, 2, width), jnp.float32)],
        compiler_params=cparams,
    )(o1.reshape(N, HW, width), mask9, m1, v1, w2b)
    m2, v2 = _combine_moments(st2, HW, M)

    # ---- pass 3: BN2+ReLU -> conv3 (1x1) + per-tile BN3 moments ----
    o3, st3 = pl.pallas_call(
        _conv3_kernel,
        grid=(T,),
        in_specs=[row_spec(width),
                  const_spec(1, width),
                  const_spec(1, width),
                  const_spec(width, Cout)],
        out_specs=[row_spec(Cout), stat_spec(Cout)],
        out_shape=[jax.ShapeDtypeStruct((M, Cout), jnp.float32),
                   jax.ShapeDtypeStruct((T, 2, Cout), jnp.float32)],
        compiler_params=cparams,
    )(o2.reshape(M, width), m2, v2, w3b)
    m3, v3 = _combine_moments(st3, TM, M)

    # ---- pass 4: BN3 + identity add + ReLU ----
    out = pl.pallas_call(
        _bn3_residual_kernel,
        grid=(T,),
        in_specs=[row_spec(Cout), row_spec(Cin),
                  const_spec(1, Cout), const_spec(1, Cout)],
        out_specs=row_spec(Cout),
        out_shape=jax.ShapeDtypeStruct((M, Cout), jnp.float32),
        compiler_params=cparams,
    )(o3, x2d, m3, v3)

    return out.reshape(N, H, W, Cout)


# ---------------- pure-JAX reference (for correctness checks) ----------------
def _ref_bn(o):
    mean = jnp.mean(o, axis=(0, 1, 2), keepdims=True)
    var = jnp.mean(jnp.square(o - mean), axis=(0, 1, 2), keepdims=True)
    return (o - mean) * jax.lax.rsqrt(var + EPS)


def ref_bottleneck(x_nhwc, w1, w2, w3, matmul_dtype=jnp.float32):
    """Pure-JAX reference. matmul_dtype=bfloat16 reproduces the kernels' MXU
    arithmetic (bf16 multiplicands, f32 accumulation); float32 is exact."""
    dn = ('NHWC', 'HWIO', 'NHWC')
    Cin, width = w1.shape
    Cout = w3.shape[1]

    def conv(x, w, padding):
        return jax.lax.conv_general_dilated(
            x.astype(matmul_dtype), w.astype(matmul_dtype), (1, 1), padding,
            dimension_numbers=dn, preferred_element_type=jnp.float32,
            precision=jax.lax.Precision.HIGHEST)

    o = jnp.maximum(_ref_bn(conv(x_nhwc, w1.reshape(1, 1, Cin, width), 'VALID')), 0.0)
    o = jnp.maximum(_ref_bn(conv(o, w2, ((1, 1), (1, 1)))), 0.0)
    o = _ref_bn(conv(o, w3.reshape(1, 1, width, Cout), 'VALID'))
    return jnp.maximum(o + x_nhwc, 0.0)


if __name__ == "__main__":
    # Module config: planes=32 -> width=32 (base_width=64, groups=1),
    # expansion=4 -> Cout=128, inplanes=128 so the identity path is valid
    # (stride=1, downsample=None, BatchNorm2d(affine=False), training mode).
    N, H, W = 2, 16, 16
    planes = 32
    inplanes = planes * 4       # 128
    width = planes              # 32
    cout = planes * 4           # 128

    key = jax.random.PRNGKey(0)
    kx, k1, k2, k3 = jax.random.split(key, 4)

    # PyTorch-layout input (NCHW) -> NHWC at the wrapper boundary.
    x_nchw = jax.random.normal(kx, (N, inplanes, H, W), jnp.float32)
    x_nhwc = jnp.transpose(x_nchw, (0, 2, 3, 1))

    # Weights (no bias): conv1x1 as (Cin, Cout) matrices, conv3x3 in HWIO.
    w1 = jax.random.normal(k1, (inplanes, width), jnp.float32) * 0.05
    w2 = jax.random.normal(k2, (3, 3, width, width), jnp.float32) * 0.05
    w3 = jax.random.normal(k3, (width, cout), jnp.float32) * 0.05

    # row_tile=128 so the multi-tile grid and the cross-tile moment
    # combination are actually exercised at this small demo shape (M=512,
    # 4 tiles); production default is 512+ rows per step.
    fwd = jax.jit(partial(bottleneck_pallas, row_tile=128))
    out = jax.block_until_ready(fwd(x_nhwc, w1, w2, w3))
    assert out.shape == (N, H, W, cout)

    # Tight check vs. a precision-matched reference (bf16 MXU inputs, f32
    # accumulation): validates im2col / roll / mask / partial-moment BN.
    ref_bf16 = jax.block_until_ready(
        ref_bottleneck(x_nhwc, w1, w2, w3, matmul_dtype=jnp.bfloat16))
    err_matched = float(jnp.max(jnp.abs(out - ref_bf16)))
    assert jnp.allclose(out, ref_bf16, atol=1e-2, rtol=1e-2), err_matched

    # Loose check vs. the full-f32 reference: bounds the bf16-MXU
    # approximation (outputs are ~unit scale).
    ref_f32 = jax.block_until_ready(
        ref_bottleneck(x_nhwc, w1, w2, w3, matmul_dtype=jnp.float32))
    err_f32 = float(jnp.max(jnp.abs(out - ref_f32)))
    assert jnp.allclose(out, ref_f32, atol=1e-1, rtol=5e-2), err_f32

    print("KERNEL_OK")
</pallas_src>

<mosaic_0001>
module attributes {stable_mosaic.version = 11 : i64} {
  func.func @_conv1_kernel(%arg0: i32, %arg1: memref<128x128xf32, #tpu.memory_space<vmem>>, %arg2: memref<128x32xbf16, #tpu.memory_space<vmem>>, %arg3: memref<128x32xf32, #tpu.memory_space<vmem>>, %arg4: memref<1x2x32xf32, #tpu.memory_space<vmem>>) attributes {dimension_semantics = [#tpu.dimension_semantics<parallel>], iteration_bounds = array<i64: 4>, scalar_prefetch = 0 : i64, scratch_operands = 0 : i64, tpu.core_type = #tpu.core_type<tc>, window_params = [{transform_indices = @transform_0, window_bounds = array<i64: 128, 128>}, {pipeline_mode = #tpu.pipeline_mode<synchronous>, transform_indices = @transform_1, window_bounds = array<i64: 128, 32>}, {transform_indices = @transform_2, window_bounds = array<i64: 128, 32>}, {transform_indices = @transform_3, window_bounds = array<i64: 1, 2, 32>}]} {
    %c0 = arith.constant 0 : index
    %c0_0 = arith.constant 0 : index
    %0 = vector.load %arg1[%c0, %c0_0] : memref<128x128xf32, #tpu.memory_space<vmem>>, vector<128x128xf32>
    %1 = arith.truncf %0 : vector<128x128xf32> to vector<128x128xbf16>
    %c0_1 = arith.constant 0 : index
    %c0_2 = arith.constant 0 : index
    %2 = vector.load %arg2[%c0_1, %c0_2] : memref<128x32xbf16, #tpu.memory_space<vmem>>, vector<128x32xbf16>
    %cst = arith.constant dense<0.000000e+00> : vector<128x32xf32>
    %3 = tpu.matmul %1, %2, %cst {dimension_numbers = #tpu.dot_dimension_numbers<[1], [0], [0], [1], [0, 0, 1, 1], [], []>} : vector<128x128xbf16>, vector<128x32xbf16>, vector<128x32xf32> -> vector<128x32xf32>
    %c0_3 = arith.constant 0 : index
    %c0_4 = arith.constant 0 : index
    %4 = vector.load %arg3[%c0_3, %c0_4] : memref<128x32xf32, #tpu.memory_space<vmem>>, vector<128x32xf32>
    tpu.vector_store %arg3[%c0_3, %c0_4], %3 {strides = array<i32>} : memref<128x32xf32, #tpu.memory_space<vmem>>, vector<128x32xf32>,
    %cst_5 = arith.constant dense<0.000000e+00> : vector<32xf32>
    %5 = vector.multi_reduction <add>, %3, %cst_5 [0] : vector<128x32xf32> to vector<32xf32>
    %6 = vector.shape_cast %5 : vector<32xf32> to vector<1x32xf32>
    %cst_6 = arith.constant 7.812500e-03 : f32
    %7 = vector.broadcast %cst_6 : f32 to vector<1x32xf32>
    %8 = arith.mulf %6, %7 : vector<1x32xf32>
    %9 = vector.broadcast %8 : vector<1x32xf32> to vector<128x32xf32>
    %10 = arith.subf %3, %9 : vector<128x32xf32>
    %11 = arith.mulf %10, %10 : vector<128x32xf32>
    %cst_7 = arith.constant dense<0.000000e+00> : vector<32xf32>
    %12 = vector.multi_reduction <add>, %11, %cst_7 [0] : vector<128x32xf32> to vector<32xf32>
    %13 = vector.shape_cast %12 : vector<32xf32> to vector<1x32xf32>
    %14 = tpu.concatenate %6, %13 in 0 : vector<1x32xf32>, vector<1x32xf32> -> vector<2x32xf32>
    %15 = vector.shape_cast %14 : vector<2x32xf32> to vector<1x2x32xf32>
    %c0_8 = arith.constant 0 : index
    %c0_9 = arith.constant 0 : index
    %c0_10 = arith.constant 0 : index
    %16 = vector.load %arg4[%c0_8, %c0_9, %c0_10] : memref<1x2x32xf32, #tpu.memory_space<vmem>>, vector<1x2x32xf32>
    tpu.vector_store %arg4[%c0_8, %c0_9, %c0_10], %15 {strides = array<i32>} : memref<1x2x32xf32, #tpu.memory_space<vmem>>, vector<1x2x32xf32>,
    return
  }
  func.func @transform_0(%arg0: i32) -> (i32, i32) {
    %c0_i32 = arith.constant 0 : i32
    %c0_i32_0 = arith.constant 0 : i32
    return %arg0, %c0_i32 : i32, i32
  }
  func.func @transform_1(%arg0: i32) -> (i32, i32) {
    %c0_i32 = arith.constant 0 : i32
    %c0_i32_0 = arith.constant 0 : i32
    %c0_i32_1 = arith.constant 0 : i32
    return %c0_i32, %c0_i32_0 : i32, i32
  }
  func.func @transform_2(%arg0: i32) -> (i32, i32) {
    %c0_i32 = arith.constant 0 : i32
    %c0_i32_0 = arith.constant 0 : i32
    return %arg0, %c0_i32 : i32, i32
  }
  func.func @transform_3(%arg0: i32) -> (i32, i32, i32) {
    %c0_i32 = arith.constant 0 : i32
    %c0_i32_0 = arith.constant 0 : i32
    %c0_i32_1 = arith.constant 0 : i32
    return %arg0, %c0_i32, %c0_i32_0 : i32, i32, i32
  }
}

module attributes {stable_mosaic.version = 11 : i64} {
  func.func @conv2_kernel(%arg0: i32, %arg1: memref<1x256x32xf32, #tpu.memory_space<vmem>>, %arg2: memref<256x9xf32, #tpu.memory_space<vmem>>, %arg3: memref<1x32xf32, #tpu.memory_space<vmem>>, %arg4: memref<1x32xf32, #tpu.memory_space<vmem>>, %arg5: memref<288x32xbf16, #tpu.memory_space<vmem>>, %arg6: memref<1x256x32xf32, #tpu.memory_space<vmem>>, %arg7: memref<1x2x32xf32, #tpu.memory_space<vmem>>) attributes {dimension_semantics = [#tpu.dimension_semantics<parallel>], iteration_bounds = array<i64: 2>, scalar_prefetch = 0 : i64, scratch_operands = 0 : i64, tpu.core_type = #tpu.core_type<tc>, window_params = [{transform_indices = @transform_0, window_bounds = array<i64: 1, 256, 32>}, {pipeline_mode = #tpu.pipeline_mode<synchronous>, transform_indices = @transform_1, window_bounds = array<i64: 256, 9>}, {pipeline_mode = #tpu.pipeline_mode<synchronous>, transform_indices = @transform_2, window_bounds = array<i64: 1, 32>}, {pipeline_mode = #tpu.pipeline_mode<synchronous>, transform_indices = @transform_3, window_bounds = array<i64: 1, 32>}, {pipeline_mode = #tpu.pipeline_mode<synchronous>, transform_indices = @transform_4, window_bounds = array<i64: 288, 32>}, {transform_indices = @transform_5, window_bounds = array<i64: 1, 256, 32>}, {transform_indices = @transform_6, window_bounds = array<i64: 1, 2, 32>}]} {
    %c0 = arith.constant 0 : index
    %c0_0 = arith.constant 0 : index
    %c0_1 = arith.constant 0 : index
    %0 = vector.load %arg1[%c0, %c0_0, %c0_1] : memref<1x256x32xf32, #tpu.memory_space<vmem>>, vector<1x256x32xf32>
    %1 = vector.shape_cast %0 : vector<1x256x32xf32> to vector<256x32xf32>
    %c0_2 = arith.constant 0 : index
    %c0_3 = arith.constant 0 : index
    %2 = vector.load %arg3[%c0_2, %c0_3] : memref<1x32xf32, #tpu.memory_space<vmem>>, vector<1x32xf32>
    %3 = vector.broadcast %2 : vector<1x32xf32> to vector<256x32xf32>
    %4 = arith.subf %1, %3 : vector<256x32xf32>
    %c0_4 = arith.constant 0 : index
    %c0_5 = arith.constant 0 : index
    %5 = vector.load %arg4[%c0_4, %c0_5] : memref<1x32xf32, #tpu.memory_space<vmem>>, vector<1x32xf32>
    %cst = arith.constant 9.99999974E-6 : f32
    %6 = vector.broadcast %cst : f32 to vector<1x32xf32>
    %7 = arith.addf %5, %6 : vector<1x32xf32>
    %8 = math.rsqrt %7 : vector<1x32xf32>
    %9 = vector.broadcast %8 : vector<1x32xf32> to vector<256x32xf32>
    %10 = arith.mulf %4, %9 : vector<256x32xf32>
    %cst_6 = arith.constant 0.000000e+00 : f32
    %11 = vector.broadcast %cst_6 : f32 to vector<256x32xf32>
    %12 = arith.maximumf %10, %11 : vector<256x32xf32>
    %c0_7 = arith.constant 0 : index
    %c0_8 = arith.constant 0 : index
    %13 = vector.load %arg2[%c0_7, %c0_8] : memref<256x9xf32, #tpu.memory_space<vmem>>, vector<256x9xf32>
    %c17_i32 = arith.constant 17 : i32
    %14 = tpu.dynamic_rotate %12 by %c17_i32 dim 0 : vector<256x32xf32>, i32 -> vector<256x32xf32>
    %15 = vector.extract_strided_slice %13 {offsets = [0, 0], sizes = [256, 1], strides = [1, 1]} : vector<256x9xf32> to vector<256x1xf32>
    %16 = vector.broadcast %15 : vector<256x1xf32> to vector<256x32xf32>
    %17 = arith.mulf %14, %16 : vector<256x32xf32>
    %18 = arith.truncf %17 : vector<256x32xf32> to vector<256x32xbf16>
    %c16_i32 = arith.constant 16 : i32
    %19 = tpu.dynamic_rotate %12 by %c16_i32 dim 0 : vector<256x32xf32>, i32 -> vector<256x32xf32>
    %20 = vector.extract_strided_slice %13 {offsets = [0, 1], sizes = [256, 1], strides = [1, 1]} : vector<256x9xf32> to vector<256x1xf32>
    %21 = vector.broadcast %20 : vector<256x1xf32> to vector<256x32xf32>
    %22 = arith.mulf %19, %21 : vector<256x32xf32>
    %23 = arith.truncf %22 : vector<256x32xf32> to vector<256x32xbf16>
    %c15_i32 = arith.constant 15 : i32
    %24 = tpu.dynamic_rotate %12 by %c15_i32 dim 0 : vector<256x32xf32>, i32 -> vector<256x32xf32>
    %25 = vector.extract_strided_slice %13 {offsets = [0, 2], sizes = [256, 1], strides = [1, 1]} : vector<256x9xf32> to vector<256x1xf32>
    %26 = vector.broadcast %25 : vector<256x1xf32> to vector<256x32xf32>
    %27 = arith.mulf %24, %26 : vector<256x32xf32>
    %28 = arith.truncf %27 : vector<256x32xf32> to vector<256x32xbf16>
    %c1_i32 = arith.constant 1 : i32
    %29 = tpu.dynamic_rotate %12 by %c1_i32 dim 0 : vector<256x32xf32>, i32 -> vector<256x32xf32>
    %30 = vector.extract_strided_slice %13 {offsets = [0, 3], sizes = [256, 1], strides = [1, 1]} : vector<256x9xf32> to vector<256x1xf32>
    %31 = vector.broadcast %30 : vector<256x1xf32> to vector<256x32xf32>
    %32 = arith.mulf %29, %31 : vector<256x32xf32>
    %33 = arith.truncf %32 : vector<256x32xf32> to vector<256x32xbf16>
    %34 = arith.truncf %12 : vector<256x32xf32> to vector<256x32xbf16>
    %c255_i32 = arith.constant 255 : i32
    %35 = tpu.dynamic_rotate %12 by %c255_i32 dim 0 : vector<256x32xf32>, i32 -> vector<256x32xf32>
    %36 = vector.extract_strided_slice %13 {offsets = [0, 5], sizes = [256, 1], strides = [1, 1]} : vector<256x9xf32> to vector<256x1xf32>
    %37 = vector.broadcast %36 : vector<256x1xf32> to vector<256x32xf32>
    %38 = arith.mulf %35, %37 : vector<256x32xf32>
    %39 = arith.truncf %38 : vector<256x32xf32> to vector<256x32xbf16>
    %c241_i32 = arith.constant 241 : i32
    %40 = tpu.dynamic_rotate %12 by %c241_i32 dim 0 : vector<256x32xf32>, i32 -> vector<256x32xf32>
    %41 = vector.extract_strided_slice %13 {offsets = [0, 6], sizes = [256, 1], strides = [1, 1]} : vector<256x9xf32> to vector<256x1xf32>
    %42 = vector.broadcast %41 : vector<256x1xf32> to vector<256x32xf32>
    %43 = arith.mulf %40, %42 : vector<256x32xf32>
    %44 = arith.truncf %43 : vector<256x32xf32> to vector<256x32xbf16>
    %c240_i32 = arith.constant 240 : i32
    %45 = tpu.dynamic_rotate %12 by %c240_i32 dim 0 : vector<256x32xf32>, i32 -> vector<256x32xf32>
    %46 = vector.extract_strided_slice %13 {offsets = [0, 7], sizes = [256, 1], strides = [1, 1]} : vector<256x9xf32> to vector<256x1xf32>
    %47 = vector.broadcast %46 : vector<256x1xf32> to vector<256x32xf32>
    %48 = arith.mulf %45, %47 : vector<256x32xf32>
    %49 = arith.truncf %48 : vector<256x32xf32> to vector<256x32xbf16>
    %c239_i32 = arith.constant 239 : i32
    %50 = tpu.dynamic_rotate %12 by %c239_i32 dim 0 : vector<256x32xf32>, i32 -> vector<256x32xf32>
    %51 = vector.extract_strided_slice %13 {offsets = [0, 8], sizes = [256, 1], strides = [1, 1]} : vector<256x9xf32> to vector<256x1xf32>
    %52 = vector.broadcast %51 : vector<256x1xf32> to vector<256x32xf32>
    %53 = arith.mulf %50, %52 : vector<256x32xf32>
    %54 = arith.truncf %53 : vector<256x32xf32> to vector<256x32xbf16>
    %55 = tpu.concatenate %18, %23, %28, %33, %34, %39, %44, %49, %54 in 1 : vector<256x32xbf16>, vector<256x32xbf16>, vector<256x32xbf16>, vector<256x32xbf16>, vector<256x32xbf16>, vector<256x32xbf16>, vector<256x32xbf16>, vector<256x32xbf16>, vector<256x32xbf16> -> vector<256x288xbf16>
    %c0_9 = arith.constant 0 : index
    %c0_10 = arith.constant 0 : index
    %56 = vector.load %arg5[%c0_9, %c0_10] : memref<288x32xbf16, #tpu.memory_space<vmem>>, vector<288x32xbf16>
    %cst_11 = arith.constant dense<0.000000e+00> : vector<256x32xf32>
    %57 = tpu.matmul %55, %56, %cst_11 {dimension_numbers = #tpu.dot_dimension_numbers<[1], [0], [0], [1], [0, 0, 1, 1], [], []>} : vector<256x288xbf16>, vector<288x32xbf16>, vector<256x32xf32> -> vector<256x32xf32>
    %58 = vector.shape_cast %57 : vector<256x32xf32> to vector<1x256x32xf32>
    %c0_12 = arith.constant 0 : index
    %c0_13 = arith.constant 0 : index
    %c0_14 = arith.constant 0 : index
    %59 = vector.load %arg6[%c0_12, %c0_13, %c0_14] : memref<1x256x32xf32, #tpu.memory_space<vmem>>, vector<1x256x32xf32>
    tpu.vector_store %arg6[%c0_12, %c0_13, %c0_14], %58 {strides = array<i32>} : memref<1x256x32xf32, #tpu.memory_space<vmem>>, vector<1x256x32xf32>,
    %cst_15 = arith.constant dense<0.000000e+00> : vector<32xf32>
    %60 = vector.multi_reduction <add>, %57, %cst_15 [0] : vector<256x32xf32> to vector<32xf32>
    %61 = vector.shape_cast %60 : vector<32xf32> to vector<1x32xf32>
    %cst_16 = arith.constant 3.906250e-03 : f32
    %62 = vector.broadcast %cst_16 : f32 to vector<1x32xf32>
    %63 = arith.mulf %61, %62 : vector<1x32xf32>
    %64 = vector.broadcast %63 : vector<1x32xf32> to vector<256x32xf32>
    %65 = arith.subf %57, %64 : vector<256x32xf32>
    %66 = arith.mulf %65, %65 : vector<256x32xf32>
    %cst_17 = arith.constant dense<0.000000e+00> : vector<32xf32>
    %67 = vector.multi_reduction <add>, %66, %cst_17 [0] : vector<256x32xf32> to vector<32xf32>
    %68 = vector.shape_cast %67 : vector<32xf32> to vector<1x32xf32>
    %69 = tpu.concatenate %61, %68 in 0 : vector<1x32xf32>, vector<1x32xf32> -> vector<2x32xf32>
    %70 = vector.shape_cast %69 : vector<2x32xf32> to vector<1x2x32xf32>
    %c0_18 = arith.constant 0 : index
    %c0_19 = arith.constant 0 : index
    %c0_20 = arith.constant 0 : index
    %71 = vector.load %arg7[%c0_18, %c0_19, %c0_20] : memref<1x2x32xf32, #tpu.memory_space<vmem>>, vector<1x2x32xf32>
    tpu.vector_store %arg7[%c0_18, %c0_19, %c0_20], %70 {strides = array<i32>} : memref<1x2x32xf32, #tpu.memory_space<vmem>>, vector<1x2x32xf32>,
    return
  }
  func.func @transform_0(%arg0: i32) -> (i32, i32, i32) {
    %c0_i32 = arith.constant 0 : i32
    %c0_i32_0 = arith.constant 0 : i32
    %c0_i32_1 = arith.constant 0 : i32
    return %arg0, %c0_i32, %c0_i32_0 : i32, i32, i32
  }
  func.func @transform_1(%arg0: i32) -> (i32, i32) {
    %c0_i32 = arith.constant 0 : i32
    %c0_i32_0 = arith.constant 0 : i32
    %c0_i32_1 = arith.constant 0 : i32
    return %c0_i32, %c0_i32_0 : i32, i32
  }
  func.func @transform_2(%arg0: i32) -> (i32, i32) {
    %c0_i32 = arith.constant 0 : i32
    %c0_i32_0 = arith.constant 0 : i32
    %c0_i32_1 = arith.constant 0 : i32
    return %c0_i32, %c0_i32_0 : i32, i32
  }
  func.func @transform_3(%arg0: i32) -> (i32, i32) {
    %c0_i32 = arith.constant 0 : i32
    %c0_i32_0 = arith.constant 0 : i32
    %c0_i32_1 = arith.constant 0 : i32
    return %c0_i32, %c0_i32_0 : i32, i32
  }
  func.func @transform_4(%arg0: i32) -> (i32, i32) {
    %c0_i32 = arith.constant 0 : i32
    %c0_i32_0 = arith.constant 0 : i32
    %c0_i32_1 = arith.constant 0 : i32
    return %c0_i32, %c0_i32_0 : i32, i32
  }
  func.func @transform_5(%arg0: i32) -> (i32, i32, i32) {
    %c0_i32 = arith.constant 0 : i32
    %c0_i32_0 = arith.constant 0 : i32
    %c0_i32_1 = arith.constant 0 : i32
    return %arg0, %c0_i32, %c0_i32_0 : i32, i32, i32
  }
  func.func @transform_6(%arg0: i32) -> (i32, i32, i32) {
    %c0_i32 = arith.constant 0 : i32
    %c0_i32_0 = arith.constant 0 : i32
    %c0_i32_1 = arith.constant 0 : i32
    return %arg0, %c0_i32, %c0_i32_0 : i32, i32, i32
  }
}

module attributes {stable_mosaic.version = 11 : i64} {
  func.func @_conv3_kernel(%arg0: i32, %arg1: memref<128x32xf32, #tpu.memory_space<vmem>>, %arg2: memref<1x32xf32, #tpu.memory_space<vmem>>, %arg3: memref<1x32xf32, #tpu.memory_space<vmem>>, %arg4: memref<32x128xbf16, #tpu.memory_space<vmem>>, %arg5: memref<128x128xf32, #tpu.memory_space<vmem>>, %arg6: memref<1x2x128xf32, #tpu.memory_space<vmem>>) attributes {dimension_semantics = [#tpu.dimension_semantics<parallel>], iteration_bounds = array<i64: 4>, scalar_prefetch = 0 : i64, scratch_operands = 0 : i64, tpu.core_type = #tpu.core_type<tc>, window_params = [{transform_indices = @transform_0, window_bounds = array<i64: 128, 32>}, {pipeline_mode = #tpu.pipeline_mode<synchronous>, transform_indices = @transform_1, window_bounds = array<i64: 1, 32>}, {pipeline_mode = #tpu.pipeline_mode<synchronous>, transform_indices = @transform_2, window_bounds = array<i64: 1, 32>}, {pipeline_mode = #tpu.pipeline_mode<synchronous>, transform_indices = @transform_3, window_bounds = array<i64: 32, 128>}, {transform_indices = @transform_4, window_bounds = array<i64: 128, 128>}, {transform_indices = @transform_5, window_bounds = array<i64: 1, 2, 128>}]} {
    %c0 = arith.constant 0 : index
    %c0_0 = arith.constant 0 : index
    %0 = vector.load %arg1[%c0, %c0_0] : memref<128x32xf32, #tpu.memory_space<vmem>>, vector<128x32xf32>
    %c0_1 = arith.constant 0 : index
    %c0_2 = arith.constant 0 : index
    %1 = vector.load %arg2[%c0_1, %c0_2] : memref<1x32xf32, #tpu.memory_space<vmem>>, vector<1x32xf32>
    %2 = vector.broadcast %1 : vector<1x32xf32> to vector<128x32xf32>
    %3 = arith.subf %0, %2 : vector<128x32xf32>
    %c0_3 = arith.constant 0 : index
    %c0_4 = arith.constant 0 : index
    %4 = vector.load %arg3[%c0_3, %c0_4] : memref<1x32xf32, #tpu.memory_space<vmem>>, vector<1x32xf32>
    %cst = arith.constant 9.99999974E-6 : f32
    %5 = vector.broadcast %cst : f32 to vector<1x32xf32>
    %6 = arith.addf %4, %5 : vector<1x32xf32>
    %7 = math.rsqrt %6 : vector<1x32xf32>
    %8 = vector.broadcast %7 : vector<1x32xf32> to vector<128x32xf32>
    %9 = arith.mulf %3, %8 : vector<128x32xf32>
    %cst_5 = arith.constant 0.000000e+00 : f32
    %10 = vector.broadcast %cst_5 : f32 to vector<128x32xf32>
    %11 = arith.maximumf %9, %10 : vector<128x32xf32>
    %12 = arith.truncf %11 : vector<128x32xf32> to vector<128x32xbf16>
    %c0_6 = arith.constant 0 : index
    %c0_7 = arith.constant 0 : index
    %13 = vector.load %arg4[%c0_6, %c0_7] : memref<32x128xbf16, #tpu.memory_space<vmem>>, vector<32x128xbf16>
    %cst_8 = arith.constant dense<0.000000e+00> : vector<128x128xf32>
    %14 = tpu.matmul %12, %13, %cst_8 {dimension_numbers = #tpu.dot_dimension_numbers<[1], [0], [0], [1], [0, 0, 1, 1], [], []>} : vector<128x32xbf16>, vector<32x128xbf16>, vector<128x128xf32> -> vector<128x128xf32>
    %c0_9 = arith.constant 0 : index
    %c0_10 = arith.constant 0 : index
    %15 = vector.load %arg5[%c0_9, %c0_10] : memref<128x128xf32, #tpu.memory_space<vmem>>, vector<128x128xf32>
    tpu.vector_store %arg5[%c0_9, %c0_10], %14 {strides = array<i32>} : memref<128x128xf32, #tpu.memory_space<vmem>>, vector<128x128xf32>,
    %cst_11 = arith.constant dense<0.000000e+00> : vector<128xf32>
    %16 = vector.multi_reduction <add>, %14, %cst_11 [0] : vector<128x128xf32> to vector<128xf32>
    %17 = vector.shape_cast %16 : vector<128xf32> to vector<1x128xf32>
    %cst_12 = arith.constant 7.812500e-03 : f32
    %18 = vector.broadcast %cst_12 : f32 to vector<1x128xf32>
    %19 = arith.mulf %17, %18 : vector<1x128xf32>
    %20 = vector.broadcast %19 : vector<1x128xf32> to vector<128x128xf32>
    %21 = arith.subf %14, %20 : vector<128x128xf32>
    %22 = arith.mulf %21, %21 : vector<128x128xf32>
    %cst_13 = arith.constant dense<0.000000e+00> : vector<128xf32>
    %23 = vector.multi_reduction <add>, %22, %cst_13 [0] : vector<128x128xf32> to vector<128xf32>
    %24 = vector.shape_cast %23 : vector<128xf32> to vector<1x128xf32>
    %25 = tpu.concatenate %17, %24 in 0 : vector<1x128xf32>, vector<1x128xf32> -> vector<2x128xf32>
    %26 = vector.shape_cast %25 : vector<2x128xf32> to vector<1x2x128xf32>
    %c0_14 = arith.constant 0 : index
    %c0_15 = arith.constant 0 : index
    %c0_16 = arith.constant 0 : index
    %27 = vector.load %arg6[%c0_14, %c0_15, %c0_16] : memref<1x2x128xf32, #tpu.memory_space<vmem>>, vector<1x2x128xf32>
    tpu.vector_store %arg6[%c0_14, %c0_15, %c0_16], %26 {strides = array<i32>} : memref<1x2x128xf32, #tpu.memory_space<vmem>>, vector<1x2x128xf32>,
    return
  }
  func.func @transform_0(%arg0: i32) -> (i32, i32) {
    %c0_i32 = arith.constant 0 : i32
    %c0_i32_0 = arith.constant 0 : i32
    return %arg0, %c0_i32 : i32, i32
  }
  func.func @transform_1(%arg0: i32) -> (i32, i32) {
    %c0_i32 = arith.constant 0 : i32
    %c0_i32_0 = arith.constant 0 : i32
    %c0_i32_1 = arith.constant 0 : i32
    return %c0_i32, %c0_i32_0 : i32, i32
  }
  func.func @transform_2(%arg0: i32) -> (i32, i32) {
    %c0_i32 = arith.constant 0 : i32
    %c0_i32_0 = arith.constant 0 : i32
    %c0_i32_1 = arith.constant 0 : i32
    return %c0_i32, %c0_i32_0 : i32, i32
  }
  func.func @transform_3(%arg0: i32) -> (i32, i32) {
    %c0_i32 = arith.constant 0 : i32
    %c0_i32_0 = arith.constant 0 : i32
    %c0_i32_1 = arith.constant 0 : i32
    return %c0_i32, %c0_i32_0 : i32, i32
  }
  func.func @transform_4(%arg0: i32) -> (i32, i32) {
    %c0_i32 = arith.constant 0 : i32
    %c0_i32_0 = arith.constant 0 : i32
    return %arg0, %c0_i32 : i32, i32
  }
  func.func @transform_5(%arg0: i32) -> (i32, i32, i32) {
    %c0_i32 = arith.constant 0 : i32
    %c0_i32_0 = arith.constant 0 : i32
    %c0_i32_1 = arith.constant 0 : i32
    return %arg0, %c0_i32, %c0_i32_0 : i32, i32, i32
  }
}

module attributes {stable_mosaic.version = 11 : i64} {
  func.func @_bn3_residual_kernel(%arg0: i32, %arg1: memref<128x128xf32, #tpu.memory_space<vmem>>, %arg2: memref<128x128xf32, #tpu.memory_space<vmem>>, %arg3: memref<1x128xf32, #tpu.memory_space<vmem>>, %arg4: memref<1x128xf32, #tpu.memory_space<vmem>>, %arg5: memref<128x128xf32, #tpu.memory_space<vmem>>) attributes {dimension_semantics = [#tpu.dimension_semantics<parallel>], iteration_bounds = array<i64: 4>, scalar_prefetch = 0 : i64, scratch_operands = 0 : i64, tpu.core_type = #tpu.core_type<tc>, window_params = [{transform_indices = @transform_0, window_bounds = array<i64: 128, 128>}, {transform_indices = @transform_1, window_bounds = array<i64: 128, 128>}, {pipeline_mode = #tpu.pipeline_mode<synchronous>, transform_indices = @transform_2, window_bounds = array<i64: 1, 128>}, {pipeline_mode = #tpu.pipeline_mode<synchronous>, transform_indices = @transform_3, window_bounds = array<i64: 1, 128>}, {transform_indices = @transform_4, window_bounds = array<i64: 128, 128>}]} {
    %c0 = arith.constant 0 : index
    %c0_0 = arith.constant 0 : index
    %0 = vector.load %arg1[%c0, %c0_0] : memref<128x128xf32, #tpu.memory_space<vmem>>, vector<128x128xf32>
    %c0_1 = arith.constant 0 : index
    %c0_2 = arith.constant 0 : index
    %1 = vector.load %arg3[%c0_1, %c0_2] : memref<1x128xf32, #tpu.memory_space<vmem>>, vector<1x128xf32>
    %2 = vector.broadcast %1 : vector<1x128xf32> to vector<128x128xf32>
    %3 = arith.subf %0, %2 : vector<128x128xf32>
    %c0_3 = arith.constant 0 : index
    %c0_4 = arith.constant 0 : index
    %4 = vector.load %arg4[%c0_3, %c0_4] : memref<1x128xf32, #tpu.memory_space<vmem>>, vector<1x128xf32>
    %cst = arith.constant 9.99999974E-6 : f32
    %5 = vector.broadcast %cst : f32 to vector<1x128xf32>
    %6 = arith.addf %4, %5 : vector<1x128xf32>
    %7 = math.rsqrt %6 : vector<1x128xf32>
    %8 = vector.broadcast %7 : vector<1x128xf32> to vector<128x128xf32>
    %9 = arith.mulf %3, %8 : vector<128x128xf32>
    %c0_5 = arith.constant 0 : index
    %c0_6 = arith.constant 0 : index
    %10 = vector.load %arg2[%c0_5, %c0_6] : memref<128x128xf32, #tpu.memory_space<vmem>>, vector<128x128xf32>
    %11 = arith.addf %9, %10 : vector<128x128xf32>
    %cst_7 = arith.constant 0.000000e+00 : f32
    %12 = vector.broadcast %cst_7 : f32 to vector<128x128xf32>
    %13 = arith.maximumf %11, %12 : vector<128x128xf32>
    %c0_8 = arith.constant 0 : index
    %c0_9 = arith.constant 0 : index
    %14 = vector.load %arg5[%c0_8, %c0_9] : memref<128x128xf32, #tpu.memory_space<vmem>>, vector<128x128xf32>
    tpu.vector_store %arg5[%c0_8, %c0_9], %13 {strides = array<i32>} : memref<128x128xf32, #tpu.memory_space<vmem>>, vector<128x128xf32>,
    return
  }
  func.func @transform_0(%arg0: i32) -> (i32, i32) {
    %c0_i32 = arith.constant 0 : i32
    %c0_i32_0 = arith.constant 0 : i32
    return %arg0, %c0_i32 : i32, i32
  }
  func.func @transform_1(%arg0: i32) -> (i32, i32) {
    %c0_i32 = arith.constant 0 : i32
    %c0_i32_0 = arith.constant 0 : i32
    return %arg0, %c0_i32 : i32, i32
  }
  func.func @transform_2(%arg0: i32) -> (i32, i32) {
    %c0_i32 = arith.constant 0 : i32
    %c0_i32_0 = arith.constant 0 : i32
    %c0_i32_1 = arith.constant 0 : i32
    return %c0_i32, %c0_i32_0 : i32, i32
  }
  func.func @transform_3(%arg0: i32) -> (i32, i32) {
    %c0_i32 = arith.constant 0 : i32
    %c0_i32_0 = arith.constant 0 : i32
    %c0_i32_1 = arith.constant 0 : i32
    return %c0_i32, %c0_i32_0 : i32, i32
  }
  func.func @transform_4(%arg0: i32) -> (i32, i32) {
    %c0_i32 = arith.constant 0 : i32
    %c0_i32_0 = arith.constant 0 : i32
    return %arg0, %c0_i32 : i32, i32
  }
}

</mosaic_0001>

<llo_original>
// kernel: bottleneck_pallas.4
$region0: #{bottleneck_pallas.4}
  #allocation0 [shape = 'u32[]', space=smem, size = 0x4, offset = 0x4, fixed_abs, tag = 'smem constant byte address 0x4 - core index']
  #allocation1 [shape = 'u32[72,128]{1,0:T(1,128)}', space=vmem, size = 0x9000, scoped, tag = 'internal scratch']
  %s0 = inlined_call_operand.hbm [shape: f32[512,128], index: 0, kind: input, shape index: {}]
  %s1 = inlined_call_operand.vmem [shape: bf16[128,32], index: 1, kind: input, shape index: {}]
  %s2 = inlined_call_operand.vmem [shape: f32[512,32], index: 2, kind: output, shape index: {0}]
  %s3 = inlined_call_operand.vmem [shape: f32[4,2,32], index: 3, kind: output, shape index: {1}]
  %4 = xla_tuple %s2, %s3
  %s5 = sld [smem:[#allocation0]]
  $region53: #{bottleneck_pallas.4} parent=0
    _
  %s7 = ssub.s32 1, %s5
  %s8 = scalar_select 0, %s7, %s5
  $region1: #{bottleneck_pallas.4} parent=0
    #allocation2 [shape = 'u8[131072]{0}', space=vmem, size = 0x20000, scoped, tag = 'input window, operand 0']
    #allocation3 [shape = 's32[2]{0}', space=sflag, size = 0x8, scoped, tag = 'scoped memory for bottleneck_pallas.4']
    %9 = vsyncpa [#allocation3], 0
    %s10 = scalar_lea.sflag [#allocation3], 1
    %11 = vsyncpa %s10, 0
    loop: start=0, step=1, limit=6
    $region2: #{bottleneck_pallas.4} parent=1 // loop_pre_header
      _
    $region3: #{bottleneck_pallas.4} parent=1 // loop_header
      %s13 = sphi 0, %s17
      %p14 = scmp.ge.s32.totalorder %s13, 6
      %s23 = sphi 0, %s25
      %s26 = sphi 0, %s23
      %s27 = sphi 0, %s26
      %s43 = sphi 0, %s27
      %s47 = sphi 0, %s47
      %s49 = sphi 0, %s47
      %s50 = sphi 0, %s49
      %s64 = sphi 0, %s50
      %s70 = sphi 0, %s72
      %s73 = sphi 0, %s70
      %s74 = sphi 0, %s73
      %s90 = sphi 0, %s74
      %s96 = sphi 0, %s98
      %s99 = sphi 0, %s96
      %s100 = sphi 0, %s99
      %s116 = sphi 0, %s100
    $region4: #{bottleneck_pallas.4} parent=1 // loop_header_branch
      %16 = sbr.rel (%p14) target = $region8
    $region5: #{bottleneck_pallas.4} parent=1 // loop_body
      %s18 = ssub.s32 %s13, 1
      %s19 = ssub.s32 %s13, 2
      %s20 = sadd.s32 %s13, 1
      %s21 = ssub.s32 %s13, %s20
      %p22 = scmp.eq.s32.totalorder %s21, 0
      %s24 = sadd.s32 %s23, 1
      %s25 = scalar_select %p22, %s23, %s24
      %p28 = pneg %p22
      %p29 = scmp.eq.s32.totalorder %s13, 3
      %p30 = por %p28, %p29
      %p31 = scmp.ne.s32.totalorder %s23, %s26
      %p32 = scmp.eq.s32.totalorder %s13, 0
      %p33 = por %p31, %p32
      %p34 = scmp.ne.s32.totalorder %s23, %s26
      %p35 = scmp.eq.s32.totalorder %s18, 3
      %p36 = por %p34, %p35
      %p37 = scmp.ne.s32.totalorder %s26, %s27
      %p38 = scmp.eq.s32.totalorder %s18, 0
      %p39 = por %p37, %p38
      %p40 = scmp.ne.s32.totalorder %s26, %s27
      %p41 = scmp.eq.s32.totalorder %s19, 3
      %p42 = por %p40, %p41
      %p44 = scmp.ne.s32.totalorder %s27, %s43
      %p45 = scmp.eq.s32.totalorder %s19, 0
      %p46 = por %p44, %p45
      %s48 = sadd.s32 %s47, 1
      %p51 = scmp.eq.s32.totalorder %s13, 3
      %p52 = scmp.ne.s32.totalorder %s47, %s49
      %p53 = scmp.eq.s32.totalorder %s13, 0
      %p54 = por %p52, %p53
      %p55 = scmp.ne.s32.totalorder %s47, %s49
      %p56 = scmp.eq.s32.totalorder %s18, 3
      %p57 = por %p55, %p56
      %p58 = scmp.ne.s32.totalorder %s49, %s50
      %p59 = scmp.eq.s32.totalorder %s18, 0
      %p60 = por %p58, %p59
      %p61 = scmp.ne.s32.totalorder %s49, %s50
      %p62 = scmp.eq.s32.totalorder %s19, 3
      %p63 = por %p61, %p62
      %p65 = scmp.ne.s32.totalorder %s50, %s64
      %p66 = scmp.eq.s32.totalorder %s19, 0
      %p67 = por %p65, %p66
      %s68 = ssub.s32 %s13, %s20
      %p69 = scmp.eq.s32.totalorder %s68, 0
      %s71 = sadd.s32 %s70, 1
      %s72 = scalar_select %p69, %s70, %s71
      %p75 = pneg %p69
      %p76 = scmp.eq.s32.totalorder %s13, 3
      %p77 = por %p75, %p76
      %p78 = scmp.ne.s32.totalorder %s70, %s73
      %p79 = scmp.eq.s32.totalorder %s13, 0
      %p80 = por %p78, %p79
      %p81 = scmp.ne.s32.totalorder %s70, %s73
      %p82 = scmp.eq.s32.totalorder %s18, 3
      %p83 = por %p81, %p82
      %p84 = scmp.ne.s32.totalorder %s73, %s74
      %p85 = scmp.eq.s32.totalorder %s18, 0
      %p86 = por %p84, %p85
      %p87 = scmp.ne.s32.totalorder %s73, %s74
      %p88 = scmp.eq.s32.totalorder %s19, 3
      %p89 = por %p87, %p88
      %p91 = scmp.ne.s32.totalorder %s74, %s90
      %p92 = scmp.eq.s32.totalorder %s19, 0
      %p93 = por %p91, %p92
      %s94 = ssub.s32 %s13, %s20
      %p95 = scmp.eq.s32.totalorder %s94, 0
      %s97 = sadd.s32 %s96, 1
      %s98 = scalar_select %p95, %s96, %s97
      %p101 = pneg %p95
      %p102 = scmp.eq.s32.totalorder %s13, 3
      %p103 = por %p101, %p102
      %p104 = scmp.ne.s32.totalorder %s96, %s99
      %p105 = scmp.eq.s32.totalorder %s13, 0
      %p106 = por %p104, %p105
      %p107 = scmp.ne.s32.totalorder %s96, %s99
      %p108 = scmp.eq.s32.totalorder %s18, 3
      %p109 = por %p107, %p108
      %p110 = scmp.ne.s32.totalorder %s99, %s100
      %p111 = scmp.eq.s32.totalorder %s18, 0
      %p112 = por %p110, %p111
      %p113 = scmp.ne.s32.totalorder %s99, %s100
      %p114 = scmp.eq.s32.totalorder %s19, 3
      %p115 = por %p113, %p114
      %p117 = scmp.ne.s32.totalorder %s100, %s116
      %p118 = scmp.eq.s32.totalorder %s19, 0
      %p119 = por %p117, %p118
      %p120 = scmp.le.s32.totalorder 1, %s13
      %p121 = scmp.lt.s32.totalorder %s13, 5
      %p122 = pnand %p120, %p121
      %p123 = pneg %p122
      // Predicated region
      $region9: #{bottleneck_pallas.4} parent=5 // pred_check
        _
      $region10: #{bottleneck_pallas.4} parent=5 // pred_check_branch
        %125 = sbr.rel (%p122) target = $region12
      $region11: #{bottleneck_pallas.4} parent=5 // pred_region
        %s126 = ssub.s32 %s13, 1
        // Predicated region
        $region13: #{bottleneck_pallas.4} parent=11 // pred_check
          %p127 = pneg %p60
        $region14: #{bottleneck_pallas.4} parent=11 // pred_check_branch
          %129 = sbr.rel (%p127) target = $region16
        $region15: #{bottleneck_pallas.4} parent=11 // pred_region
          _
        $region16: #{bottleneck_pallas.4} parent=11 // pred_fallthru
          _
      $region12: #{bottleneck_pallas.4} parent=5 // pred_fallthru
        _
      %p130 = scmp.lt.s32.totalorder %s13, 4
      // Predicated region
      $region17: #{bottleneck_pallas.4} parent=5 // pred_check
        %p131 = pneg %p130
      $region18: #{bottleneck_pallas.4} parent=5 // pred_check_branch
        %133 = sbr.rel (%p131) target = $region20
      $region19: #{bottleneck_pallas.4} parent=5 // pred_region
        // Predicated region
        $region21: #{bottleneck_pallas.4} parent=19 // pred_check
          %p134 = pneg %p33
        $region22: #{bottleneck_pallas.4} parent=19 // pred_check_branch
          %136 = sbr.rel (%p134) target = $region24
        $region23: #{bottleneck_pallas.4} parent=19 // pred_region
          %s137 = sand.u32 %s23, 1
          %s138 = scalar_lea.sflag [#allocation3], %s137
          %s139 = sand.u32 %s23, 1
          %s140 = smul.addr %s139, 128
          %s141 = scalar_lea.vmem [#allocation2], %s140
          %s142 = smul.u32 16, %s13
          %144 = vsyncadd %s138, 0
          %s145 = smul.addr %s142, 8
          %s146 = scalar_lea.hbm %s0, %s145
          %s147 = sshll.u32 %s146, 4
          %s148 = int_to_ptr.hbm [resolvable:$true] %s147
          %s149 = sshll.u32 %s141, 4
          %s150 = int_to_ptr.vmem [resolvable:$true] %s149
          %155 = dma.hbm_to_vmem [thread:$0]  %s148, 2048, %s150, %s138, 128, 128, 8
        $region24: #{bottleneck_pallas.4} parent=19 // pred_fallthru
          _
      $region20: #{bottleneck_pallas.4} parent=5 // pred_fallthru
        _
      %p156 = scmp.le.s32.totalorder 1, %s13
      %p157 = scmp.lt.s32.totalorder %s13, 5
      %p158 = pnand %p156, %p157
      %p159 = pneg %p158
      // Predicated region
      $region25: #{bottleneck_pallas.4} parent=5 // pred_check
        _
      $region26: #{bottleneck_pallas.4} parent=5 // pred_check_branch
        %161 = sbr.rel (%p158) target = $region28
      $region27: #{bottleneck_pallas.4} parent=5 // pred_region
        %s162 = ssub.s32 %s13, 1
        %s163 = sand.u32 %s26, 1
        %s164 = scalar_lea.sflag [#allocation3], %s163
        %s165 = sand.u32 %s26, 1
        %s166 = smul.addr %s165, 128
        %s167 = scalar_lea.vmem [#allocation2], %s166
        // Predicated region
        $region29: #{bottleneck_pallas.4} parent=27 // pred_check
          %p168 = pneg %p39
        $region30: #{bottleneck_pallas.4} parent=27 // pred_check_branch
          %170 = sbr.rel (%p168) target = $region32
        $region31: #{bottleneck_pallas.4} parent=27 // pred_region
          %172 = dma.done %s164, 2048
        $region32: #{bottleneck_pallas.4} parent=27 // pred_fallthru
          _
        %s173 = sand.u32 %s26, 1
        %s174 = scalar_lea.sflag [#allocation3], %s173
        %s175 = sand.u32 %s26, 1
        %s176 = smul.addr %s175, 128
        %s177 = scalar_lea.vmem [#allocation2], %s176
        %p178 = pneg %p39
        %p179 = pneg %p36
        %p180 = pneg %p60
        %p181 = pneg %p57
        %p182 = pneg %p86
        %p183 = pneg %p83
        %s184 = smul.u32 16, %s18
        %p185 = scmp.lt.s32.totalorder %s184, 63
        %s186 = scalar_select %p185, %s184, 63
        %s187 = smul.addr %s186, 8
        %s188 = scalar_lea.vmem %s2, %s187
        %p189 = pneg %p112
        %p190 = pneg %p109
        %p191 = scmp.lt.s32.totalorder %s18, 3
        %s192 = scalar_select %p191, %s18, 3
        %s193 = smul.addr %s192, 2
        %s194 = scalar_lea.vmem %s3, %s193
        %s195 = smul.u32 16, %s18
        %s196 = smul.u32 16, %s18
        %p197 = scmp.lt.s32.totalorder %s196, 63
        %s198 = scalar_select %p197, %s196, 63
        %s199 = smul.addr %s198, 8
        %s200 = scalar_lea.vmem %s2, %s199
        %s201 = smul.u32 16, %s18
        %p202 = scmp.lt.s32.totalorder %s18, 3
        %s203 = scalar_select %p202, %s18, 3
        %s204 = smul.addr %s203, 2
        %s205 = scalar_lea.vmem %s3, %s204
        %v206 = vld [vmem:[%s167] sm:$0xff]
        %v207 = vld [vmem:[%s167 + $0x8] sm:$0xff]
        %v208 = vld [vmem:[%s167 + $0x10] sm:$0xff]
        %v209 = vld [vmem:[%s167 + $0x18] sm:$0xff]
        %v210 = vld [vmem:[%s167 + $0x20] sm:$0xff]
        %v211 = vld [vmem:[%s167 + $0x28] sm:$0xff]
        %v212 = vld [vmem:[%s167 + $0x30] sm:$0xff]
        %v213 = vld [vmem:[%s167 + $0x38] sm:$0xff]
        %v214 = vld [vmem:[%s167 + $0x40] sm:$0xff]
        %v215 = vld [vmem:[%s167 + $0x48] sm:$0xff]
        %v216 = vld [vmem:[%s167 + $0x50] sm:$0xff]
        %v217 = vld [vmem:[%s167 + $0x58] sm:$0xff]
        %v218 = vld [vmem:[%s167 + $0x60] sm:$0xff]
        %v219 = vld [vmem:[%s167 + $0x68] sm:$0xff]
        %v220 = vld [vmem:[%s167 + $0x70] sm:$0xff]
        %v221 = vld [vmem:[%s167 + $0x78] sm:$0xff]
        %v222 = vpack.c.bf16 %v207, %v206
        %v223 = vpack.c.bf16 %v209, %v208
        %v224 = vpack.c.bf16 %v211, %v210
        %v225 = vpack.c.bf16 %v213, %v212
        %v226 = vpack.c.bf16 %v215, %v214
        %v227 = vpack.c.bf16 %v217, %v216
        %v228 = vpack.c.bf16 %v219, %v218
        %v229 = vpack.c.bf16 %v221, %v220
        %v230 = vld [vmem:[%s1] sm:$0xf]
        %v231 = vld [vmem:[%s1 + $0x4] sm:$0xf]
        %v232 = vld [vmem:[%s1 + $0x8] sm:$0xf]
        %v233 = vld [vmem:[%s1 + $0xc] sm:$0xf]
        %v234 = vld [vmem:[%s1 + $0x10] sm:$0xf]
        %v235 = vld [vmem:[%s1 + $0x14] sm:$0xf]
        %v236 = vld [vmem:[%s1 + $0x18] sm:$0xf]
        %v237 = vld [vmem:[%s1 + $0x1c] sm:$0xf]
        %v238 = vld [vmem:[%s1 + $0x20] sm:$0xf]
        %v239 = vld [vmem:[%s1 + $0x24] sm:$0xf]
        %v240 = vld [vmem:[%s1 + $0x28] sm:$0xf]
        %v241 = vld [vmem:[%s1 + $0x2c] sm:$0xf]
        %v242 = vld [vmem:[%s1 + $0x30] sm:$0xf]
        %v243 = vld [vmem:[%s1 + $0x34] sm:$0xf]
        %v244 = vld [vmem:[%s1 + $0x38] sm:$0xf]
        %v245 = vld [vmem:[%s1 + $0x3c] sm:$0xf]
        %v262 = vunpack.c.l.b16 %v230
        %v263 = vunpack.c.l.b16 %v231
        %v264 = vunpack.c.l.b16 %v232
        %v265 = vunpack.c.l.b16 %v233
        %v266 = vunpack.c.l.b16 %v234
        %v267 = vunpack.c.l.b16 %v235
        %v268 = vunpack.c.l.b16 %v236
        %v269 = vunpack.c.l.b16 %v237
        %v270 = vunpack.c.l.b16 %v238
        %v271 = vunpack.c.l.b16 %v239
        %v272 = vunpack.c.l.b16 %v240
        %v273 = vunpack.c.l.b16 %v241
        %v274 = vunpack.c.l.b16 %v242
        %v275 = vunpack.c.l.b16 %v243
        %v276 = vunpack.c.l.b16 %v244
        %v277 = vunpack.c.l.b16 %v245
        %v278 = vpack.c.b16 %v263, %v262
        %v279 = vpack.c.b16 %v265, %v264
        %v280 = vpack.c.b16 %v267, %v266
        %v281 = vpack.c.b16 %v269, %v268
        %v282 = vpack.c.b16 %v271, %v270
        %v283 = vpack.c.b16 %v273, %v272
        %v284 = vpack.c.b16 %v275, %v274
        %v285 = vpack.c.b16 %v277, %v276
        %294 = vmatpush.bf16.msra.mxu0 %v285
        %295 = vmatpush.bf16.msra.mxu0 %v284
        %296 = vmatpush.bf16.msra.mxu0 %v283
        %297 = vmatpush.bf16.msra.mxu0 %v282
        %298 = vmatpush.bf16.msra.mxu0 %v281
        %299 = vmatpush.bf16.msra.mxu0 %v280
        %300 = vmatpush.bf16.msra.mxu0 %v279
        %301 = vmatpush.bf16.msra.mxu0 %v278
        %302 = vmatmul.bf16.gmra.mxu0 %v222
        %v303 = vpop.f32.mrf.mxu0
        %v304 = vadd.f32 0.0, %v303
        %v305 = vpop.f32.mrf.mxu0
        %v306 = vadd.f32 0.0, %v305
        %307 = vmatmul.bf16.gmra.mxu0 %v223
        %v308 = vpop.f32.mrf.mxu0
        %v309 = vadd.f32 0.0, %v308
        %v310 = vpop.f32.mrf.mxu0
        %v311 = vadd.f32 0.0, %v310
        %312 = vmatmul.bf16.gmra.mxu0 %v224
        %v313 = vpop.f32.mrf.mxu0
        %v314 = vadd.f32 0.0, %v313
        %v315 = vpop.f32.mrf.mxu0
        %v316 = vadd.f32 0.0, %v315
        %317 = vmatmul.bf16.gmra.mxu0 %v225
        %v318 = vpop.f32.mrf.mxu0
        %v319 = vadd.f32 0.0, %v318
        %v320 = vpop.f32.mrf.mxu0
        %v321 = vadd.f32 0.0, %v320
        %322 = vmatmul.bf16.gmra.mxu0 %v226
        %v323 = vpop.f32.mrf.mxu0
        %v324 = vadd.f32 0.0, %v323
        %v325 = vpop.f32.mrf.mxu0
        %v326 = vadd.f32 0.0, %v325
        %327 = vmatmul.bf16.gmra.mxu0 %v227
        %v328 = vpop.f32.mrf.mxu0
        %v329 = vadd.f32 0.0, %v328
        %v330 = vpop.f32.mrf.mxu0
        %v331 = vadd.f32 0.0, %v330
        %332 = vmatmul.bf16.gmra.mxu0 %v228
        %v333 = vpop.f32.mrf.mxu0
        %v334 = vadd.f32 0.0, %v333
        %v335 = vpop.f32.mrf.mxu0
        %v336 = vadd.f32 0.0, %v335
        %337 = vmatmul.bf16.gmra.mxu0 %v229
        %v338 = vpop.f32.mrf.mxu0
        %v339 = vadd.f32 0.0, %v338
        %v340 = vpop.f32.mrf.mxu0
        %v341 = vadd.f32 0.0, %v340
        %342 = vdwg.mxu0
        %vm343 = vcmask 261120
        %344 = vst.msk [vmem:[%s200] sm:$0xff] %vm343, %v304
        %345 = vst.msk [vmem:[%s200 + $0x8] sm:$0xff] %vm343, %v306
        %346 = vst.msk [vmem:[%s200 + $0x10] sm:$0xff] %vm343, %v309
        %347 = vst.msk [vmem:[%s200 + $0x18] sm:$0xff] %vm343, %v311
        %348 = vst.msk [vmem:[%s200 + $0x20] sm:$0xff] %vm343, %v314
        %349 = vst.msk [vmem:[%s200 + $0x28] sm:$0xff] %vm343, %v316
        %350 = vst.msk [vmem:[%s200 + $0x30] sm:$0xff] %vm343, %v319
        %351 = vst.msk [vmem:[%s200 + $0x38] sm:$0xff] %vm343, %v321
        %352 = vst.msk [vmem:[%s200 + $0x40] sm:$0xff] %vm343, %v324
        %353 = vst.msk [vmem:[%s200 + $0x48] sm:$0xff] %vm343, %v326
        %354 = vst.msk [vmem:[%s200 + $0x50] sm:$0xff] %vm343, %v329
        %355 = vst.msk [vmem:[%s200 + $0x58] sm:$0xff] %vm343, %v331
        %356 = vst.msk [vmem:[%s200 + $0x60] sm:$0xff] %vm343, %v334
        %357 = vst.msk [vmem:[%s200 + $0x68] sm:$0xff] %vm343, %v336
        %358 = vst.msk [vmem:[%s200 + $0x70] sm:$0xff] %vm343, %v339
        %359 = vst.msk [vmem:[%s200 + $0x78] sm:$0xff] %vm343, %v341
        %v360 = vsel %vm343, %v304, 0.0
        %v361 = vsel %vm343, %v306, 0.0
        %v362 = vadd.f32 %v360, %v361
        %v363 = vsel %vm343, %v309, 0.0
        %v364 = vadd.f32 %v362, %v363
        %v365 = vsel %vm343, %v311, 0.0
        %v366 = vadd.f32 %v364, %v365
        %v367 = vsel %vm343, %v314, 0.0
        %v368 = vadd.f32 %v366, %v367
        %v369 = vsel %vm343, %v316, 0.0
        %v370 = vadd.f32 %v368, %v369
        %v371 = vsel %vm343, %v319, 0.0
        %v372 = vadd.f32 %v370, %v371
        %v373 = vsel %vm343, %v321, 0.0
        %v374 = vadd.f32 %v372, %v373
        %v375 = vsel %vm343, %v324, 0.0
        %v376 = vadd.f32 %v374, %v375
        %v377 = vsel %vm343, %v326, 0.0
        %v378 = vadd.f32 %v376, %v377
        %v379 = vsel %vm343, %v329, 0.0
        %v380 = vadd.f32 %v378, %v379
        %v381 = vsel %vm343, %v331, 0.0
        %v382 = vadd.f32 %v380, %v381
        %v383 = vsel %vm343, %v334, 0.0
        %v384 = vadd.f32 %v382, %v383
        %v385 = vsel %vm343, %v336, 0.0
        %v386 = vadd.f32 %v384, %v385
        %v387 = vsel %vm343, %v339, 0.0
        %v388 = vadd.f32 %v386, %v387
        %v389 = vsel %vm343, %v341, 0.0
        %v390 = vadd.f32 %v388, %v389
        %v391 = vrot.slane %v390, 4
        %v392 = vadd.f32 %v390, %v391
        %v393 = vrot.slane %v392, 2
        %v394 = vadd.f32 %v392, %v393
        %v395 = vrot.slane %v394, 1
        %v396 = vadd.f32 %v394, %v395
        %v397 = vmul.f32 %v396, 0.0078125
        %v398 = vsub.f32 %v304, %v397
        %v399 = vsub.f32 %v306, %v397
        %v400 = vsub.f32 %v309, %v397
        %v401 = vsub.f32 %v311, %v397
        %v402 = vsub.f32 %v314, %v397
        %v403 = vsub.f32 %v316, %v397
        %v404 = vsub.f32 %v319, %v397
        %v405 = vsub.f32 %v321, %v397
        %v406 = vsub.f32 %v324, %v397
        %v407 = vsub.f32 %v326, %v397
        %v408 = vsub.f32 %v329, %v397
        %v409 = vsub.f32 %v331, %v397
        %v410 = vsub.f32 %v334, %v397
        %v411 = vsub.f32 %v336, %v397
        %v412 = vsub.f32 %v339, %v397
        %v413 = vsub.f32 %v341, %v397
        %v414 = vmul.f32 %v398, %v398
        %v415 = vmul.f32 %v399, %v399
        %v416 = vmul.f32 %v400, %v400
        %v417 = vmul.f32 %v401, %v401
        %v418 = vmul.f32 %v402, %v402
        %v419 = vmul.f32 %v403, %v403
        %v420 = vmul.f32 %v404, %v404
        %v421 = vmul.f32 %v405, %v405
        %v422 = vmul.f32 %v406, %v406
        %v423 = vmul.f32 %v407, %v407
        %v424 = vmul.f32 %v408, %v408
        %v425 = vmul.f32 %v409, %v409
        %v426 = vmul.f32 %v410, %v410
        %v427 = vmul.f32 %v411, %v411
        %v428 = vmul.f32 %v412, %v412
        %v429 = vmul.f32 %v413, %v413
        %v430 = vsel %vm343, %v414, 0.0
        %v431 = vsel %vm343, %v415, 0.0
        %v432 = vadd.f32 %v430, %v431
        %v433 = vsel %vm343, %v416, 0.0
        %v434 = vadd.f32 %v432, %v433
        %v435 = vsel %vm343, %v417, 0.0
        %v436 = vadd.f32 %v434, %v435
        %v437 = vsel %vm343, %v418, 0.0
        %v438 = vadd.f32 %v436, %v437
        %v439 = vsel %vm343, %v419, 0.0
        %v440 = vadd.f32 %v438, %v439
        %v441 = vsel %vm343, %v420, 0.0
        %v442 = vadd.f32 %v440, %v441
        %v443 = vsel %vm343, %v421, 0.0
        %v444 = vadd.f32 %v442, %v443
        %v445 = vsel %vm343, %v422, 0.0
        %v446 = vadd.f32 %v444, %v445
        %v447 = vsel %vm343, %v423, 0.0
        %v448 = vadd.f32 %v446, %v447
        %v449 = vsel %vm343, %v424, 0.0
        %v450 = vadd.f32 %v448, %v449
        %v451 = vsel %vm343, %v425, 0.0
        %v452 = vadd.f32 %v450, %v451
        %v453 = vsel %vm343, %v426, 0.0
        %v454 = vadd.f32 %v452, %v453
        %v455 = vsel %vm343, %v427, 0.0
        %v456 = vadd.f32 %v454, %v455
        %v457 = vsel %vm343, %v428, 0.0
        %v458 = vadd.f32 %v456, %v457
        %v459 = vsel %vm343, %v429, 0.0
        %v460 = vadd.f32 %v458, %v459
        %v461 = vrot.slane %v460, 4
        %v462 = vadd.f32 %v460, %v461
        %v463 = vrot.slane %v462, 2
        %v464 = vadd.f32 %v462, %v463
        %v465 = vrot.slane %v464, 1
        %v466 = vadd.f32 %v464, %v465
        %vm467 = vcmask 1040384
        %v468 = vsel %vm467, %v396, %v466
        %vm469 = vcmask 254976
        %470 = vst.msk [vmem:[%s205] sm:$0x3] %vm469, %v468
        %s471 = smul.u32 16, %s18
        %p472 = scmp.lt.s32.totalorder %s471, 63
        %s473 = scalar_select %p472, %s471, 63
        %s474 = smul.addr %s473, 8
        %s475 = scalar_lea.vmem %s2, %s474
        %p476 = scmp.lt.s32.totalorder %s18, 3
        %s477 = scalar_select %p476, %s18, 3
        %s478 = smul.addr %s477, 2
        %s479 = scalar_lea.vmem %s3, %s478
        // Predicated region
        $region33: #{bottleneck_pallas.4} parent=27 // pred_check
          %p480 = pneg %p83
        $region34: #{bottleneck_pallas.4} parent=27 // pred_check_branch
          %482 = sbr.rel (%p480) target = $region36
        $region35: #{bottleneck_pallas.4} parent=27 // pred_region
          %s483 = smul.u32 16, %s18
        $region36: #{bottleneck_pallas.4} parent=27 // pred_fallthru
          _
        // Predicated region
        $region37: #{bottleneck_pallas.4} parent=27 // pred_check
          %p484 = pneg %p109
        $region38: #{bottleneck_pallas.4} parent=27 // pred_check_branch
          %486 = sbr.rel (%p484) target = $region40
        $region39: #{bottleneck_pallas.4} parent=27 // pred_region
          _
        $region40: #{bottleneck_pallas.4} parent=27 // pred_fallthru
          _
      $region28: #{bottleneck_pallas.4} parent=5 // pred_fallthru
        _
      %p487 = scmp.le.s32.totalorder 2, %s13
      // Predicated region
      $region41: #{bottleneck_pallas.4} parent=5 // pred_check
        %p488 = pneg %p487
      $region42: #{bottleneck_pallas.4} parent=5 // pred_check_branch
        %490 = sbr.rel (%p488) target = $region44
      $region43: #{bottleneck_pallas.4} parent=5 // pred_region
        %s491 = ssub.s32 %s13, 2
        // Predicated region
        $region45: #{bottleneck_pallas.4} parent=43 // pred_check
          %p492 = pneg %p89
        $region46: #{bottleneck_pallas.4} parent=43 // pred_check_branch
          %494 = sbr.rel (%p492) target = $region48
        $region47: #{bottleneck_pallas.4} parent=43 // pred_region
          %s495 = smul.u32 16, %s19
          %p496 = scmp.lt.s32.totalorder %s495, 63
          %s497 = scalar_select %p496, %s495, 63
          %s498 = smul.addr %s497, 8
          %s499 = scalar_lea.vmem %s2, %s498
        $region48: #{bottleneck_pallas.4} parent=43 // pred_fallthru
          _
        // Predicated region
        $region49: #{bottleneck_pallas.4} parent=43 // pred_check
          %p500 = pneg %p115
        $region50: #{bottleneck_pallas.4} parent=43 // pred_check_branch
          %502 = sbr.rel (%p500) target = $region52
        $region51: #{bottleneck_pallas.4} parent=43 // pred_region
          %p503 = scmp.lt.s32.totalorder %s19, 3
          %s504 = scalar_select %p503, %s19, 3
          %s505 = smul.addr %s504, 2
          %s506 = scalar_lea.vmem %s3, %s505
        $region52: #{bottleneck_pallas.4} parent=43 // pred_fallthru
          _
      $region44: #{bottleneck_pallas.4} parent=5 // pred_fallthru
        _
    $region6: #{bottleneck_pallas.4} parent=1 // loop_footer
      %s17 = sadd.s32 1, %s13
    $region7: #{bottleneck_pallas.4} parent=1 // loop_footer_branch
      %12 = sbr.rel target = $region3
    $region8: #{bottleneck_pallas.4} parent=1 // loop_exit
      _
    %507 = vsyncpa [#allocation3], 1
    %s508 = scalar_lea.sflag [#allocation3], 1
    %509 = vsyncpa %s508, 1

// kernel: bottleneck_pallas.6
$region0: #{bottleneck_pallas.6}
  #allocation0 [shape = 'u32[]', space=smem, size = 0x4, offset = 0x4, fixed_abs, tag = 'smem constant byte address 0x4 - core index']
  #allocation1 [shape = 'u32[72,128]{1,0:T(1,128)}', space=vmem, size = 0x9000, scoped, tag = 'internal scratch']
  %s0 = inlined_call_operand.vmem [shape: f32[512,32], index: 0, kind: input, shape index: {}]
  %s1 = inlined_call_operand.vmem [shape: f32[1,32], index: 1, kind: input, shape index: {}]
  %s2 = inlined_call_operand.vmem [shape: f32[1,32], index: 2, kind: input, shape index: {}]
  %s3 = inlined_call_operand.vmem [shape: bf16[32,128], index: 3, kind: input, shape index: {}]
  %s4 = inlined_call_operand.vmem [shape: f32[512,128], index: 4, kind: output, shape index: {0}]
  %s5 = inlined_call_operand.vmem [shape: f32[4,2,128], index: 5, kind: output, shape index: {1}]
  %6 = xla_tuple %s4, %s5
  %s7 = sld [smem:[#allocation0]]
  $region57: #{bottleneck_pallas.6} parent=0
    _
  %s9 = ssub.s32 1, %s7
  %s10 = scalar_select 0, %s9, %s7
  loop: start=0, step=1, limit=6
  $region2: #{bottleneck_pallas.6} parent=0 // loop_pre_header
    _
  $region3: #{bottleneck_pallas.6} parent=0 // loop_header
    %s12 = sphi 0, %s16
    %p13 = scmp.ge.s32.totalorder %s12, 6
    %s22 = sphi 0, %s24
    %s25 = sphi 0, %s22
    %s26 = sphi 0, %s25
    %s42 = sphi 0, %s26
    %s46 = sphi 0, %s46
    %s48 = sphi 0, %s46
    %s49 = sphi 0, %s48
    %s63 = sphi 0, %s49
    %s67 = sphi 0, %s67
    %s69 = sphi 0, %s67
    %s70 = sphi 0, %s69
    %s84 = sphi 0, %s70
    %s88 = sphi 0, %s88
    %s90 = sphi 0, %s88
    %s91 = sphi 0, %s90
    %s105 = sphi 0, %s91
    %s111 = sphi 0, %s113
    %s114 = sphi 0, %s111
    %s115 = sphi 0, %s114
    %s131 = sphi 0, %s115
    %s137 = sphi 0, %s139
    %s140 = sphi 0, %s137
    %s141 = sphi 0, %s140
    %s157 = sphi 0, %s141
  $region4: #{bottleneck_pallas.6} parent=0 // loop_header_branch
    %15 = sbr.rel (%p13) target = $region8
  $region5: #{bottleneck_pallas.6} parent=0 // loop_body
    %s17 = ssub.s32 %s12, 1
    %s18 = ssub.s32 %s12, 2
    %s19 = sadd.s32 %s12, 1
    %s20 = ssub.s32 %s12, %s19
    %p21 = scmp.eq.s32.totalorder %s20, 0
    %s23 = sadd.s32 %s22, 1
    %s24 = scalar_select %p21, %s22, %s23
    %p27 = pneg %p21
    %p28 = scmp.eq.s32.totalorder %s12, 3
    %p29 = por %p27, %p28
    %p30 = scmp.ne.s32.totalorder %s22, %s25
    %p31 = scmp.eq.s32.totalorder %s12, 0
    %p32 = por %p30, %p31
    %p33 = scmp.ne.s32.totalorder %s22, %s25
    %p34 = scmp.eq.s32.totalorder %s17, 3
    %p35 = por %p33, %p34
    %p36 = scmp.ne.s32.totalorder %s25, %s26
    %p37 = scmp.eq.s32.totalorder %s17, 0
    %p38 = por %p36, %p37
    %p39 = scmp.ne.s32.totalorder %s25, %s26
    %p40 = scmp.eq.s32.totalorder %s18, 3
    %p41 = por %p39, %p40
    %p43 = scmp.ne.s32.totalorder %s26, %s42
    %p44 = scmp.eq.s32.totalorder %s18, 0
    %p45 = por %p43, %p44
    %s47 = sadd.s32 %s46, 1
    %p50 = scmp.eq.s32.totalorder %s12, 3
    %p51 = scmp.ne.s32.totalorder %s46, %s48
    %p52 = scmp.eq.s32.totalorder %s12, 0
    %p53 = por %p51, %p52
    %p54 = scmp.ne.s32.totalorder %s46, %s48
    %p55 = scmp.eq.s32.totalorder %s17, 3
    %p56 = por %p54, %p55
    %p57 = scmp.ne.s32.totalorder %s48, %s49
    %p58 = scmp.eq.s32.totalorder %s17, 0
    %p59 = por %p57, %p58
    %p60 = scmp.ne.s32.totalorder %s48, %s49
    %p61 = scmp.eq.s32.totalorder %s18, 3
    %p62 = por %p60, %p61
    %p64 = scmp.ne.s32.totalorder %s49, %s63
    %p65 = scmp.eq.s32.totalorder %s18, 0
    %p66 = por %p64, %p65
    %s68 = sadd.s32 %s67, 1
    %p71 = scmp.eq.s32.totalorder %s12, 3
    %p72 = scmp.ne.s32.totalorder %s67, %s69
    %p73 = scmp.eq.s32.totalorder %s12, 0
    %p74 = por %p72, %p73
    %p75 = scmp.ne.s32.totalorder %s67, %s69
    %p76 = scmp.eq.s32.totalorder %s17, 3
    %p77 = por %p75, %p76
    %p78 = scmp.ne.s32.totalorder %s69, %s70
    %p79 = scmp.eq.s32.totalorder %s17, 0
    %p80 = por %p78, %p79
    %p81 = scmp.ne.s32.totalorder %s69, %s70
    %p82 = scmp.eq.s32.totalorder %s18, 3
    %p83 = por %p81, %p82
    %p85 = scmp.ne.s32.totalorder %s70, %s84
    %p86 = scmp.eq.s32.totalorder %s18, 0
    %p87 = por %p85, %p86
    %s89 = sadd.s32 %s88, 1
    %p92 = scmp.eq.s32.totalorder %s12, 3
    %p93 = scmp.ne.s32.totalorder %s88, %s90
    %p94 = scmp.eq.s32.totalorder %s12, 0
    %p95 = por %p93, %p94
    %p96 = scmp.ne.s32.totalorder %s88, %s90
    %p97 = scmp.eq.s32.totalorder %s17, 3
    %p98 = por %p96, %p97
    %p99 = scmp.ne.s32.totalorder %s90, %s91
    %p100 = scmp.eq.s32.totalorder %s17, 0
    %p101 = por %p99, %p100
    %p102 = scmp.ne.s32.totalorder %s90, %s91
    %p103 = scmp.eq.s32.totalorder %s18, 3
    %p104 = por %p102, %p103
    %p106 = scmp.ne.s32.totalorder %s91, %s105
    %p107 = scmp.eq.s32.totalorder %s18, 0
    %p108 = por %p106, %p107
    %s109 = ssub.s32 %s12, %s19
    %p110 = scmp.eq.s32.totalorder %s109, 0
    %s112 = sadd.s32 %s111, 1
    %s113 = scalar_select %p110, %s111, %s112
    %p116 = pneg %p110
    %p117 = scmp.eq.s32.totalorder %s12, 3
    %p118 = por %p116, %p117
    %p119 = scmp.ne.s32.totalorder %s111, %s114
    %p120 = scmp.eq.s32.totalorder %s12, 0
    %p121 = por %p119, %p120
    %p122 = scmp.ne.s32.totalorder %s111, %s114
    %p123 = scmp.eq.s32.totalorder %s17, 3
    %p124 = por %p122, %p123
    %p125 = scmp.ne.s32.totalorder %s114, %s115
    %p126 = scmp.eq.s32.totalorder %s17, 0
    %p127 = por %p125, %p126
    %p128 = scmp.ne.s32.totalorder %s114, %s115
    %p129 = scmp.eq.s32.totalorder %s18, 3
    %p130 = por %p128, %p129
    %p132 = scmp.ne.s32.totalorder %s115, %s131
    %p133 = scmp.eq.s32.totalorder %s18, 0
    %p134 = por %p132, %p133
    %s135 = ssub.s32 %s12, %s19
    %p136 = scmp.eq.s32.totalorder %s135, 0
    %s138 = sadd.s32 %s137, 1
    %s139 = scalar_select %p136, %s137, %s138
    %p142 = pneg %p136
    %p143 = scmp.eq.s32.totalorder %s12, 3
    %p144 = por %p142, %p143
    %p145 = scmp.ne.s32.totalorder %s137, %s140
    %p146 = scmp.eq.s32.totalorder %s12, 0
    %p147 = por %p145, %p146
    %p148 = scmp.ne.s32.totalorder %s137, %s140
    %p149 = scmp.eq.s32.totalorder %s17, 3
    %p150 = por %p148, %p149
    %p151 = scmp.ne.s32.totalorder %s140, %s141
    %p152 = scmp.eq.s32.totalorder %s17, 0
    %p153 = por %p151, %p152
    %p154 = scmp.ne.s32.totalorder %s140, %s141
    %p155 = scmp.eq.s32.totalorder %s18, 3
    %p156 = por %p154, %p155
    %p158 = scmp.ne.s32.totalorder %s141, %s157
    %p159 = scmp.eq.s32.totalorder %s18, 0
    %p160 = por %p158, %p159
    %p161 = scmp.le.s32.totalorder 1, %s12
    %p162 = scmp.lt.s32.totalorder %s12, 5
    %p163 = pnand %p161, %p162
    %p164 = pneg %p163
    // Predicated region
    $region9: #{bottleneck_pallas.6} parent=5 // pred_check
      _
    $region10: #{bottleneck_pallas.6} parent=5 // pred_check_branch
      %166 = sbr.rel (%p163) target = $region12
    $region11: #{bottleneck_pallas.6} parent=5 // pred_region
      %s167 = ssub.s32 %s12, 1
      // Predicated region
      $region13: #{bottleneck_pallas.6} parent=11 // pred_check
        %p168 = pneg %p59
      $region14: #{bottleneck_pallas.6} parent=11 // pred_check_branch
        %170 = sbr.rel (%p168) target = $region16
      $region15: #{bottleneck_pallas.6} parent=11 // pred_region
        _
      $region16: #{bottleneck_pallas.6} parent=11 // pred_fallthru
        _
      // Predicated region
      $region17: #{bottleneck_pallas.6} parent=11 // pred_check
        %p171 = pneg %p80
      $region18: #{bottleneck_pallas.6} parent=11 // pred_check_branch
        %173 = sbr.rel (%p171) target = $region20
      $region19: #{bottleneck_pallas.6} parent=11 // pred_region
        _
      $region20: #{bottleneck_pallas.6} parent=11 // pred_fallthru
        _
      // Predicated region
      $region21: #{bottleneck_pallas.6} parent=11 // pred_check
        %p174 = pneg %p101
      $region22: #{bottleneck_pallas.6} parent=11 // pred_check_branch
        %176 = sbr.rel (%p174) target = $region24
      $region23: #{bottleneck_pallas.6} parent=11 // pred_region
        _
      $region24: #{bottleneck_pallas.6} parent=11 // pred_fallthru
        _
    $region12: #{bottleneck_pallas.6} parent=5 // pred_fallthru
      _
    %p177 = scmp.lt.s32.totalorder %s12, 4
    // Predicated region
    $region25: #{bottleneck_pallas.6} parent=5 // pred_check
      %p178 = pneg %p177
    $region26: #{bottleneck_pallas.6} parent=5 // pred_check_branch
      %180 = sbr.rel (%p178) target = $region28
    $region27: #{bottleneck_pallas.6} parent=5 // pred_region
      // Predicated region
      $region29: #{bottleneck_pallas.6} parent=27 // pred_check
        %p181 = pneg %p32
      $region30: #{bottleneck_pallas.6} parent=27 // pred_check_branch
        %183 = sbr.rel (%p181) target = $region32
      $region31: #{bottleneck_pallas.6} parent=27 // pred_region
        %s184 = smul.u32 16, %s12
        %p185 = scmp.lt.s32.totalorder %s184, 63
        %s186 = scalar_select %p185, %s184, 63
        %s187 = smul.addr %s186, 8
        %s188 = scalar_lea.vmem %s0, %s187
        %s189 = smul.u32 16, %s12
      $region32: #{bottleneck_pallas.6} parent=27 // pred_fallthru
        _
    $region28: #{bottleneck_pallas.6} parent=5 // pred_fallthru
      _
    %p190 = scmp.le.s32.totalorder 1, %s12
    %p191 = scmp.lt.s32.totalorder %s12, 5
    %p192 = pnand %p190, %p191
    %p193 = pneg %p192
    // Predicated region
    $region33: #{bottleneck_pallas.6} parent=5 // pred_check
      _
    $region34: #{bottleneck_pallas.6} parent=5 // pred_check_branch
      %195 = sbr.rel (%p192) target = $region36
    $region35: #{bottleneck_pallas.6} parent=5 // pred_region
      %s196 = ssub.s32 %s12, 1
      %s197 = smul.u32 16, %s17
      %p198 = scmp.lt.s32.totalorder %s197, 63
      %s199 = scalar_select %p198, %s197, 63
      %s200 = smul.addr %s199, 8
      %s201 = scalar_lea.vmem %s0, %s200
      %p202 = pneg %p38
      %p203 = pneg %p35
      %p204 = pneg %p59
      %p205 = pneg %p56
      %p206 = pneg %p80
      %p207 = pneg %p77
      %p208 = pneg %p101
      %p209 = pneg %p98
      %p210 = pneg %p127
      %p211 = pneg %p124
      %s212 = smul.u32 16, %s17
      %p213 = scmp.lt.s32.totalorder %s212, 63
      %s214 = scalar_select %p213, %s212, 63
      %s215 = smul.addr %s214, 8
      %s216 = scalar_lea.vmem %s4, %s215
      %p217 = pneg %p153
      %p218 = pneg %p150
      %p219 = scmp.lt.s32.totalorder %s17, 3
      %s220 = scalar_select %p219, %s17, 3
      %s221 = smul.addr %s220, 2
      %s222 = scalar_lea.vmem %s5, %s221
      %s223 = smul.u32 16, %s17
      %p224 = scmp.lt.s32.totalorder %s223, 63
      %s225 = scalar_select %p224, %s223, 63
      %s226 = smul.addr %s225, 8
      %s227 = scalar_lea.vmem %s0, %s226
      %s228 = smul.u32 16, %s17
      %s229 = smul.u32 16, %s17
      %p230 = scmp.lt.s32.totalorder %s229, 63
      %s231 = scalar_select %p230, %s229, 63
      %s232 = smul.addr %s231, 8
      %s233 = scalar_lea.vmem %s4, %s232
      %s234 = smul.u32 16, %s17
      %p235 = scmp.lt.s32.totalorder %s17, 3
      %s236 = scalar_select %p235, %s17, 3
      %s237 = smul.addr %s236, 2
      %s238 = scalar_lea.vmem %s5, %s237
      %v240 = vld [vmem:[%s227] sm:$0xff]
      %v241 = vld [vmem:[%s227 + $0x8] sm:$0xff]
      %v242 = vld [vmem:[%s227 + $0x10] sm:$0xff]
      %v243 = vld [vmem:[%s227 + $0x18] sm:$0xff]
      %v244 = vld [vmem:[%s227 + $0x20] sm:$0xff]
      %v245 = vld [vmem:[%s227 + $0x28] sm:$0xff]
      %v246 = vld [vmem:[%s227 + $0x30] sm:$0xff]
      %v247 = vld [vmem:[%s227 + $0x38] sm:$0xff]
      %v248 = vld [vmem:[%s227 + $0x40] sm:$0xff]
      %v249 = vld [vmem:[%s227 + $0x48] sm:$0xff]
      %v250 = vld [vmem:[%s227 + $0x50] sm:$0xff]
      %v251 = vld [vmem:[%s227 + $0x58] sm:$0xff]
      %v252 = vld [vmem:[%s227 + $0x60] sm:$0xff]
      %v253 = vld [vmem:[%s227 + $0x68] sm:$0xff]
      %v254 = vld [vmem:[%s227 + $0x70] sm:$0xff]
      %v255 = vld [vmem:[%s227 + $0x78] sm:$0xff]
      %v256 = vld [vmem:[%s1] sm:$0x1]
      %v258 = vperm.slane %v256, 0
      %v260 = vsub.f32 %v240, %v258
      %v261 = vsub.f32 %v241, %v258
      %v262 = vsub.f32 %v242, %v258
      %v263 = vsub.f32 %v243, %v258
      %v264 = vsub.f32 %v244, %v258
      %v265 = vsub.f32 %v245, %v258
      %v266 = vsub.f32 %v246, %v258
      %v267 = vsub.f32 %v247, %v258
      %v268 = vsub.f32 %v248, %v258
      %v269 = vsub.f32 %v249, %v258
      %v270 = vsub.f32 %v250, %v258
      %v271 = vsub.f32 %v251, %v258
      %v272 = vsub.f32 %v252, %v258
      %v273 = vsub.f32 %v253, %v258
      %v274 = vsub.f32 %v254, %v258
      %v275 = vsub.f32 %v255, %v258
      %v276 = vld [vmem:[%s2] sm:$0x1]
      %v277 = vadd.f32 %v276, 1e-05
      %v278 = vrsqrt.pop %v277
      %v279 = vmul.f32 %v278, %v277
      %v280 = vmul.f32 %v279, %v278
      %v281 = vmul.f32 0.5, %v280
      %v282 = vsub.f32 1.5, %v281
      %v283 = vmul.f32 %v278, %v282
      %vm284 = vweird.f32 %v277
      %vm285 = vweird.f32 %v278
      %vm286 = vmor %vm284, %vm285
      %v287 = vsel %vm286, %v278, %v283
      %v289 = vperm.slane %v287, 0
      %v291 = vmul.f32 %v260, %v289
      %v292 = vmul.f32 %v261, %v289
      %v293 = vmul.f32 %v262, %v289
      %v294 = vmul.f32 %v263, %v289
      %v295 = vmul.f32 %v264, %v289
      %v296 = vmul.f32 %v265, %v289
      %v297 = vmul.f32 %v266, %v289
      %v298 = vmul.f32 %v267, %v289
      %v299 = vmul.f32 %v268, %v289
      %v300 = vmul.f32 %v269, %v289
      %v301 = vmul.f32 %v270, %v289
      %v302 = vmul.f32 %v271, %v289
      %v303 = vmul.f32 %v272, %v289
      %v304 = vmul.f32 %v273, %v289
      %v305 = vmul.f32 %v274, %v289
      %v306 = vmul.f32 %v275, %v289
      %v307 = vmax.f32 %v291, 0.0
      %v308 = vmax.f32 %v292, 0.0
      %v309 = vmax.f32 %v293, 0.0
      %v310 = vmax.f32 %v294, 0.0
      %v311 = vmax.f32 %v295, 0.0
      %v312 = vmax.f32 %v296, 0.0
      %v313 = vmax.f32 %v297, 0.0
      %v314 = vmax.f32 %v298, 0.0
      %v315 = vmax.f32 %v299, 0.0
      %v316 = vmax.f32 %v300, 0.0
      %v317 = vmax.f32 %v301, 0.0
      %v318 = vmax.f32 %v302, 0.0
      %v319 = vmax.f32 %v303, 0.0
      %v320 = vmax.f32 %v304, 0.0
      %v321 = vmax.f32 %v305, 0.0
      %v322 = vmax.f32 %v306, 0.0
      %v323 = vpack.c.bf16 %v308, %v307
      %v324 = vpack.c.bf16 %v310, %v309
      %v325 = vpack.c.bf16 %v312, %v311
      %v326 = vpack.c.bf16 %v314, %v313
      %v327 = vpack.c.bf16 %v316, %v315
      %v328 = vpack.c.bf16 %v318, %v317
      %v329 = vpack.c.bf16 %v320, %v319
      %v330 = vpack.c.bf16 %v322, %v321
      %v331 = vld [vmem:[%s3] sm:$0xf]
      %v332 = vld [vmem:[%s3 + $0x4] sm:$0xf]
      %v333 = vld [vmem:[%s3 + $0x8] sm:$0xf]
      %v334 = vld [vmem:[%s3 + $0xc] sm:$0xf]
      %v339 = vunpack.c.l.b16 %v331
      %v340 = vunpack.c.l.b16 %v332
      %v341 = vunpack.c.l.b16 %v333
      %v342 = vunpack.c.l.b16 %v334
      %v343 = vpack.c.b16 %v340, %v339
      %v344 = vpack.c.b16 %v342, %v341
      %vm347 = vcmask 261120
      %v349 = vsel %vm347, %v323, 0
      %v352 = vsel %vm347, %v324, 0
      %v355 = vsel %vm347, %v325, 0
      %v358 = vsel %vm347, %v326, 0
      %v361 = vsel %vm347, %v327, 0
      %v364 = vsel %vm347, %v328, 0
      %v367 = vsel %vm347, %v329, 0
      %v370 = vsel %vm347, %v330, 0
      %372 = vmatpush.bf16.msra.mxu0 0
      %373 = vmatpush.bf16.msra.mxu0 0
      %374 = vmatpush.bf16.msra.mxu0 0
      %375 = vmatpush.bf16.msra.mxu0 0
      %376 = vmatpush.bf16.msra.mxu0 0
      %377 = vmatpush.bf16.msra.mxu0 0
      %378 = vmatpush.bf16.msra.mxu0 %v344
      %379 = vmatpush.bf16.msra.mxu0 %v343
      %380 = vmatmul.bf16.gmra.mxu0 %v349
      %v381 = vpop.f32.mrf.mxu0
      %v382 = vadd.f32 0.0, %v381
      %v383 = vpop.f32.mrf.mxu0
      %v384 = vadd.f32 0.0, %v383
      %385 = vmatmul.bf16.gmra.mxu0 %v352
      %v386 = vpop.f32.mrf.mxu0
      %v387 = vadd.f32 0.0, %v386
      %v388 = vpop.f32.mrf.mxu0
      %v389 = vadd.f32 0.0, %v388
      %390 = vmatmul.bf16.gmra.mxu0 %v355
      %v391 = vpop.f32.mrf.mxu0
      %v392 = vadd.f32 0.0, %v391
      %v393 = vpop.f32.mrf.mxu0
      %v394 = vadd.f32 0.0, %v393
      %395 = vmatmul.bf16.gmra.mxu0 %v358
      %v396 = vpop.f32.mrf.mxu0
      %v397 = vadd.f32 0.0, %v396
      %v398 = vpop.f32.mrf.mxu0
      %v399 = vadd.f32 0.0, %v398
      %400 = vmatmul.bf16.gmra.mxu0 %v361
      %v401 = vpop.f32.mrf.mxu0
      %v402 = vadd.f32 0.0, %v401
      %v403 = vpop.f32.mrf.mxu0
      %v404 = vadd.f32 0.0, %v403
      %405 = vmatmul.bf16.gmra.mxu0 %v364
      %v406 = vpop.f32.mrf.mxu0
      %v407 = vadd.f32 0.0, %v406
      %v408 = vpop.f32.mrf.mxu0
      %v409 = vadd.f32 0.0, %v408
      %410 = vmatmul.bf16.gmra.mxu0 %v367
      %v411 = vpop.f32.mrf.mxu0
      %v412 = vadd.f32 0.0, %v411
      %v413 = vpop.f32.mrf.mxu0
      %v414 = vadd.f32 0.0, %v413
      %415 = vmatmul.bf16.gmra.mxu0 %v370
      %v416 = vpop.f32.mrf.mxu0
      %v417 = vadd.f32 0.0, %v416
      %v418 = vpop.f32.mrf.mxu0
      %v419 = vadd.f32 0.0, %v418
      %420 = vdwg.mxu0
      %421 = vst [vmem:[%s233] sm:$0xff] %v382
      %422 = vst [vmem:[%s233 + $0x8] sm:$0xff] %v384
      %423 = vst [vmem:[%s233 + $0x10] sm:$0xff] %v387
      %424 = vst [vmem:[%s233 + $0x18] sm:$0xff] %v389
      %425 = vst [vmem:[%s233 + $0x20] sm:$0xff] %v392
      %426 = vst [vmem:[%s233 + $0x28] sm:$0xff] %v394
      %427 = vst [vmem:[%s233 + $0x30] sm:$0xff] %v397
      %428 = vst [vmem:[%s233 + $0x38] sm:$0xff] %v399
      %429 = vst [vmem:[%s233 + $0x40] sm:$0xff] %v402
      %430 = vst [vmem:[%s233 + $0x48] sm:$0xff] %v404
      %431 = vst [vmem:[%s233 + $0x50] sm:$0xff] %v407
      %432 = vst [vmem:[%s233 + $0x58] sm:$0xff] %v409
      %433 = vst [vmem:[%s233 + $0x60] sm:$0xff] %v412
      %434 = vst [vmem:[%s233 + $0x68] sm:$0xff] %v414
      %435 = vst [vmem:[%s233 + $0x70] sm:$0xff] %v417
      %436 = vst [vmem:[%s233 + $0x78] sm:$0xff] %v419
      %v437 = vadd.f32 %v382, %v384
      %v438 = vadd.f32 %v437, %v387
      %v439 = vadd.f32 %v438, %v389
      %v440 = vadd.f32 %v439, %v392
      %v441 = vadd.f32 %v440, %v394
      %v442 = vadd.f32 %v441, %v397
      %v443 = vadd.f32 %v442, %v399
      %v444 = vadd.f32 %v443, %v402
      %v445 = vadd.f32 %v444, %v404
      %v446 = vadd.f32 %v445, %v407
      %v447 = vadd.f32 %v446, %v409
      %v448 = vadd.f32 %v447, %v412
      %v449 = vadd.f32 %v448, %v414
      %v450 = vadd.f32 %v449, %v417
      %v451 = vadd.f32 %v450, %v419
      %v452 = vrot.slane %v451, 4
      %v453 = vadd.f32 %v451, %v452
      %v454 = vrot.slane %v453, 2
      %v455 = vadd.f32 %v453, %v454
      %v456 = vrot.slane %v455, 1
      %v457 = vadd.f32 %v455, %v456
      %v458 = vmul.f32 %v457, 0.0078125
      %v459 = vsub.f32 %v382, %v458
      %v460 = vsub.f32 %v384, %v458
      %v461 = vsub.f32 %v387, %v458
      %v462 = vsub.f32 %v389, %v458
      %v463 = vsub.f32 %v392, %v458
      %v464 = vsub.f32 %v394, %v458
      %v465 = vsub.f32 %v397, %v458
      %v466 = vsub.f32 %v399, %v458
      %v467 = vsub.f32 %v402, %v458
      %v468 = vsub.f32 %v404, %v458
      %v469 = vsub.f32 %v407, %v458
      %v470 = vsub.f32 %v409, %v458
      %v471 = vsub.f32 %v412, %v458
      %v472 = vsub.f32 %v414, %v458
      %v473 = vsub.f32 %v417, %v458
      %v474 = vsub.f32 %v419, %v458
      %v475 = vmul.f32 %v459, %v459
      %v476 = vmul.f32 %v460, %v460
      %v477 = vmul.f32 %v461, %v461
      %v478 = vmul.f32 %v462, %v462
      %v479 = vmul.f32 %v463, %v463
      %v480 = vmul.f32 %v464, %v464
      %v481 = vmul.f32 %v465, %v465
      %v482 = vmul.f32 %v466, %v466
      %v483 = vmul.f32 %v467, %v467
      %v484 = vmul.f32 %v468, %v468
      %v485 = vmul.f32 %v469, %v469
      %v486 = vmul.f32 %v470, %v470
      %v487 = vmul.f32 %v471, %v471
      %v488 = vmul.f32 %v472, %v472
      %v489 = vmul.f32 %v473, %v473
      %v490 = vmul.f32 %v474, %v474
      %v491 = vadd.f32 %v475, %v476
      %v492 = vadd.f32 %v491, %v477
      %v493 = vadd.f32 %v492, %v478
      %v494 = vadd.f32 %v493, %v479
      %v495 = vadd.f32 %v494, %v480
      %v496 = vadd.f32 %v495, %v481
      %v497 = vadd.f32 %v496, %v482
      %v498 = vadd.f32 %v497, %v483
      %v499 = vadd.f32 %v498, %v484
      %v500 = vadd.f32 %v499, %v485
      %v501 = vadd.f32 %v500, %v486
      %v502 = vadd.f32 %v501, %v487
      %v503 = vadd.f32 %v502, %v488
      %v504 = vadd.f32 %v503, %v489
      %v505 = vadd.f32 %v504, %v490
      %v506 = vrot.slane %v505, 4
      %v507 = vadd.f32 %v505, %v506
      %v508 = vrot.slane %v507, 2
      %v509 = vadd.f32 %v507, %v508
      %v510 = vrot.slane %v509, 1
      %v511 = vadd.f32 %v509, %v510
      %vm512 = vcmask 1040384
      %v513 = vsel %vm512, %v457, %v511
      %514 = vst [vmem:[%s238] sm:$0x3] %v513
      %s515 = smul.u32 16, %s17
      %p516 = scmp.lt.s32.totalorder %s515, 63
      %s517 = scalar_select %p516, %s515, 63
      %s518 = smul.addr %s517, 8
      %s519 = scalar_lea.vmem %s4, %s518
      %p520 = scmp.lt.s32.totalorder %s17, 3
      %s521 = scalar_select %p520, %s17, 3
      %s522 = smul.addr %s521, 2
      %s523 = scalar_lea.vmem %s5, %s522
      // Predicated region
      $region37: #{bottleneck_pallas.6} parent=35 // pred_check
        %p524 = pneg %p124
      $region38: #{bottleneck_pallas.6} parent=35 // pred_check_branch
        %526 = sbr.rel (%p524) target = $region40
      $region39: #{bottleneck_pallas.6} parent=35 // pred_region
        %s527 = smul.u32 16, %s17
      $region40: #{bottleneck_pallas.6} parent=35 // pred_fallthru
        _
      // Predicated region
      $region41: #{bottleneck_pallas.6} parent=35 // pred_check
        %p528 = pneg %p150
      $region42: #{bottleneck_pallas.6} parent=35 // pred_check_branch
        %530 = sbr.rel (%p528) target = $region44
      $region43: #{bottleneck_pallas.6} parent=35 // pred_region
        _
      $region44: #{bottleneck_pallas.6} parent=35 // pred_fallthru
        _
    $region36: #{bottleneck_pallas.6} parent=5 // pred_fallthru
      _
    %p531 = scmp.le.s32.totalorder 2, %s12
    // Predicated region
    $region45: #{bottleneck_pallas.6} parent=5 // pred_check
      %p532 = pneg %p531
    $region46: #{bottleneck_pallas.6} parent=5 // pred_check_branch
      %534 = sbr.rel (%p532) target = $region48
    $region47: #{bottleneck_pallas.6} parent=5 // pred_region
      %s535 = ssub.s32 %s12, 2
      // Predicated region
      $region49: #{bottleneck_pallas.6} parent=47 // pred_check
        %p536 = pneg %p130
      $region50: #{bottleneck_pallas.6} parent=47 // pred_check_branch
        %538 = sbr.rel (%p536) target = $region52
      $region51: #{bottleneck_pallas.6} parent=47 // pred_region
        %s539 = smul.u32 16, %s18
        %p540 = scmp.lt.s32.totalorder %s539, 63
        %s541 = scalar_select %p540, %s539, 63
        %s542 = smul.addr %s541, 8
        %s543 = scalar_lea.vmem %s4, %s542
      $region52: #{bottleneck_pallas.6} parent=47 // pred_fallthru
        _
      // Predicated region
      $region53: #{bottleneck_pallas.6} parent=47 // pred_check
        %p544 = pneg %p156
      $region54: #{bottleneck_pallas.6} parent=47 // pred_check_branch
        %546 = sbr.rel (%p544) target = $region56
      $region55: #{bottleneck_pallas.6} parent=47 // pred_region
        %p547 = scmp.lt.s32.totalorder %s18, 3
        %s548 = scalar_select %p547, %s18, 3
        %s549 = smul.addr %s548, 2
        %s550 = scalar_lea.vmem %s5, %s549
      $region56: #{bottleneck_pallas.6} parent=47 // pred_fallthru
        _
    $region48: #{bottleneck_pallas.6} parent=5 // pred_fallthru
      _
  $region6: #{bottleneck_pallas.6} parent=0 // loop_footer
    %s16 = sadd.s32 1, %s12
  $region7: #{bottleneck_pallas.6} parent=0 // loop_footer_branch
    %11 = sbr.rel target = $region3
  $region8: #{bottleneck_pallas.6} parent=0 // loop_exit
    _

// kernel: bottleneck_pallas.7
$region0: #{bottleneck_pallas.7}
  #allocation0 [shape = 'u32[]', space=smem, size = 0x4, offset = 0x4, fixed_abs, tag = 'smem constant byte address 0x4 - core index']
  #allocation1 [shape = 'u32[72,128]{1,0:T(1,128)}', space=vmem, size = 0x9000, scoped, tag = 'internal scratch']
  %s0 = inlined_call_operand.vmem [shape: f32[512,128], index: 0, kind: input, shape index: {}]
  %s1 = inlined_call_operand.vmem [shape: f32[512,128], index: 1, kind: input, shape index: {}]
  %s2 = inlined_call_operand.vmem [shape: f32[1,128], index: 2, kind: input, shape index: {}]
  %s3 = inlined_call_operand.vmem [shape: f32[1,128], index: 3, kind: input, shape index: {}]
  %s4 = inlined_call_operand.hbm [shape: f32[512,128], index: 4, kind: output, shape index: {}]
  %s5 = sld [smem:[#allocation0]]
  $region49: #{bottleneck_pallas.7} parent=0
    _
  %s7 = ssub.s32 1, %s5
  %s8 = scalar_select 0, %s7, %s5
  $region1: #{bottleneck_pallas.7} parent=0
    #allocation2 [shape = 'u8[131072]{0}', space=vmem, size = 0x20000, scoped, tag = 'output window, operand 0']
    #allocation3 [shape = 's32[2]{0}', space=sflag, size = 0x8, scoped, tag = 'scoped memory for bottleneck_pallas.7']
    %9 = vsyncpa [#allocation3], 0
    %s10 = scalar_lea.sflag [#allocation3], 1
    %11 = vsyncpa %s10, 0
    loop: start=0, step=1, limit=6
    $region2: #{bottleneck_pallas.7} parent=1 // loop_pre_header
      _
    $region3: #{bottleneck_pallas.7} parent=1 // loop_header
      %s13 = sphi 0, %s17
      %p14 = scmp.ge.s32.totalorder %s13, 6
      %s23 = sphi 0, %s25
      %s26 = sphi 0, %s23
      %s27 = sphi 0, %s26
      %s43 = sphi 0, %s27
      %s49 = sphi 0, %s51
      %s52 = sphi 0, %s49
      %s53 = sphi 0, %s52
      %s69 = sphi 0, %s53
      %s73 = sphi 0, %s73
      %s75 = sphi 0, %s73
      %s76 = sphi 0, %s75
      %s90 = sphi 0, %s76
      %s94 = sphi 0, %s94
      %s96 = sphi 0, %s94
      %s97 = sphi 0, %s96
      %s111 = sphi 0, %s97
      %s117 = sphi 0, %s119
      %s120 = sphi 0, %s117
      %s121 = sphi 0, %s120
      %s137 = sphi 0, %s121
    $region4: #{bottleneck_pallas.7} parent=1 // loop_header_branch
      %16 = sbr.rel (%p14) target = $region8
    $region5: #{bottleneck_pallas.7} parent=1 // loop_body
      %s18 = ssub.s32 %s13, 1
      %s19 = ssub.s32 %s13, 2
      %s20 = sadd.s32 %s13, 1
      %s21 = ssub.s32 %s13, %s20
      %p22 = scmp.eq.s32.totalorder %s21, 0
      %s24 = sadd.s32 %s23, 1
      %s25 = scalar_select %p22, %s23, %s24
      %p28 = pneg %p22
      %p29 = scmp.eq.s32.totalorder %s13, 3
      %p30 = por %p28, %p29
      %p31 = scmp.ne.s32.totalorder %s23, %s26
      %p32 = scmp.eq.s32.totalorder %s13, 0
      %p33 = por %p31, %p32
      %p34 = scmp.ne.s32.totalorder %s23, %s26
      %p35 = scmp.eq.s32.totalorder %s18, 3
      %p36 = por %p34, %p35
      %p37 = scmp.ne.s32.totalorder %s26, %s27
      %p38 = scmp.eq.s32.totalorder %s18, 0
      %p39 = por %p37, %p38
      %p40 = scmp.ne.s32.totalorder %s26, %s27
      %p41 = scmp.eq.s32.totalorder %s19, 3
      %p42 = por %p40, %p41
      %p44 = scmp.ne.s32.totalorder %s27, %s43
      %p45 = scmp.eq.s32.totalorder %s19, 0
      %p46 = por %p44, %p45
      %s47 = ssub.s32 %s13, %s20
      %p48 = scmp.eq.s32.totalorder %s47, 0
      %s50 = sadd.s32 %s49, 1
      %s51 = scalar_select %p48, %s49, %s50
      %p54 = pneg %p48
      %p55 = scmp.eq.s32.totalorder %s13, 3
      %p56 = por %p54, %p55
      %p57 = scmp.ne.s32.totalorder %s49, %s52
      %p58 = scmp.eq.s32.totalorder %s13, 0
      %p59 = por %p57, %p58
      %p60 = scmp.ne.s32.totalorder %s49, %s52
      %p61 = scmp.eq.s32.totalorder %s18, 3
      %p62 = por %p60, %p61
      %p63 = scmp.ne.s32.totalorder %s52, %s53
      %p64 = scmp.eq.s32.totalorder %s18, 0
      %p65 = por %p63, %p64
      %p66 = scmp.ne.s32.totalorder %s52, %s53
      %p67 = scmp.eq.s32.totalorder %s19, 3
      %p68 = por %p66, %p67
      %p70 = scmp.ne.s32.totalorder %s53, %s69
      %p71 = scmp.eq.s32.totalorder %s19, 0
      %p72 = por %p70, %p71
      %s74 = sadd.s32 %s73, 1
      %p77 = scmp.eq.s32.totalorder %s13, 3
      %p78 = scmp.ne.s32.totalorder %s73, %s75
      %p79 = scmp.eq.s32.totalorder %s13, 0
      %p80 = por %p78, %p79
      %p81 = scmp.ne.s32.totalorder %s73, %s75
      %p82 = scmp.eq.s32.totalorder %s18, 3
      %p83 = por %p81, %p82
      %p84 = scmp.ne.s32.totalorder %s75, %s76
      %p85 = scmp.eq.s32.totalorder %s18, 0
      %p86 = por %p84, %p85
      %p87 = scmp.ne.s32.totalorder %s75, %s76
      %p88 = scmp.eq.s32.totalorder %s19, 3
      %p89 = por %p87, %p88
      %p91 = scmp.ne.s32.totalorder %s76, %s90
      %p92 = scmp.eq.s32.totalorder %s19, 0
      %p93 = por %p91, %p92
      %s95 = sadd.s32 %s94, 1
      %p98 = scmp.eq.s32.totalorder %s13, 3
      %p99 = scmp.ne.s32.totalorder %s94, %s96
      %p100 = scmp.eq.s32.totalorder %s13, 0
      %p101 = por %p99, %p100
      %p102 = scmp.ne.s32.totalorder %s94, %s96
      %p103 = scmp.eq.s32.totalorder %s18, 3
      %p104 = por %p102, %p103
      %p105 = scmp.ne.s32.totalorder %s96, %s97
      %p106 = scmp.eq.s32.totalorder %s18, 0
      %p107 = por %p105, %p106
      %p108 = scmp.ne.s32.totalorder %s96, %s97
      %p109 = scmp.eq.s32.totalorder %s19, 3
      %p110 = por %p108, %p109
      %p112 = scmp.ne.s32.totalorder %s97, %s111
      %p113 = scmp.eq.s32.totalorder %s19, 0
      %p114 = por %p112, %p113
      %s115 = ssub.s32 %s13, %s20
      %p116 = scmp.eq.s32.totalorder %s115, 0
      %s118 = sadd.s32 %s117, 1
      %s119 = scalar_select %p116, %s117, %s118
      %p122 = pneg %p116
      %p123 = scmp.eq.s32.totalorder %s13, 3
      %p124 = por %p122, %p123
      %p125 = scmp.ne.s32.totalorder %s117, %s120
      %p126 = scmp.eq.s32.totalorder %s13, 0
      %p127 = por %p125, %p126
      %p128 = scmp.ne.s32.totalorder %s117, %s120
      %p129 = scmp.eq.s32.totalorder %s18, 3
      %p130 = por %p128, %p129
      %p131 = scmp.ne.s32.totalorder %s120, %s121
      %p132 = scmp.eq.s32.totalorder %s18, 0
      %p133 = por %p131, %p132
      %p134 = scmp.ne.s32.totalorder %s120, %s121
      %p135 = scmp.eq.s32.totalorder %s19, 3
      %p136 = por %p134, %p135
      %p138 = scmp.ne.s32.totalorder %s121, %s137
      %p139 = scmp.eq.s32.totalorder %s19, 0
      %p140 = por %p138, %p139
      %p141 = scmp.le.s32.totalorder 1, %s13
      %p142 = scmp.lt.s32.totalorder %s13, 5
      %p143 = pnand %p141, %p142
      %p144 = pneg %p143
      // Predicated region
      $region9: #{bottleneck_pallas.7} parent=5 // pred_check
        _
      $region10: #{bottleneck_pallas.7} parent=5 // pred_check_branch
        %146 = sbr.rel (%p143) target = $region12
      $region11: #{bottleneck_pallas.7} parent=5 // pred_region
        %s147 = ssub.s32 %s13, 1
        // Predicated region
        $region13: #{bottleneck_pallas.7} parent=11 // pred_check
          %p148 = pneg %p86
        $region14: #{bottleneck_pallas.7} parent=11 // pred_check_branch
          %150 = sbr.rel (%p148) target = $region16
        $region15: #{bottleneck_pallas.7} parent=11 // pred_region
          _
        $region16: #{bottleneck_pallas.7} parent=11 // pred_fallthru
          _
        // Predicated region
        $region17: #{bottleneck_pallas.7} parent=11 // pred_check
          %p151 = pneg %p107
        $region18: #{bottleneck_pallas.7} parent=11 // pred_check_branch
          %153 = sbr.rel (%p151) target = $region20
        $region19: #{bottleneck_pallas.7} parent=11 // pred_region
          _
        $region20: #{bottleneck_pallas.7} parent=11 // pred_fallthru
          _
      $region12: #{bottleneck_pallas.7} parent=5 // pred_fallthru
        _
      %p154 = scmp.lt.s32.totalorder %s13, 4
      // Predicated region
      $region21: #{bottleneck_pallas.7} parent=5 // pred_check
        %p155 = pneg %p154
      $region22: #{bottleneck_pallas.7} parent=5 // pred_check_branch
        %157 = sbr.rel (%p155) target = $region24
      $region23: #{bottleneck_pallas.7} parent=5 // pred_region
        // Predicated region
        $region25: #{bottleneck_pallas.7} parent=23 // pred_check
          %p158 = pneg %p33
        $region26: #{bottleneck_pallas.7} parent=23 // pred_check_branch
          %160 = sbr.rel (%p158) target = $region28
        $region27: #{bottleneck_pallas.7} parent=23 // pred_region
          %s161 = smul.u32 16, %s13
          %p162 = scmp.lt.s32.totalorder %s161, 63
          %s163 = scalar_select %p162, %s161, 63
          %s164 = smul.addr %s163, 8
          %s165 = scalar_lea.vmem %s0, %s164
          %s166 = smul.u32 16, %s13
        $region28: #{bottleneck_pallas.7} parent=23 // pred_fallthru
          _
        // Predicated region
        $region29: #{bottleneck_pallas.7} parent=23 // pred_check
          %p167 = pneg %p59
        $region30: #{bottleneck_pallas.7} parent=23 // pred_check_branch
          %169 = sbr.rel (%p167) target = $region32
        $region31: #{bottleneck_pallas.7} parent=23 // pred_region
          %s170 = smul.u32 16, %s13
          %p171 = scmp.lt.s32.totalorder %s170, 63
          %s172 = scalar_select %p171, %s170, 63
          %s173 = smul.addr %s172, 8
          %s174 = scalar_lea.vmem %s1, %s173
          %s175 = smul.u32 16, %s13
        $region32: #{bottleneck_pallas.7} parent=23 // pred_fallthru
          _
      $region24: #{bottleneck_pallas.7} parent=5 // pred_fallthru
        _
      %p176 = scmp.le.s32.totalorder 1, %s13
      %p177 = scmp.lt.s32.totalorder %s13, 5
      %p178 = pnand %p176, %p177
      %p179 = pneg %p178
      // Predicated region
      $region33: #{bottleneck_pallas.7} parent=5 // pred_check
        _
      $region34: #{bottleneck_pallas.7} parent=5 // pred_check_branch
        %181 = sbr.rel (%p178) target = $region36
      $region35: #{bottleneck_pallas.7} parent=5 // pred_region
        %s182 = ssub.s32 %s13, 1
        %s183 = smul.u32 16, %s18
        %p184 = scmp.lt.s32.totalorder %s183, 63
        %s185 = scalar_select %p184, %s183, 63
        %s186 = smul.addr %s185, 8
        %s187 = scalar_lea.vmem %s0, %s186
        %p188 = pneg %p39
        %p189 = pneg %p36
        %s190 = smul.u32 16, %s18
        %p191 = scmp.lt.s32.totalorder %s190, 63
        %s192 = scalar_select %p191, %s190, 63
        %s193 = smul.addr %s192, 8
        %s194 = scalar_lea.vmem %s1, %s193
        %p195 = pneg %p65
        %p196 = pneg %p62
        %p197 = pneg %p86
        %p198 = pneg %p83
        %p199 = pneg %p107
        %p200 = pneg %p104
        %p201 = pneg %p133
        %p202 = pneg %p130
        %s203 = sand.u32 %s120, 1
        %s204 = scalar_lea.sflag [#allocation3], %s203
        %s205 = sand.u32 %s120, 1
        %s206 = smul.addr %s205, 128
        %s207 = scalar_lea.vmem [#allocation2], %s206
        %s208 = smul.u32 16, %s18
        %p209 = scmp.lt.s32.totalorder %s208, 63
        %s210 = scalar_select %p209, %s208, 63
        %s211 = smul.addr %s210, 8
        %s212 = scalar_lea.vmem %s0, %s211
        %s213 = smul.u32 16, %s18
        %s214 = smul.u32 16, %s18
        %p215 = scmp.lt.s32.totalorder %s214, 63
        %s216 = scalar_select %p215, %s214, 63
        %s217 = smul.addr %s216, 8
        %s218 = scalar_lea.vmem %s1, %s217
        %s219 = smul.u32 16, %s18
        %s220 = smul.u32 16, %s18
        %v221 = vld [vmem:[%s212] sm:$0xff]
        %v222 = vld [vmem:[%s212 + $0x8] sm:$0xff]
        %v223 = vld [vmem:[%s212 + $0x10] sm:$0xff]
        %v224 = vld [vmem:[%s212 + $0x18] sm:$0xff]
        %v225 = vld [vmem:[%s212 + $0x20] sm:$0xff]
        %v226 = vld [vmem:[%s212 + $0x28] sm:$0xff]
        %v227 = vld [vmem:[%s212 + $0x30] sm:$0xff]
        %v228 = vld [vmem:[%s212 + $0x38] sm:$0xff]
        %v229 = vld [vmem:[%s212 + $0x40] sm:$0xff]
        %v230 = vld [vmem:[%s212 + $0x48] sm:$0xff]
        %v231 = vld [vmem:[%s212 + $0x50] sm:$0xff]
        %v232 = vld [vmem:[%s212 + $0x58] sm:$0xff]
        %v233 = vld [vmem:[%s212 + $0x60] sm:$0xff]
        %v234 = vld [vmem:[%s212 + $0x68] sm:$0xff]
        %v235 = vld [vmem:[%s212 + $0x70] sm:$0xff]
        %v236 = vld [vmem:[%s212 + $0x78] sm:$0xff]
        %v237 = vld [vmem:[%s2] sm:$0x1]
        %v239 = vperm.slane %v237, 0
        %v241 = vsub.f32 %v221, %v239
        %v242 = vsub.f32 %v222, %v239
        %v243 = vsub.f32 %v223, %v239
        %v244 = vsub.f32 %v224, %v239
        %v245 = vsub.f32 %v225, %v239
        %v246 = vsub.f32 %v226, %v239
        %v247 = vsub.f32 %v227, %v239
        %v248 = vsub.f32 %v228, %v239
        %v249 = vsub.f32 %v229, %v239
        %v250 = vsub.f32 %v230, %v239
        %v251 = vsub.f32 %v231, %v239
        %v252 = vsub.f32 %v232, %v239
        %v253 = vsub.f32 %v233, %v239
        %v254 = vsub.f32 %v234, %v239
        %v255 = vsub.f32 %v235, %v239
        %v256 = vsub.f32 %v236, %v239
        %v257 = vld [vmem:[%s3] sm:$0x1]
        %v258 = vadd.f32 %v257, 1e-05
        %v259 = vrsqrt.pop %v258
        %v260 = vmul.f32 %v259, %v258
        %v261 = vmul.f32 %v260, %v259
        %v262 = vmul.f32 0.5, %v261
        %v263 = vsub.f32 1.5, %v262
        %v264 = vmul.f32 %v259, %v263
        %vm265 = vweird.f32 %v258
        %vm266 = vweird.f32 %v259
        %vm267 = vmor %vm265, %vm266
        %v268 = vsel %vm267, %v259, %v264
        %v270 = vperm.slane %v268, 0
        %v272 = vmul.f32 %v241, %v270
        %v273 = vmul.f32 %v242, %v270
        %v274 = vmul.f32 %v243, %v270
        %v275 = vmul.f32 %v244, %v270
        %v276 = vmul.f32 %v245, %v270
        %v277 = vmul.f32 %v246, %v270
        %v278 = vmul.f32 %v247, %v270
        %v279 = vmul.f32 %v248, %v270
        %v280 = vmul.f32 %v249, %v270
        %v281 = vmul.f32 %v250, %v270
        %v282 = vmul.f32 %v251, %v270
        %v283 = vmul.f32 %v252, %v270
        %v284 = vmul.f32 %v253, %v270
        %v285 = vmul.f32 %v254, %v270
        %v286 = vmul.f32 %v255, %v270
        %v287 = vmul.f32 %v256, %v270
        %v288 = vld [vmem:[%s218] sm:$0xff]
        %v289 = vld [vmem:[%s218 + $0x8] sm:$0xff]
        %v290 = vld [vmem:[%s218 + $0x10] sm:$0xff]
        %v291 = vld [vmem:[%s218 + $0x18] sm:$0xff]
        %v292 = vld [vmem:[%s218 + $0x20] sm:$0xff]
        %v293 = vld [vmem:[%s218 + $0x28] sm:$0xff]
        %v294 = vld [vmem:[%s218 + $0x30] sm:$0xff]
        %v295 = vld [vmem:[%s218 + $0x38] sm:$0xff]
        %v296 = vld [vmem:[%s218 + $0x40] sm:$0xff]
        %v297 = vld [vmem:[%s218 + $0x48] sm:$0xff]
        %v298 = vld [vmem:[%s218 + $0x50] sm:$0xff]
        %v299 = vld [vmem:[%s218 + $0x58] sm:$0xff]
        %v300 = vld [vmem:[%s218 + $0x60] sm:$0xff]
        %v301 = vld [vmem:[%s218 + $0x68] sm:$0xff]
        %v302 = vld [vmem:[%s218 + $0x70] sm:$0xff]
        %v303 = vld [vmem:[%s218 + $0x78] sm:$0xff]
        %v304 = vadd.f32 %v272, %v288
        %v305 = vadd.f32 %v273, %v289
        %v306 = vadd.f32 %v274, %v290
        %v307 = vadd.f32 %v275, %v291
        %v308 = vadd.f32 %v276, %v292
        %v309 = vadd.f32 %v277, %v293
        %v310 = vadd.f32 %v278, %v294
        %v311 = vadd.f32 %v279, %v295
        %v312 = vadd.f32 %v280, %v296
        %v313 = vadd.f32 %v281, %v297
        %v314 = vadd.f32 %v282, %v298
        %v315 = vadd.f32 %v283, %v299
        %v316 = vadd.f32 %v284, %v300
        %v317 = vadd.f32 %v285, %v301
        %v318 = vadd.f32 %v286, %v302
        %v319 = vadd.f32 %v287, %v303
        %v320 = vmax.f32 %v304, 0.0
        %v321 = vmax.f32 %v305, 0.0
        %v322 = vmax.f32 %v306, 0.0
        %v323 = vmax.f32 %v307, 0.0
        %v324 = vmax.f32 %v308, 0.0
        %v325 = vmax.f32 %v309, 0.0
        %v326 = vmax.f32 %v310, 0.0
        %v327 = vmax.f32 %v311, 0.0
        %v328 = vmax.f32 %v312, 0.0
        %v329 = vmax.f32 %v313, 0.0
        %v330 = vmax.f32 %v314, 0.0
        %v331 = vmax.f32 %v315, 0.0
        %v332 = vmax.f32 %v316, 0.0
        %v333 = vmax.f32 %v317, 0.0
        %v334 = vmax.f32 %v318, 0.0
        %v335 = vmax.f32 %v319, 0.0
        %336 = vst [vmem:[%s207] sm:$0xff] %v320
        %337 = vst [vmem:[%s207 + $0x8] sm:$0xff] %v321
        %338 = vst [vmem:[%s207 + $0x10] sm:$0xff] %v322
        %339 = vst [vmem:[%s207 + $0x18] sm:$0xff] %v323
        %340 = vst [vmem:[%s207 + $0x20] sm:$0xff] %v324
        %341 = vst [vmem:[%s207 + $0x28] sm:$0xff] %v325
        %342 = vst [vmem:[%s207 + $0x30] sm:$0xff] %v326
        %343 = vst [vmem:[%s207 + $0x38] sm:$0xff] %v327
        %344 = vst [vmem:[%s207 + $0x40] sm:$0xff] %v328
        %345 = vst [vmem:[%s207 + $0x48] sm:$0xff] %v329
        %346 = vst [vmem:[%s207 + $0x50] sm:$0xff] %v330
        %347 = vst [vmem:[%s207 + $0x58] sm:$0xff] %v331
        %348 = vst [vmem:[%s207 + $0x60] sm:$0xff] %v332
        %349 = vst [vmem:[%s207 + $0x68] sm:$0xff] %v333
        %350 = vst [vmem:[%s207 + $0x70] sm:$0xff] %v334
        %351 = vst [vmem:[%s207 + $0x78] sm:$0xff] %v335
        %s352 = sand.u32 %s120, 1
        %s353 = scalar_lea.sflag [#allocation3], %s352
        %s354 = sand.u32 %s120, 1
        %s355 = smul.addr %s354, 128
        %s356 = scalar_lea.vmem [#allocation2], %s355
        // Predicated region
        $region37: #{bottleneck_pallas.7} parent=35 // pred_check
          %p357 = pneg %p130
        $region38: #{bottleneck_pallas.7} parent=35 // pred_check_branch
          %359 = sbr.rel (%p357) target = $region40
        $region39: #{bottleneck_pallas.7} parent=35 // pred_region
          %s360 = smul.u32 16, %s18
          %362 = vsyncadd %s353, 0
          %s363 = smul.addr %s360, 8
          %s364 = scalar_lea.hbm %s4, %s363
          %s365 = sshll.u32 %s356, 4
          %s366 = int_to_ptr.vmem [resolvable:$true] %s365
          %s367 = sshll.u32 %s364, 4
          %s368 = int_to_ptr.hbm [resolvable:$true] %s367
          %373 = dma.vmem_to_hbm [thread:$0]  %s366, 2048, %s368, %s353, 128, 128, 8
        $region40: #{bottleneck_pallas.7} parent=35 // pred_fallthru
          _
      $region36: #{bottleneck_pallas.7} parent=5 // pred_fallthru
        _
      %p374 = scmp.le.s32.totalorder 2, %s13
      // Predicated region
      $region41: #{bottleneck_pallas.7} parent=5 // pred_check
        %p375 = pneg %p374
      $region42: #{bottleneck_pallas.7} parent=5 // pred_check_branch
        %377 = sbr.rel (%p375) target = $region44
      $region43: #{bottleneck_pallas.7} parent=5 // pred_region
        %s378 = ssub.s32 %s13, 2
        // Predicated region
        $region45: #{bottleneck_pallas.7} parent=43 // pred_check
          %p379 = pneg %p136
        $region46: #{bottleneck_pallas.7} parent=43 // pred_check_branch
          %381 = sbr.rel (%p379) target = $region48
        $region47: #{bottleneck_pallas.7} parent=43 // pred_region
          %s382 = sand.u32 %s121, 1
          %s383 = scalar_lea.sflag [#allocation3], %s382
          %s384 = sand.u32 %s121, 1
          %s385 = smul.addr %s384, 128
          %s386 = scalar_lea.vmem [#allocation2], %s385
          %388 = dma.done %s383, 2048
        $region48: #{bottleneck_pallas.7} parent=43 // pred_fallthru
          _
      $region44: #{bottleneck_pallas.7} parent=5 // pred_fallthru
        _
    $region6: #{bottleneck_pallas.7} parent=1 // loop_footer
      %s17 = sadd.s32 1, %s13
    $region7: #{bottleneck_pallas.7} parent=1 // loop_footer_branch
      %12 = sbr.rel target = $region3
    $region8: #{bottleneck_pallas.7} parent=1 // loop_exit
      _
    %389 = vsyncpa [#allocation3], 1
    %s390 = scalar_lea.sflag [#allocation3], 1
    %391 = vsyncpa %s390, 1

// kernel: bottleneck_pallas.5
$region0: #{bottleneck_pallas.5}
  #allocation0 [shape = 'u32[]', space=smem, size = 0x4, offset = 0x4, fixed_abs, tag = 'smem constant byte address 0x4 - core index']
  #allocation1 [shape = 'u32[72,128]{1,0:T(1,128)}', space=vmem, size = 0x9000, scoped, tag = 'internal scratch']
  %s0 = inlined_call_operand.vmem [shape: f32[2,256,32], index: 0, kind: input, shape index: {}]
  %s1 = inlined_call_operand.hbm [shape: f32[256,9], index: 1, kind: input, shape index: {}]
  %s2 = inlined_call_operand.vmem [shape: f32[1,32], index: 2, kind: input, shape index: {}]
  %s3 = inlined_call_operand.vmem [shape: f32[1,32], index: 3, kind: input, shape index: {}]
  %s4 = inlined_call_operand.vmem [shape: bf16[288,32], index: 4, kind: input, shape index: {}]
  %s5 = inlined_call_operand.vmem [shape: f32[2,256,32], index: 5, kind: output, shape index: {0}]
  %s6 = inlined_call_operand.vmem [shape: f32[2,2,32], index: 6, kind: output, shape index: {1}]
  %7 = xla_tuple %s5, %s6
  %s8 = sld [smem:[#allocation0]]
  $region65: #{bottleneck_pallas.5} parent=0
    _
  %s10 = ssub.s32 1, %s8
  %s11 = scalar_select 0, %s10, %s8
  $region1: #{bottleneck_pallas.5} parent=0
    #allocation2 [shape = 'u8[131072]{0}', space=vmem, size = 0x20000, scoped, tag = 'input window, operand 1, single buffered']
    #allocation3 [shape = 's32[2]{0}', space=sflag, size = 0x8, scoped, tag = 'scoped memory for bottleneck_pallas.5']
    %12 = vsyncpa [#allocation3], 0
    loop: start=0, step=1, limit=4
    $region2: #{bottleneck_pallas.5} parent=1 // loop_pre_header
      _
    $region3: #{bottleneck_pallas.5} parent=1 // loop_header
      %s14 = sphi 0, %s18
      %p15 = scmp.ge.s32.totalorder %s14, 4
      %s24 = sphi 0, %s26
      %s27 = sphi 0, %s24
      %s28 = sphi 0, %s27
      %s44 = sphi 0, %s28
      %s48 = sphi 0, %s48
      %s50 = sphi 0, %s48
      %s51 = sphi 0, %s50
      %s65 = sphi 0, %s51
      %s69 = sphi 0, %s69
      %s71 = sphi 0, %s69
      %s72 = sphi 0, %s71
      %s86 = sphi 0, %s72
      %s90 = sphi 0, %s90
      %s92 = sphi 0, %s90
      %s93 = sphi 0, %s92
      %s107 = sphi 0, %s93
      %s111 = sphi 0, %s111
      %s113 = sphi 0, %s111
      %s114 = sphi 0, %s113
      %s128 = sphi 0, %s114
      %s134 = sphi 0, %s136
      %s137 = sphi 0, %s134
      %s138 = sphi 0, %s137
      %s154 = sphi 0, %s138
      %s160 = sphi 0, %s162
      %s163 = sphi 0, %s160
      %s164 = sphi 0, %s163
      %s180 = sphi 0, %s164
    $region4: #{bottleneck_pallas.5} parent=1 // loop_header_branch
      %17 = sbr.rel (%p15) target = $region8
    $region5: #{bottleneck_pallas.5} parent=1 // loop_body
      %s19 = ssub.s32 %s14, 1
      %s20 = ssub.s32 %s14, 2
      %s21 = sadd.s32 %s14, 1
      %s22 = ssub.s32 %s14, %s21
      %p23 = scmp.eq.s32.totalorder %s22, 0
      %s25 = sadd.s32 %s24, 1
      %s26 = scalar_select %p23, %s24, %s25
      %p29 = pneg %p23
      %p30 = scmp.eq.s32.totalorder %s14, 1
      %p31 = por %p29, %p30
      %p32 = scmp.ne.s32.totalorder %s24, %s27
      %p33 = scmp.eq.s32.totalorder %s14, 0
      %p34 = por %p32, %p33
      %p35 = scmp.ne.s32.totalorder %s24, %s27
      %p36 = scmp.eq.s32.totalorder %s19, 1
      %p37 = por %p35, %p36
      %p38 = scmp.ne.s32.totalorder %s27, %s28
      %p39 = scmp.eq.s32.totalorder %s19, 0
      %p40 = por %p38, %p39
      %p41 = scmp.ne.s32.totalorder %s27, %s28
      %p42 = scmp.eq.s32.totalorder %s20, 1
      %p43 = por %p41, %p42
      %p45 = scmp.ne.s32.totalorder %s28, %s44
      %p46 = scmp.eq.s32.totalorder %s20, 0
      %p47 = por %p45, %p46
      %s49 = sadd.s32 %s48, 1
      %p52 = scmp.eq.s32.totalorder %s14, 1
      %p53 = scmp.ne.s32.totalorder %s48, %s50
      %p54 = scmp.eq.s32.totalorder %s14, 0
      %p55 = por %p53, %p54
      %p56 = scmp.ne.s32.totalorder %s48, %s50
      %p57 = scmp.eq.s32.totalorder %s19, 1
      %p58 = por %p56, %p57
      %p59 = scmp.ne.s32.totalorder %s50, %s51
      %p60 = scmp.eq.s32.totalorder %s19, 0
      %p61 = por %p59, %p60
      %p62 = scmp.ne.s32.totalorder %s50, %s51
      %p63 = scmp.eq.s32.totalorder %s20, 1
      %p64 = por %p62, %p63
      %p66 = scmp.ne.s32.totalorder %s51, %s65
      %p67 = scmp.eq.s32.totalorder %s20, 0
      %p68 = por %p66, %p67
      %s70 = sadd.s32 %s69, 1
      %p73 = scmp.eq.s32.totalorder %s14, 1
      %p74 = scmp.ne.s32.totalorder %s69, %s71
      %p75 = scmp.eq.s32.totalorder %s14, 0
      %p76 = por %p74, %p75
      %p77 = scmp.ne.s32.totalorder %s69, %s71
      %p78 = scmp.eq.s32.totalorder %s19, 1
      %p79 = por %p77, %p78
      %p80 = scmp.ne.s32.totalorder %s71, %s72
      %p81 = scmp.eq.s32.totalorder %s19, 0
      %p82 = por %p80, %p81
      %p83 = scmp.ne.s32.totalorder %s71, %s72
      %p84 = scmp.eq.s32.totalorder %s20, 1
      %p85 = por %p83, %p84
      %p87 = scmp.ne.s32.totalorder %s72, %s86
      %p88 = scmp.eq.s32.totalorder %s20, 0
      %p89 = por %p87, %p88
      %s91 = sadd.s32 %s90, 1
      %p94 = scmp.eq.s32.totalorder %s14, 1
      %p95 = scmp.ne.s32.totalorder %s90, %s92
      %p96 = scmp.eq.s32.totalorder %s14, 0
      %p97 = por %p95, %p96
      %p98 = scmp.ne.s32.totalorder %s90, %s92
      %p99 = scmp.eq.s32.totalorder %s19, 1
      %p100 = por %p98, %p99
      %p101 = scmp.ne.s32.totalorder %s92, %s93
      %p102 = scmp.eq.s32.totalorder %s19, 0
      %p103 = por %p101, %p102
      %p104 = scmp.ne.s32.totalorder %s92, %s93
      %p105 = scmp.eq.s32.totalorder %s20, 1
      %p106 = por %p104, %p105
      %p108 = scmp.ne.s32.totalorder %s93, %s107
      %p109 = scmp.eq.s32.totalorder %s20, 0
      %p110 = por %p108, %p109
      %s112 = sadd.s32 %s111, 1
      %p115 = scmp.eq.s32.totalorder %s14, 1
      %p116 = scmp.ne.s32.totalorder %s111, %s113
      %p117 = scmp.eq.s32.totalorder %s14, 0
      %p118 = por %p116, %p117
      %p119 = scmp.ne.s32.totalorder %s111, %s113
      %p120 = scmp.eq.s32.totalorder %s19, 1
      %p121 = por %p119, %p120
      %p122 = scmp.ne.s32.totalorder %s113, %s114
      %p123 = scmp.eq.s32.totalorder %s19, 0
      %p124 = por %p122, %p123
      %p125 = scmp.ne.s32.totalorder %s113, %s114
      %p126 = scmp.eq.s32.totalorder %s20, 1
      %p127 = por %p125, %p126
      %p129 = scmp.ne.s32.totalorder %s114, %s128
      %p130 = scmp.eq.s32.totalorder %s20, 0
      %p131 = por %p129, %p130
      %s132 = ssub.s32 %s14, %s21
      %p133 = scmp.eq.s32.totalorder %s132, 0
      %s135 = sadd.s32 %s134, 1
      %s136 = scalar_select %p133, %s134, %s135
      %p139 = pneg %p133
      %p140 = scmp.eq.s32.totalorder %s14, 1
      %p141 = por %p139, %p140
      %p142 = scmp.ne.s32.totalorder %s134, %s137
      %p143 = scmp.eq.s32.totalorder %s14, 0
      %p144 = por %p142, %p143
      %p145 = scmp.ne.s32.totalorder %s134, %s137
      %p146 = scmp.eq.s32.totalorder %s19, 1
      %p147 = por %p145, %p146
      %p148 = scmp.ne.s32.totalorder %s137, %s138
      %p149 = scmp.eq.s32.totalorder %s19, 0
      %p150 = por %p148, %p149
      %p151 = scmp.ne.s32.totalorder %s137, %s138
      %p152 = scmp.eq.s32.totalorder %s20, 1
      %p153 = por %p151, %p152
      %p155 = scmp.ne.s32.totalorder %s138, %s154
      %p156 = scmp.eq.s32.totalorder %s20, 0
      %p157 = por %p155, %p156
      %s158 = ssub.s32 %s14, %s21
      %p159 = scmp.eq.s32.totalorder %s158, 0
      %s161 = sadd.s32 %s160, 1
      %s162 = scalar_select %p159, %s160, %s161
      %p165 = pneg %p159
      %p166 = scmp.eq.s32.totalorder %s14, 1
      %p167 = por %p165, %p166
      %p168 = scmp.ne.s32.totalorder %s160, %s163
      %p169 = scmp.eq.s32.totalorder %s14, 0
      %p170 = por %p168, %p169
      %p171 = scmp.ne.s32.totalorder %s160, %s163
      %p172 = scmp.eq.s32.totalorder %s19, 1
      %p173 = por %p171, %p172
      %p174 = scmp.ne.s32.totalorder %s163, %s164
      %p175 = scmp.eq.s32.totalorder %s19, 0
      %p176 = por %p174, %p175
      %p177 = scmp.ne.s32.totalorder %s163, %s164
      %p178 = scmp.eq.s32.totalorder %s20, 1
      %p179 = por %p177, %p178
      %p181 = scmp.ne.s32.totalorder %s164, %s180
      %p182 = scmp.eq.s32.totalorder %s20, 0
      %p183 = por %p181, %p182
      %p184 = scmp.le.s32.totalorder 1, %s14
      %p185 = scmp.lt.s32.totalorder %s14, 3
      %p186 = pnand %p184, %p185
      %p187 = pneg %p186
      // Predicated region
      $region9: #{bottleneck_pallas.5} parent=5 // pred_check
        _
      $region10: #{bottleneck_pallas.5} parent=5 // pred_check_branch
        %189 = sbr.rel (%p186) target = $region12
      $region11: #{bottleneck_pallas.5} parent=5 // pred_region
        %s190 = ssub.s32 %s14, 1
        // Predicated region
        $region13: #{bottleneck_pallas.5} parent=11 // pred_check
          %p191 = pneg %p61
        $region14: #{bottleneck_pallas.5} parent=11 // pred_check_branch
          %193 = sbr.rel (%p191) target = $region16
        $region15: #{bottleneck_pallas.5} parent=11 // pred_region
          %195 = vsyncadd [#allocation3], 0
          %s196 = sshll.u32 %s1, 4
          %s197 = int_to_ptr.hbm [resolvable:$true] %s196
          %s198 = sshll.u32 [#allocation2], 4
          %s199 = int_to_ptr.vmem [resolvable:$true] %s198
          %204 = dma.hbm_to_vmem [thread:$0]  %s197, 4096, %s199, [#allocation3], 128, 128, 8
        $region16: #{bottleneck_pallas.5} parent=11 // pred_fallthru
          _
        // Predicated region
        $region17: #{bottleneck_pallas.5} parent=11 // pred_check
          %p205 = pneg %p82
        $region18: #{bottleneck_pallas.5} parent=11 // pred_check_branch
          %207 = sbr.rel (%p205) target = $region20
        $region19: #{bottleneck_pallas.5} parent=11 // pred_region
          _
        $region20: #{bottleneck_pallas.5} parent=11 // pred_fallthru
          _
        // Predicated region
        $region21: #{bottleneck_pallas.5} parent=11 // pred_check
          %p208 = pneg %p103
        $region22: #{bottleneck_pallas.5} parent=11 // pred_check_branch
          %210 = sbr.rel (%p208) target = $region24
        $region23: #{bottleneck_pallas.5} parent=11 // pred_region
          _
        $region24: #{bottleneck_pallas.5} parent=11 // pred_fallthru
          _
        // Predicated region
        $region25: #{bottleneck_pallas.5} parent=11 // pred_check
          %p211 = pneg %p124
        $region26: #{bottleneck_pallas.5} parent=11 // pred_check_branch
          %213 = sbr.rel (%p211) target = $region28
        $region27: #{bottleneck_pallas.5} parent=11 // pred_region
          _
        $region28: #{bottleneck_pallas.5} parent=11 // pred_fallthru
          _
      $region12: #{bottleneck_pallas.5} parent=5 // pred_fallthru
        _
      %p214 = scmp.lt.s32.totalorder %s14, 2
      // Predicated region
      $region29: #{bottleneck_pallas.5} parent=5 // pred_check
        %p215 = pneg %p214
      $region30: #{bottleneck_pallas.5} parent=5 // pred_check_branch
        %217 = sbr.rel (%p215) target = $region32
      $region31: #{bottleneck_pallas.5} parent=5 // pred_region
        // Predicated region
        $region33: #{bottleneck_pallas.5} parent=31 // pred_check
          %p218 = pneg %p34
        $region34: #{bottleneck_pallas.5} parent=31 // pred_check_branch
          %220 = sbr.rel (%p218) target = $region36
        $region35: #{bottleneck_pallas.5} parent=31 // pred_region
          %p221 = scmp.lt.s32.totalorder %s14, 1
          %s222 = scalar_select %p221, %s14, 1
          %s223 = smul.addr %s222, 32
          %s224 = smul.addr %s223, 8
          %s225 = scalar_lea.vmem %s0, %s224
        $region36: #{bottleneck_pallas.5} parent=31 // pred_fallthru
          _
      $region32: #{bottleneck_pallas.5} parent=5 // pred_fallthru
        _
      %p226 = scmp.le.s32.totalorder 1, %s14
      %p227 = scmp.lt.s32.totalorder %s14, 3
      %p228 = pnand %p226, %p227
      %p229 = pneg %p228
      // Predicated region
      $region37: #{bottleneck_pallas.5} parent=5 // pred_check
        _
      $region38: #{bottleneck_pallas.5} parent=5 // pred_check_branch
        %231 = sbr.rel (%p228) target = $region40
      $region39: #{bottleneck_pallas.5} parent=5 // pred_region
        %s232 = ssub.s32 %s14, 1
        // Predicated region
        $region41: #{bottleneck_pallas.5} parent=39 // pred_check
          %p233 = pneg %p61
        $region42: #{bottleneck_pallas.5} parent=39 // pred_check_branch
          %235 = sbr.rel (%p233) target = $region44
        $region43: #{bottleneck_pallas.5} parent=39 // pred_region
          %237 = dma.done [#allocation3], 4096
        $region44: #{bottleneck_pallas.5} parent=39 // pred_fallthru
          _
        %p238 = scmp.lt.s32.totalorder %s19, 1
        %s239 = scalar_select %p238, %s19, 1
        %s240 = smul.addr %s239, 32
        %s241 = smul.addr %s240, 8
        %s242 = scalar_lea.vmem %s0, %s241
        %p243 = pneg %p40
        %p244 = pneg %p37
        %p245 = pneg %p61
        %p246 = pneg %p58
        %p247 = pneg %p82
        %p248 = pneg %p79
        %p249 = pneg %p103
        %p250 = pneg %p100
        %p251 = pneg %p124
        %p252 = pneg %p121
        %p253 = pneg %p150
        %p254 = pneg %p147
        %p255 = scmp.lt.s32.totalorder %s19, 1
        %s256 = scalar_select %p255, %s19, 1
        %s257 = smul.addr %s256, 32
        %s258 = smul.addr %s257, 8
        %s259 = scalar_lea.vmem %s5, %s258
        %p260 = pneg %p176
        %p261 = pneg %p173
        %p262 = scmp.lt.s32.totalorder %s19, 1
        %s263 = scalar_select %p262, %s19, 1
        %s264 = smul.addr %s263, 2
        %s265 = scalar_lea.vmem %s6, %s264
        %p266 = scmp.lt.s32.totalorder %s19, 1
        %s267 = scalar_select %p266, %s19, 1
        %s268 = smul.addr %s267, 32
        %s269 = smul.addr %s268, 8
        %s270 = scalar_lea.vmem %s0, %s269
        %p271 = scmp.lt.s32.totalorder %s19, 1
        %s272 = scalar_select %p271, %s19, 1
        %s273 = smul.addr %s272, 32
        %s274 = smul.addr %s273, 8
        %s275 = scalar_lea.vmem %s5, %s274
        %p276 = scmp.lt.s32.totalorder %s19, 1
        %s277 = scalar_select %p276, %s19, 1
        %s278 = smul.addr %s277, 2
        %s279 = scalar_lea.vmem %s6, %s278
        %v281 = vld [vmem:[%s270] sm:$0xff]
        %v282 = vld [vmem:[%s270 + $0x8] sm:$0xff]
        %v283 = vld [vmem:[%s270 + $0x10] sm:$0xff]
        %v284 = vld [vmem:[%s270 + $0x18] sm:$0xff]
        %v285 = vld [vmem:[%s270 + $0x20] sm:$0xff]
        %v286 = vld [vmem:[%s270 + $0x28] sm:$0xff]
        %v287 = vld [vmem:[%s270 + $0x30] sm:$0xff]
        %v288 = vld [vmem:[%s270 + $0x38] sm:$0xff]
        %v289 = vld [vmem:[%s270 + $0x40] sm:$0xff]
        %v290 = vld [vmem:[%s270 + $0x48] sm:$0xff]
        %v291 = vld [vmem:[%s270 + $0x50] sm:$0xff]
        %v292 = vld [vmem:[%s270 + $0x58] sm:$0xff]
        %v293 = vld [vmem:[%s270 + $0x60] sm:$0xff]
        %v294 = vld [vmem:[%s270 + $0x68] sm:$0xff]
        %v295 = vld [vmem:[%s270 + $0x70] sm:$0xff]
        %v296 = vld [vmem:[%s270 + $0x78] sm:$0xff]
        %v297 = vld [vmem:[%s270 + $0x80] sm:$0xff]
        %v298 = vld [vmem:[%s270 + $0x88] sm:$0xff]
        %v299 = vld [vmem:[%s270 + $0x90] sm:$0xff]
        %v300 = vld [vmem:[%s270 + $0x98] sm:$0xff]
        %v301 = vld [vmem:[%s270 + $0xa0] sm:$0xff]
        %v302 = vld [vmem:[%s270 + $0xa8] sm:$0xff]
        %v303 = vld [vmem:[%s270 + $0xb0] sm:$0xff]
        %v304 = vld [vmem:[%s270 + $0xb8] sm:$0xff]
        %v305 = vld [vmem:[%s270 + $0xc0] sm:$0xff]
        %v306 = vld [vmem:[%s270 + $0xc8] sm:$0xff]
        %v307 = vld [vmem:[%s270 + $0xd0] sm:$0xff]
        %v308 = vld [vmem:[%s270 + $0xd8] sm:$0xff]
        %v309 = vld [vmem:[%s270 + $0xe0] sm:$0xff]
        %v310 = vld [vmem:[%s270 + $0xe8] sm:$0xff]
        %v311 = vld [vmem:[%s270 + $0xf0] sm:$0xff]
        %v312 = vld [vmem:[%s270 + $0xf8] sm:$0xff]
        %v313 = vld [vmem:[%s2] sm:$0x1]
        %v315 = vperm.slane %v313, 0
        %v317 = vsub.f32 %v281, %v315
        %v318 = vsub.f32 %v282, %v315
        %v319 = vsub.f32 %v283, %v315
        %v320 = vsub.f32 %v284, %v315
        %v321 = vsub.f32 %v285, %v315
        %v322 = vsub.f32 %v286, %v315
        %v323 = vsub.f32 %v287, %v315
        %v324 = vsub.f32 %v288, %v315
        %v325 = vsub.f32 %v289, %v315
        %v326 = vsub.f32 %v290, %v315
        %v327 = vsub.f32 %v291, %v315
        %v328 = vsub.f32 %v292, %v315
        %v329 = vsub.f32 %v293, %v315
        %v330 = vsub.f32 %v294, %v315
        %v331 = vsub.f32 %v295, %v315
        %v332 = vsub.f32 %v296, %v315
        %v333 = vsub.f32 %v297, %v315
        %v334 = vsub.f32 %v298, %v315
        %v335 = vsub.f32 %v299, %v315
        %v336 = vsub.f32 %v300, %v315
        %v337 = vsub.f32 %v301, %v315
        %v338 = vsub.f32 %v302, %v315
        %v339 = vsub.f32 %v303, %v315
        %v340 = vsub.f32 %v304, %v315
        %v341 = vsub.f32 %v305, %v315
        %v342 = vsub.f32 %v306, %v315
        %v343 = vsub.f32 %v307, %v315
        %v344 = vsub.f32 %v308, %v315
        %v345 = vsub.f32 %v309, %v315
        %v346 = vsub.f32 %v310, %v315
        %v347 = vsub.f32 %v311, %v315
        %v348 = vsub.f32 %v312, %v315
        %v349 = vld [vmem:[%s3] sm:$0x1]
        %v350 = vadd.f32 %v349, 1e-05
        %v351 = vrsqrt.pop %v350
        %v352 = vmul.f32 %v351, %v350
        %v353 = vmul.f32 %v352, %v351
        %v354 = vmul.f32 0.5, %v353
        %v355 = vsub.f32 1.5, %v354
        %v356 = vmul.f32 %v351, %v355
        %vm357 = vweird.f32 %v350
        %vm358 = vweird.f32 %v351
        %vm359 = vmor %vm357, %vm358
        %v360 = vsel %vm359, %v351, %v356
        %v362 = vperm.slane %v360, 0
        %v364 = vmul.f32 %v317, %v362
        %v365 = vmul.f32 %v318, %v362
        %v366 = vmul.f32 %v319, %v362
        %v367 = vmul.f32 %v320, %v362
        %v368 = vmul.f32 %v321, %v362
        %v369 = vmul.f32 %v322, %v362
        %v370 = vmul.f32 %v323, %v362
        %v371 = vmul.f32 %v324, %v362
        %v372 = vmul.f32 %v325, %v362
        %v373 = vmul.f32 %v326, %v362
        %v374 = vmul.f32 %v327, %v362
        %v375 = vmul.f32 %v328, %v362
        %v376 = vmul.f32 %v329, %v362
        %v377 = vmul.f32 %v330, %v362
        %v378 = vmul.f32 %v331, %v362
        %v379 = vmul.f32 %v332, %v362
        %v380 = vmul.f32 %v333, %v362
        %v381 = vmul.f32 %v334, %v362
        %v382 = vmul.f32 %v335, %v362
        %v383 = vmul.f32 %v336, %v362
        %v384 = vmul.f32 %v337, %v362
        %v385 = vmul.f32 %v338, %v362
        %v386 = vmul.f32 %v339, %v362
        %v387 = vmul.f32 %v340, %v362
        %v388 = vmul.f32 %v341, %v362
        %v389 = vmul.f32 %v342, %v362
        %v390 = vmul.f32 %v343, %v362
        %v391 = vmul.f32 %v344, %v362
        %v392 = vmul.f32 %v345, %v362
        %v393 = vmul.f32 %v346, %v362
        %v394 = vmul.f32 %v347, %v362
        %v395 = vmul.f32 %v348, %v362
        %v396 = vmax.f32 %v364, 0.0
        %v397 = vmax.f32 %v365, 0.0
        %v398 = vmax.f32 %v366, 0.0
        %v399 = vmax.f32 %v367, 0.0
        %v400 = vmax.f32 %v368, 0.0
        %v401 = vmax.f32 %v369, 0.0
        %v402 = vmax.f32 %v370, 0.0
        %v403 = vmax.f32 %v371, 0.0
        %v404 = vmax.f32 %v372, 0.0
        %v405 = vmax.f32 %v373, 0.0
        %v406 = vmax.f32 %v374, 0.0
        %v407 = vmax.f32 %v375, 0.0
        %v408 = vmax.f32 %v376, 0.0
        %v409 = vmax.f32 %v377, 0.0
        %v410 = vmax.f32 %v378, 0.0
        %v411 = vmax.f32 %v379, 0.0
        %v412 = vmax.f32 %v380, 0.0
        %v413 = vmax.f32 %v381, 0.0
        %v414 = vmax.f32 %v382, 0.0
        %v415 = vmax.f32 %v383, 0.0
        %v416 = vmax.f32 %v384, 0.0
        %v417 = vmax.f32 %v385, 0.0
        %v418 = vmax.f32 %v386, 0.0
        %v419 = vmax.f32 %v387, 0.0
        %v420 = vmax.f32 %v388, 0.0
        %v421 = vmax.f32 %v389, 0.0
        %v422 = vmax.f32 %v390, 0.0
        %v423 = vmax.f32 %v391, 0.0
        %v424 = vmax.f32 %v392, 0.0
        %v425 = vmax.f32 %v393, 0.0
        %v426 = vmax.f32 %v394, 0.0
        %v427 = vmax.f32 %v395, 0.0
        %v428 = vld [vmem:[#allocation2] sm:$0xff]
        %v429 = vld [vmem:[#allocation2 + $0x8] sm:$0xff]
        %v430 = vld [vmem:[#allocation2 + $0x10] sm:$0xff]
        %v431 = vld [vmem:[#allocation2 + $0x18] sm:$0xff]
        %v432 = vld [vmem:[#allocation2 + $0x20] sm:$0xff]
        %v433 = vld [vmem:[#allocation2 + $0x28] sm:$0xff]
        %v434 = vld [vmem:[#allocation2 + $0x30] sm:$0xff]
        %v435 = vld [vmem:[#allocation2 + $0x38] sm:$0xff]
        %v436 = vld [vmem:[#allocation2 + $0x40] sm:$0xff]
        %v437 = vld [vmem:[#allocation2 + $0x48] sm:$0xff]
        %v438 = vld [vmem:[#allocation2 + $0x50] sm:$0xff]
        %v439 = vld [vmem:[#allocation2 + $0x58] sm:$0xff]
        %v440 = vld [vmem:[#allocation2 + $0x60] sm:$0xff]
        %v441 = vld [vmem:[#allocation2 + $0x68] sm:$0xff]
        %v442 = vld [vmem:[#allocation2 + $0x70] sm:$0xff]
        %v443 = vld [vmem:[#allocation2 + $0x78] sm:$0xff]
        %v444 = vld [vmem:[#allocation2 + $0x80] sm:$0xff]
        %v445 = vld [vmem:[#allocation2 + $0x88] sm:$0xff]
        %v446 = vld [vmem:[#allocation2 + $0x90] sm:$0xff]
        %v447 = vld [vmem:[#allocation2 + $0x98] sm:$0xff]
        %v448 = vld [vmem:[#allocation2 + $0xa0] sm:$0xff]
        %v449 = vld [vmem:[#allocation2 + $0xa8] sm:$0xff]
        %v450 = vld [vmem:[#allocation2 + $0xb0] sm:$0xff]
        %v451 = vld [vmem:[#allocation2 + $0xb8] sm:$0xff]
        %v452 = vld [vmem:[#allocation2 + $0xc0] sm:$0xff]
        %v453 = vld [vmem:[#allocation2 + $0xc8] sm:$0xff]
        %v454 = vld [vmem:[#allocation2 + $0xd0] sm:$0xff]
        %v455 = vld [vmem:[#allocation2 + $0xd8] sm:$0xff]
        %v456 = vld [vmem:[#allocation2 + $0xe0] sm:$0xff]
        %v457 = vld [vmem:[#allocation2 + $0xe8] sm:$0xff]
        %v458 = vld [vmem:[#allocation2 + $0xf0] sm:$0xff]
        %v459 = vld [vmem:[#allocation2 + $0xf8] sm:$0xff]
        %v460 = vrot.slane %v396, 7
        %v461 = vrot.slane %v397, 7
        %v462 = vrot.slane %v398, 7
        %v463 = vrot.slane %v399, 7
        %v464 = vrot.slane %v400, 7
        %v465 = vrot.slane %v401, 7
        %v466 = vrot.slane %v402, 7
        %v467 = vrot.slane %v403, 7
        %v468 = vrot.slane %v404, 7
        %v469 = vrot.slane %v405, 7
        %v470 = vrot.slane %v406, 7
        %v471 = vrot.slane %v407, 7
        %v472 = vrot.slane %v408, 7
        %v473 = vrot.slane %v409, 7
        %v474 = vrot.slane %v410, 7
        %v475 = vrot.slane %v411, 7
        %v476 = vrot.slane %v412, 7
        %v477 = vrot.slane %v413, 7
        %v478 = vrot.slane %v414, 7
        %v479 = vrot.slane %v415, 7
        %v480 = vrot.slane %v416, 7
        %v481 = vrot.slane %v417, 7
        %v482 = vrot.slane %v418, 7
        %v483 = vrot.slane %v419, 7
        %v484 = vrot.slane %v420, 7
        %v485 = vrot.slane %v421, 7
        %v486 = vrot.slane %v422, 7
        %v487 = vrot.slane %v423, 7
        %v488 = vrot.slane %v424, 7
        %v489 = vrot.slane %v425, 7
        %v490 = vrot.slane %v426, 7
        %v491 = vrot.slane %v427, 7
        %v492 = vlaneseq
        %v493 = vshrl.u32 %v492, 7
        %vm494 = vcmp.lt.s32.totalorder %v493, 1
        %v495 = vsel %vm494, %v490, %v491
        %v496 = vsel %vm494, %v489, %v490
        %v497 = vsel %vm494, %v488, %v489
        %v498 = vsel %vm494, %v487, %v488
        %v499 = vsel %vm494, %v486, %v487
        %v500 = vsel %vm494, %v485, %v486
        %v501 = vsel %vm494, %v484, %v485
        %v502 = vsel %vm494, %v483, %v484
        %v503 = vsel %vm494, %v482, %v483
        %v504 = vsel %vm494, %v481, %v482
        %v505 = vsel %vm494, %v480, %v481
        %v506 = vsel %vm494, %v479, %v480
        %v507 = vsel %vm494, %v478, %v479
        %v508 = vsel %vm494, %v477, %v478
        %v509 = vsel %vm494, %v476, %v477
        %v510 = vsel %vm494, %v475, %v476
        %v511 = vsel %vm494, %v474, %v475
        %v512 = vsel %vm494, %v473, %v474
        %v513 = vsel %vm494, %v472, %v473
        %v514 = vsel %vm494, %v471, %v472
        %v515 = vsel %vm494, %v470, %v471
        %v516 = vsel %vm494, %v469, %v470
        %v517 = vsel %vm494, %v468, %v469
        %v518 = vsel %vm494, %v467, %v468
        %v519 = vsel %vm494, %v466, %v467
        %v520 = vsel %vm494, %v465, %v466
        %v521 = vsel %vm494, %v464, %v465
        %v522 = vsel %vm494, %v463, %v464
        %v523 = vsel %vm494, %v462, %v463
        %v524 = vsel %vm494, %v461, %v462
        %v525 = vsel %vm494, %v460, %v461
        %v526 = vsel %vm494, %v491, %v460
        %528 = vset.pattern.permute.xlu0 0
        %529 = vperm.xlu0 %528, %v428
        %v530 = vpop.permute.xlu0 %529
        %533 = vset.pattern.permute.xlu0 0
        %534 = vperm.xlu0 %533, %v429
        %v535 = vpop.permute.xlu0 %534
        %538 = vset.pattern.permute.xlu0 0
        %539 = vperm.xlu0 %538, %v430
        %v540 = vpop.permute.xlu0 %539
        %543 = vset.pattern.permute.xlu0 0
        %544 = vperm.xlu0 %543, %v431
        %v545 = vpop.permute.xlu0 %544
        %548 = vset.pattern.permute.xlu0 0
        %549 = vperm.xlu0 %548, %v432
        %v550 = vpop.permute.xlu0 %549
        %553 = vset.pattern.permute.xlu0 0
        %554 = vperm.xlu0 %553, %v433
        %v555 = vpop.permute.xlu0 %554
        %558 = vset.pattern.permute.xlu0 0
        %559 = vperm.xlu0 %558, %v434
        %v560 = vpop.permute.xlu0 %559
        %563 = vset.pattern.permute.xlu0 0
        %564 = vperm.xlu0 %563, %v435
        %v565 = vpop.permute.xlu0 %564
        %568 = vset.pattern.permute.xlu0 0
        %569 = vperm.xlu0 %568, %v436
        %v570 = vpop.permute.xlu0 %569
        %573 = vset.pattern.permute.xlu0 0
        %574 = vperm.xlu0 %573, %v437
        %v575 = vpop.permute.xlu0 %574
        %578 = vset.pattern.permute.xlu0 0
        %579 = vperm.xlu0 %578, %v438
        %v580 = vpop.permute.xlu0 %579
        %583 = vset.pattern.permute.xlu0 0
        %584 = vperm.xlu0 %583, %v439
        %v585 = vpop.permute.xlu0 %584
        %588 = vset.pattern.permute.xlu0 0
        %589 = vperm.xlu0 %588, %v440
        %v590 = vpop.permute.xlu0 %589
        %593 = vset.pattern.permute.xlu0 0
        %594 = vperm.xlu0 %593, %v441
        %v595 = vpop.permute.xlu0 %594
        %598 = vset.pattern.permute.xlu0 0
        %599 = vperm.xlu0 %598, %v442
        %v600 = vpop.permute.xlu0 %599
        %603 = vset.pattern.permute.xlu0 0
        %604 = vperm.xlu0 %603, %v443
        %v605 = vpop.permute.xlu0 %604
        %608 = vset.pattern.permute.xlu0 0
        %609 = vperm.xlu0 %608, %v444
        %v610 = vpop.permute.xlu0 %609
        %613 = vset.pattern.permute.xlu0 0
        %614 = vperm.xlu0 %613, %v445
        %v615 = vpop.permute.xlu0 %614
        %618 = vset.pattern.permute.xlu0 0
        %619 = vperm.xlu0 %618, %v446
        %v620 = vpop.permute.xlu0 %619
        %623 = vset.pattern.permute.xlu0 0
        %624 = vperm.xlu0 %623, %v447
        %v625 = vpop.permute.xlu0 %624
        %628 = vset.pattern.permute.xlu0 0
        %629 = vperm.xlu0 %628, %v448
        %v630 = vpop.permute.xlu0 %629
        %633 = vset.pattern.permute.xlu0 0
        %634 = vperm.xlu0 %633, %v449
        %v635 = vpop.permute.xlu0 %634
        %638 = vset.pattern.permute.xlu0 0
        %639 = vperm.xlu0 %638, %v450
        %v640 = vpop.permute.xlu0 %639
        %643 = vset.pattern.permute.xlu0 0
        %644 = vperm.xlu0 %643, %v451
        %v645 = vpop.permute.xlu0 %644
        %648 = vset.pattern.permute.xlu0 0
        %649 = vperm.xlu0 %648, %v452
        %v650 = vpop.permute.xlu0 %649
        %653 = vset.pattern.permute.xlu0 0
        %654 = vperm.xlu0 %653, %v453
        %v655 = vpop.permute.xlu0 %654
        %658 = vset.pattern.permute.xlu0 0
        %659 = vperm.xlu0 %658, %v454
        %v660 = vpop.permute.xlu0 %659
        %663 = vset.pattern.permute.xlu0 0
        %664 = vperm.xlu0 %663, %v455
        %v665 = vpop.permute.xlu0 %664
        %668 = vset.pattern.permute.xlu0 0
        %669 = vperm.xlu0 %668, %v456
        %v670 = vpop.permute.xlu0 %669
        %673 = vset.pattern.permute.xlu0 0
        %674 = vperm.xlu0 %673, %v457
        %v675 = vpop.permute.xlu0 %674
        %678 = vset.pattern.permute.xlu0 0
        %679 = vperm.xlu0 %678, %v458
        %v680 = vpop.permute.xlu0 %679
        %683 = vset.pattern.permute.xlu0 0
        %684 = vperm.xlu0 %683, %v459
        %v685 = vpop.permute.xlu0 %684
        %v687 = vmul.f32 %v496, %v530
        %v688 = vmul.f32 %v495, %v535
        %v689 = vmul.f32 %v526, %v540
        %v690 = vmul.f32 %v525, %v545
        %v691 = vmul.f32 %v524, %v550
        %v692 = vmul.f32 %v523, %v555
        %v693 = vmul.f32 %v522, %v560
        %v694 = vmul.f32 %v521, %v565
        %v695 = vmul.f32 %v520, %v570
        %v696 = vmul.f32 %v519, %v575
        %v697 = vmul.f32 %v518, %v580
        %v698 = vmul.f32 %v517, %v585
        %v699 = vmul.f32 %v516, %v590
        %v700 = vmul.f32 %v515, %v595
        %v701 = vmul.f32 %v514, %v600
        %v702 = vmul.f32 %v513, %v605
        %v703 = vmul.f32 %v512, %v610
        %v704 = vmul.f32 %v511, %v615
        %v705 = vmul.f32 %v510, %v620
        %v706 = vmul.f32 %v509, %v625
        %v707 = vmul.f32 %v508, %v630
        %v708 = vmul.f32 %v507, %v635
        %v709 = vmul.f32 %v506, %v640
        %v710 = vmul.f32 %v505, %v645
        %v711 = vmul.f32 %v504, %v650
        %v712 = vmul.f32 %v503, %v655
        %v713 = vmul.f32 %v502, %v660
        %v714 = vmul.f32 %v501, %v665
        %v715 = vmul.f32 %v500, %v670
        %v716 = vmul.f32 %v499, %v675
        %v717 = vmul.f32 %v498, %v680
        %v718 = vmul.f32 %v497, %v685
        %v719 = vpack.c.bf16 %v687, %v687
        %v720 = vpack.c.bf16 %v688, %v688
        %v721 = vpack.c.bf16 %v689, %v689
        %v722 = vpack.c.bf16 %v690, %v690
        %v723 = vpack.c.bf16 %v691, %v691
        %v724 = vpack.c.bf16 %v692, %v692
        %v725 = vpack.c.bf16 %v693, %v693
        %v726 = vpack.c.bf16 %v694, %v694
        %v727 = vpack.c.bf16 %v695, %v695
        %v728 = vpack.c.bf16 %v696, %v696
        %v729 = vpack.c.bf16 %v697, %v697
        %v730 = vpack.c.bf16 %v698, %v698
        %v731 = vpack.c.bf16 %v699, %v699
        %v732 = vpack.c.bf16 %v700, %v700
        %v733 = vpack.c.bf16 %v701, %v701
        %v734 = vpack.c.bf16 %v702, %v702
        %v735 = vpack.c.bf16 %v703, %v703
        %v736 = vpack.c.bf16 %v704, %v704
        %v737 = vpack.c.bf16 %v705, %v705
        %v738 = vpack.c.bf16 %v706, %v706
        %v739 = vpack.c.bf16 %v707, %v707
        %v740 = vpack.c.bf16 %v708, %v708
        %v741 = vpack.c.bf16 %v709, %v709
        %v742 = vpack.c.bf16 %v710, %v710
        %v743 = vpack.c.bf16 %v711, %v711
        %v744 = vpack.c.bf16 %v712, %v712
        %v745 = vpack.c.bf16 %v713, %v713
        %v746 = vpack.c.bf16 %v714, %v714
        %v747 = vpack.c.bf16 %v715, %v715
        %v748 = vpack.c.bf16 %v716, %v716
        %v749 = vpack.c.bf16 %v717, %v717
        %v750 = vpack.c.bf16 %v718, %v718
        %751 = vset.pattern.permute.xlu0 1
        %752 = vperm.xlu0 %751, %v428
        %v753 = vpop.permute.xlu0 %752
        %755 = vset.pattern.permute.xlu0 1
        %756 = vperm.xlu0 %755, %v429
        %v757 = vpop.permute.xlu0 %756
        %759 = vset.pattern.permute.xlu0 1
        %760 = vperm.xlu0 %759, %v430
        %v761 = vpop.permute.xlu0 %760
        %763 = vset.pattern.permute.xlu0 1
        %764 = vperm.xlu0 %763, %v431
        %v765 = vpop.permute.xlu0 %764
        %767 = vset.pattern.permute.xlu0 1
        %768 = vperm.xlu0 %767, %v432
        %v769 = vpop.permute.xlu0 %768
        %771 = vset.pattern.permute.xlu0 1
        %772 = vperm.xlu0 %771, %v433
        %v773 = vpop.permute.xlu0 %772
        %775 = vset.pattern.permute.xlu0 1
        %776 = vperm.xlu0 %775, %v434
        %v777 = vpop.permute.xlu0 %776
        %779 = vset.pattern.permute.xlu0 1
        %780 = vperm.xlu0 %779, %v435
        %v781 = vpop.permute.xlu0 %780
        %783 = vset.pattern.permute.xlu0 1
        %784 = vperm.xlu0 %783, %v436
        %v785 = vpop.permute.xlu0 %784
        %787 = vset.pattern.permute.xlu0 1
        %788 = vperm.xlu0 %787, %v437
        %v789 = vpop.permute.xlu0 %788
        %791 = vset.pattern.permute.xlu0 1
        %792 = vperm.xlu0 %791, %v438
        %v793 = vpop.permute.xlu0 %792
        %795 = vset.pattern.permute.xlu0 1
        %796 = vperm.xlu0 %795, %v439
        %v797 = vpop.permute.xlu0 %796
        %799 = vset.pattern.permute.xlu0 1
        %800 = vperm.xlu0 %799, %v440
        %v801 = vpop.permute.xlu0 %800
        %803 = vset.pattern.permute.xlu0 1
        %804 = vperm.xlu0 %803, %v441
        %v805 = vpop.permute.xlu0 %804
        %807 = vset.pattern.permute.xlu0 1
        %808 = vperm.xlu0 %807, %v442
        %v809 = vpop.permute.xlu0 %808
        %811 = vset.pattern.permute.xlu0 1
        %812 = vperm.xlu0 %811, %v443
        %v813 = vpop.permute.xlu0 %812
        %815 = vset.pattern.permute.xlu0 1
        %816 = vperm.xlu0 %815, %v444
        %v817 = vpop.permute.xlu0 %816
        %819 = vset.pattern.permute.xlu0 1
        %820 = vperm.xlu0 %819, %v445
        %v821 = vpop.permute.xlu0 %820
        %823 = vset.pattern.permute.xlu0 1
        %824 = vperm.xlu0 %823, %v446
        %v825 = vpop.permute.xlu0 %824
        %827 = vset.pattern.permute.xlu0 1
        %828 = vperm.xlu0 %827, %v447
        %v829 = vpop.permute.xlu0 %828
        %831 = vset.pattern.permute.xlu0 1
        %832 = vperm.xlu0 %831, %v448
        %v833 = vpop.permute.xlu0 %832
        %835 = vset.pattern.permute.xlu0 1
        %836 = vperm.xlu0 %835, %v449
        %v837 = vpop.permute.xlu0 %836
        %839 = vset.pattern.permute.xlu0 1
        %840 = vperm.xlu0 %839, %v450
        %v841 = vpop.permute.xlu0 %840
        %843 = vset.pattern.permute.xlu0 1
        %844 = vperm.xlu0 %843, %v451
        %v845 = vpop.permute.xlu0 %844
        %847 = vset.pattern.permute.xlu0 1
        %848 = vperm.xlu0 %847, %v452
        %v849 = vpop.permute.xlu0 %848
        %851 = vset.pattern.permute.xlu0 1
        %852 = vperm.xlu0 %851, %v453
        %v853 = vpop.permute.xlu0 %852
        %855 = vset.pattern.permute.xlu0 1
        %856 = vperm.xlu0 %855, %v454
        %v857 = vpop.permute.xlu0 %856
        %859 = vset.pattern.permute.xlu0 1
        %860 = vperm.xlu0 %859, %v455
        %v861 = vpop.permute.xlu0 %860
        %863 = vset.pattern.permute.xlu0 1
        %864 = vperm.xlu0 %863, %v456
        %v865 = vpop.permute.xlu0 %864
        %867 = vset.pattern.permute.xlu0 1
        %868 = vperm.xlu0 %867, %v457
        %v869 = vpop.permute.xlu0 %868
        %871 = vset.pattern.permute.xlu0 1
        %872 = vperm.xlu0 %871, %v458
        %v873 = vpop.permute.xlu0 %872
        %875 = vset.pattern.permute.xlu0 1
        %876 = vperm.xlu0 %875, %v459
        %v877 = vpop.permute.xlu0 %876
        %v879 = vmul.f32 %v426, %v753
        %v880 = vmul.f32 %v427, %v757
        %v881 = vmul.f32 %v396, %v761
        %v882 = vmul.f32 %v397, %v765
        %v883 = vmul.f32 %v398, %v769
        %v884 = vmul.f32 %v399, %v773
        %v885 = vmul.f32 %v400, %v777
        %v886 = vmul.f32 %v401, %v781
        %v887 = vmul.f32 %v402, %v785
        %v888 = vmul.f32 %v403, %v789
        %v889 = vmul.f32 %v404, %v793
        %v890 = vmul.f32 %v405, %v797
        %v891 = vmul.f32 %v406, %v801
        %v892 = vmul.f32 %v407, %v805
        %v893 = vmul.f32 %v408, %v809
        %v894 = vmul.f32 %v409, %v813
        %v895 = vmul.f32 %v410, %v817
        %v896 = vmul.f32 %v411, %v821
        %v897 = vmul.f32 %v412, %v825
        %v898 = vmul.f32 %v413, %v829
        %v899 = vmul.f32 %v414, %v833
        %v900 = vmul.f32 %v415, %v837
        %v901 = vmul.f32 %v416, %v841
        %v902 = vmul.f32 %v417, %v845
        %v903 = vmul.f32 %v418, %v849
        %v904 = vmul.f32 %v419, %v853
        %v905 = vmul.f32 %v420, %v857
        %v906 = vmul.f32 %v421, %v861
        %v907 = vmul.f32 %v422, %v865
        %v908 = vmul.f32 %v423, %v869
        %v909 = vmul.f32 %v424, %v873
        %v910 = vmul.f32 %v425, %v877
        %v911 = vpack.c.bf16 %v879, %v879
        %v912 = vpack.c.bf16 %v880, %v880
        %v913 = vpack.c.bf16 %v881, %v881
        %v914 = vpack.c.bf16 %v882, %v882
        %v915 = vpack.c.bf16 %v883, %v883
        %v916 = vpack.c.bf16 %v884, %v884
        %v917 = vpack.c.bf16 %v885, %v885
        %v918 = vpack.c.bf16 %v886, %v886
        %v919 = vpack.c.bf16 %v887, %v887
        %v920 = vpack.c.bf16 %v888, %v888
        %v921 = vpack.c.bf16 %v889, %v889
        %v922 = vpack.c.bf16 %v890, %v890
        %v923 = vpack.c.bf16 %v891, %v891
        %v924 = vpack.c.bf16 %v892, %v892
        %v925 = vpack.c.bf16 %v893, %v893
        %v926 = vpack.c.bf16 %v894, %v894
        %v927 = vpack.c.bf16 %v895, %v895
        %v928 = vpack.c.bf16 %v896, %v896
        %v929 = vpack.c.bf16 %v897, %v897
        %v930 = vpack.c.bf16 %v898, %v898
        %v931 = vpack.c.bf16 %v899, %v899
        %v932 = vpack.c.bf16 %v900, %v900
        %v933 = vpack.c.bf16 %v901, %v901
        %v934 = vpack.c.bf16 %v902, %v902
        %v935 = vpack.c.bf16 %v903, %v903
        %v936 = vpack.c.bf16 %v904, %v904
        %v937 = vpack.c.bf16 %v905, %v905
        %v938 = vpack.c.bf16 %v906, %v906
        %v939 = vpack.c.bf16 %v907, %v907
        %v940 = vpack.c.bf16 %v908, %v908
        %v941 = vpack.c.bf16 %v909, %v909
        %v942 = vpack.c.bf16 %v910, %v910
        %v943 = vrot.slane %v396, 1
        %v944 = vrot.slane %v397, 1
        %v945 = vrot.slane %v398, 1
        %v946 = vrot.slane %v399, 1
        %v947 = vrot.slane %v400, 1
        %v948 = vrot.slane %v401, 1
        %v949 = vrot.slane %v402, 1
        %v950 = vrot.slane %v403, 1
        %v951 = vrot.slane %v404, 1
        %v952 = vrot.slane %v405, 1
        %v953 = vrot.slane %v406, 1
        %v954 = vrot.slane %v407, 1
        %v955 = vrot.slane %v408, 1
        %v956 = vrot.slane %v409, 1
        %v957 = vrot.slane %v410, 1
        %v958 = vrot.slane %v411, 1
        %v959 = vrot.slane %v412, 1
        %v960 = vrot.slane %v413, 1
        %v961 = vrot.slane %v414, 1
        %v962 = vrot.slane %v415, 1
        %v963 = vrot.slane %v416, 1
        %v964 = vrot.slane %v417, 1
        %v965 = vrot.slane %v418, 1
        %v966 = vrot.slane %v419, 1
        %v967 = vrot.slane %v420, 1
        %v968 = vrot.slane %v421, 1
        %v969 = vrot.slane %v422, 1
        %v970 = vrot.slane %v423, 1
        %v971 = vrot.slane %v424, 1
        %v972 = vrot.slane %v425, 1
        %v973 = vrot.slane %v426, 1
        %v974 = vrot.slane %v427, 1
        %vm975 = vcmp.lt.s32.totalorder %v493, 7
        %v976 = vsel %vm975, %v973, %v974
        %v977 = vsel %vm975, %v972, %v973
        %v978 = vsel %vm975, %v971, %v972
        %v979 = vsel %vm975, %v970, %v971
        %v980 = vsel %vm975, %v969, %v970
        %v981 = vsel %vm975, %v968, %v969
        %v982 = vsel %vm975, %v967, %v968
        %v983 = vsel %vm975, %v966, %v967
        %v984 = vsel %vm975, %v965, %v966
        %v985 = vsel %vm975, %v964, %v965
        %v986 = vsel %vm975, %v963, %v964
        %v987 = vsel %vm975, %v962, %v963
        %v988 = vsel %vm975, %v961, %v962
        %v989 = vsel %vm975, %v960, %v961
        %v990 = vsel %vm975, %v959, %v960
        %v991 = vsel %vm975, %v958, %v959
        %v992 = vsel %vm975, %v957, %v958
        %v993 = vsel %vm975, %v956, %v957
        %v994 = vsel %vm975, %v955, %v956
        %v995 = vsel %vm975, %v954, %v955
        %v996 = vsel %vm975, %v953, %v954
        %v997 = vsel %vm975, %v952, %v953
        %v998 = vsel %vm975, %v951, %v952
        %v999 = vsel %vm975, %v950, %v951
        %v1000 = vsel %vm975, %v949, %v950
        %v1001 = vsel %vm975, %v948, %v949
        %v1002 = vsel %vm975, %v947, %v948
        %v1003 = vsel %vm975, %v946, %v947
        %v1004 = vsel %vm975, %v945, %v946
        %v1005 = vsel %vm975, %v944, %v945
        %v1006 = vsel %vm975, %v943, %v944
        %v1007 = vsel %vm975, %v974, %v943
        %1008 = vset.pattern.permute.xlu0 2
        %1009 = vperm.xlu0 %1008, %v428
        %v1010 = vpop.permute.xlu0 %1009
        %1012 = vset.pattern.permute.xlu0 2
        %1013 = vperm.xlu0 %1012, %v429
        %v1014 = vpop.permute.xlu0 %1013
        %1016 = vset.pattern.permute.xlu0 2
        %1017 = vperm.xlu0 %1016, %v430
        %v1018 = vpop.permute.xlu0 %1017
        %1020 = vset.pattern.permute.xlu0 2
        %1021 = vperm.xlu0 %1020, %v431
        %v1022 = vpop.permute.xlu0 %1021
        %1024 = vset.pattern.permute.xlu0 2
        %1025 = vperm.xlu0 %1024, %v432
        %v1026 = vpop.permute.xlu0 %1025
        %1028 = vset.pattern.permute.xlu0 2
        %1029 = vperm.xlu0 %1028, %v433
        %v1030 = vpop.permute.xlu0 %1029
        %1032 = vset.pattern.permute.xlu0 2
        %1033 = vperm.xlu0 %1032, %v434
        %v1034 = vpop.permute.xlu0 %1033
        %1036 = vset.pattern.permute.xlu0 2
        %1037 = vperm.xlu0 %1036, %v435
        %v1038 = vpop.permute.xlu0 %1037
        %1040 = vset.pattern.permute.xlu0 2
        %1041 = vperm.xlu0 %1040, %v436
        %v1042 = vpop.permute.xlu0 %1041
        %1044 = vset.pattern.permute.xlu0 2
        %1045 = vperm.xlu0 %1044, %v437
        %v1046 = vpop.permute.xlu0 %1045
        %1048 = vset.pattern.permute.xlu0 2
        %1049 = vperm.xlu0 %1048, %v438
        %v1050 = vpop.permute.xlu0 %1049
        %1052 = vset.pattern.permute.xlu0 2
        %1053 = vperm.xlu0 %1052, %v439
        %v1054 = vpop.permute.xlu0 %1053
        %1056 = vset.pattern.permute.xlu0 2
        %1057 = vperm.xlu0 %1056, %v440
        %v1058 = vpop.permute.xlu0 %1057
        %1060 = vset.pattern.permute.xlu0 2
        %1061 = vperm.xlu0 %1060, %v441
        %v1062 = vpop.permute.xlu0 %1061
        %1064 = vset.pattern.permute.xlu0 2
        %1065 = vperm.xlu0 %1064, %v442
        %v1066 = vpop.permute.xlu0 %1065
        %1068 = vset.pattern.permute.xlu0 2
        %1069 = vperm.xlu0 %1068, %v443
        %v1070 = vpop.permute.xlu0 %1069
        %1072 = vset.pattern.permute.xlu0 2
        %1073 = vperm.xlu0 %1072, %v444
        %v1074 = vpop.permute.xlu0 %1073
        %1076 = vset.pattern.permute.xlu0 2
        %1077 = vperm.xlu0 %1076, %v445
        %v1078 = vpop.permute.xlu0 %1077
        %1080 = vset.pattern.permute.xlu0 2
        %1081 = vperm.xlu0 %1080, %v446
        %v1082 = vpop.permute.xlu0 %1081
        %1084 = vset.pattern.permute.xlu0 2
        %1085 = vperm.xlu0 %1084, %v447
        %v1086 = vpop.permute.xlu0 %1085
        %1088 = vset.pattern.permute.xlu0 2
        %1089 = vperm.xlu0 %1088, %v448
        %v1090 = vpop.permute.xlu0 %1089
        %1092 = vset.pattern.permute.xlu0 2
        %1093 = vperm.xlu0 %1092, %v449
        %v1094 = vpop.permute.xlu0 %1093
        %1096 = vset.pattern.permute.xlu0 2
        %1097 = vperm.xlu0 %1096, %v450
        %v1098 = vpop.permute.xlu0 %1097
        %1100 = vset.pattern.permute.xlu0 2
        %1101 = vperm.xlu0 %1100, %v451
        %v1102 = vpop.permute.xlu0 %1101
        %1104 = vset.pattern.permute.xlu0 2
        %1105 = vperm.xlu0 %1104, %v452
        %v1106 = vpop.permute.xlu0 %1105
        %1108 = vset.pattern.permute.xlu0 2
        %1109 = vperm.xlu0 %1108, %v453
        %v1110 = vpop.permute.xlu0 %1109
        %1112 = vset.pattern.permute.xlu0 2
        %1113 = vperm.xlu0 %1112, %v454
        %v1114 = vpop.permute.xlu0 %1113
        %1116 = vset.pattern.permute.xlu0 2
        %1117 = vperm.xlu0 %1116, %v455
        %v1118 = vpop.permute.xlu0 %1117
        %1120 = vset.pattern.permute.xlu0 2
        %1121 = vperm.xlu0 %1120, %v456
        %v1122 = vpop.permute.xlu0 %1121
        %1124 = vset.pattern.permute.xlu0 2
        %1125 = vperm.xlu0 %1124, %v457
        %v1126 = vpop.permute.xlu0 %1125
        %1128 = vset.pattern.permute.xlu0 2
        %1129 = vperm.xlu0 %1128, %v458
        %v1130 = vpop.permute.xlu0 %1129
        %1132 = vset.pattern.permute.xlu0 2
        %1133 = vperm.xlu0 %1132, %v459
        %v1134 = vpop.permute.xlu0 %1133
        %v1136 = vmul.f32 %v976, %v1010
        %v1137 = vmul.f32 %v1007, %v1014
        %v1138 = vmul.f32 %v1006, %v1018
        %v1139 = vmul.f32 %v1005, %v1022
        %v1140 = vmul.f32 %v1004, %v1026
        %v1141 = vmul.f32 %v1003, %v1030
        %v1142 = vmul.f32 %v1002, %v1034
        %v1143 = vmul.f32 %v1001, %v1038
        %v1144 = vmul.f32 %v1000, %v1042
        %v1145 = vmul.f32 %v999, %v1046
        %v1146 = vmul.f32 %v998, %v1050
        %v1147 = vmul.f32 %v997, %v1054
        %v1148 = vmul.f32 %v996, %v1058
        %v1149 = vmul.f32 %v995, %v1062
        %v1150 = vmul.f32 %v994, %v1066
        %v1151 = vmul.f32 %v993, %v1070
        %v1152 = vmul.f32 %v992, %v1074
        %v1153 = vmul.f32 %v991, %v1078
        %v1154 = vmul.f32 %v990, %v1082
        %v1155 = vmul.f32 %v989, %v1086
        %v1156 = vmul.f32 %v988, %v1090
        %v1157 = vmul.f32 %v987, %v1094
        %v1158 = vmul.f32 %v986, %v1098
        %v1159 = vmul.f32 %v985, %v1102
        %v1160 = vmul.f32 %v984, %v1106
        %v1161 = vmul.f32 %v983, %v1110
        %v1162 = vmul.f32 %v982, %v1114
        %v1163 = vmul.f32 %v981, %v1118
        %v1164 = vmul.f32 %v980, %v1122
        %v1165 = vmul.f32 %v979, %v1126
        %v1166 = vmul.f32 %v978, %v1130
        %v1167 = vmul.f32 %v977, %v1134
        %v1168 = vpack.c.bf16 %v1136, %v1136
        %v1169 = vpack.c.bf16 %v1137, %v1137
        %v1170 = vpack.c.bf16 %v1138, %v1138
        %v1171 = vpack.c.bf16 %v1139, %v1139
        %v1172 = vpack.c.bf16 %v1140, %v1140
        %v1173 = vpack.c.bf16 %v1141, %v1141
        %v1174 = vpack.c.bf16 %v1142, %v1142
        %v1175 = vpack.c.bf16 %v1143, %v1143
        %v1176 = vpack.c.bf16 %v1144, %v1144
        %v1177 = vpack.c.bf16 %v1145, %v1145
        %v1178 = vpack.c.bf16 %v1146, %v1146
        %v1179 = vpack.c.bf16 %v1147, %v1147
        %v1180 = vpack.c.bf16 %v1148, %v1148
        %v1181 = vpack.c.bf16 %v1149, %v1149
        %v1182 = vpack.c.bf16 %v1150, %v1150
        %v1183 = vpack.c.bf16 %v1151, %v1151
        %v1184 = vpack.c.bf16 %v1152, %v1152
        %v1185 = vpack.c.bf16 %v1153, %v1153
        %v1186 = vpack.c.bf16 %v1154, %v1154
        %v1187 = vpack.c.bf16 %v1155, %v1155
        %v1188 = vpack.c.bf16 %v1156, %v1156
        %v1189 = vpack.c.bf16 %v1157, %v1157
        %v1190 = vpack.c.bf16 %v1158, %v1158
        %v1191 = vpack.c.bf16 %v1159, %v1159
        %v1192 = vpack.c.bf16 %v1160, %v1160
        %v1193 = vpack.c.bf16 %v1161, %v1161
        %v1194 = vpack.c.bf16 %v1162, %v1162
        %v1195 = vpack.c.bf16 %v1163, %v1163
        %v1196 = vpack.c.bf16 %v1164, %v1164
        %v1197 = vpack.c.bf16 %v1165, %v1165
        %v1198 = vpack.c.bf16 %v1166, %v1166
        %v1199 = vpack.c.bf16 %v1167, %v1167
        %1200 = vset.pattern.permute.xlu0 3
        %1201 = vperm.xlu0 %1200, %v428
        %v1202 = vpop.permute.xlu0 %1201
        %1204 = vset.pattern.permute.xlu0 3
        %1205 = vperm.xlu0 %1204, %v429
        %v1206 = vpop.permute.xlu0 %1205
        %1208 = vset.pattern.permute.xlu0 3
        %1209 = vperm.xlu0 %1208, %v430
        %v1210 = vpop.permute.xlu0 %1209
        %1212 = vset.pattern.permute.xlu0 3
        %1213 = vperm.xlu0 %1212, %v431
        %v1214 = vpop.permute.xlu0 %1213
        %1216 = vset.pattern.permute.xlu0 3
        %1217 = vperm.xlu0 %1216, %v432
        %v1218 = vpop.permute.xlu0 %1217
        %1220 = vset.pattern.permute.xlu0 3
        %1221 = vperm.xlu0 %1220, %v433
        %v1222 = vpop.permute.xlu0 %1221
        %1224 = vset.pattern.permute.xlu0 3
        %1225 = vperm.xlu0 %1224, %v434
        %v1226 = vpop.permute.xlu0 %1225
        %1228 = vset.pattern.permute.xlu0 3
        %1229 = vperm.xlu0 %1228, %v435
        %v1230 = vpop.permute.xlu0 %1229
        %1232 = vset.pattern.permute.xlu0 3
        %1233 = vperm.xlu0 %1232, %v436
        %v1234 = vpop.permute.xlu0 %1233
        %1236 = vset.pattern.permute.xlu0 3
        %1237 = vperm.xlu0 %1236, %v437
        %v1238 = vpop.permute.xlu0 %1237
        %1240 = vset.pattern.permute.xlu0 3
        %1241 = vperm.xlu0 %1240, %v438
        %v1242 = vpop.permute.xlu0 %1241
        %1244 = vset.pattern.permute.xlu0 3
        %1245 = vperm.xlu0 %1244, %v439
        %v1246 = vpop.permute.xlu0 %1245
        %1248 = vset.pattern.permute.xlu0 3
        %1249 = vperm.xlu0 %1248, %v440
        %v1250 = vpop.permute.xlu0 %1249
        %1252 = vset.pattern.permute.xlu0 3
        %1253 = vperm.xlu0 %1252, %v441
        %v1254 = vpop.permute.xlu0 %1253
        %1256 = vset.pattern.permute.xlu0 3
        %1257 = vperm.xlu0 %1256, %v442
        %v1258 = vpop.permute.xlu0 %1257
        %1260 = vset.pattern.permute.xlu0 3
        %1261 = vperm.xlu0 %1260, %v443
        %v1262 = vpop.permute.xlu0 %1261
        %1264 = vset.pattern.permute.xlu0 3
        %1265 = vperm.xlu0 %1264, %v444
        %v1266 = vpop.permute.xlu0 %1265
        %1268 = vset.pattern.permute.xlu0 3
        %1269 = vperm.xlu0 %1268, %v445
        %v1270 = vpop.permute.xlu0 %1269
        %1272 = vset.pattern.permute.xlu0 3
        %1273 = vperm.xlu0 %1272, %v446
        %v1274 = vpop.permute.xlu0 %1273
        %1276 = vset.pattern.permute.xlu0 3
        %1277 = vperm.xlu0 %1276, %v447
        %v1278 = vpop.permute.xlu0 %1277
        %1280 = vset.pattern.permute.xlu0 3
        %1281 = vperm.xlu0 %1280, %v448
        %v1282 = vpop.permute.xlu0 %1281
        %1284 = vset.pattern.permute.xlu0 3
        %1285 = vperm.xlu0 %1284, %v449
        %v1286 = vpop.permute.xlu0 %1285
        %1288 = vset.pattern.permute.xlu0 3
        %1289 = vperm.xlu0 %1288, %v450
        %v1290 = vpop.permute.xlu0 %1289
        %1292 = vset.pattern.permute.xlu0 3
        %1293 = vperm.xlu0 %1292, %v451
        %v1294 = vpop.permute.xlu0 %1293
        %1296 = vset.pattern.permute.xlu0 3
        %1297 = vperm.xlu0 %1296, %v452
        %v1298 = vpop.permute.xlu0 %1297
        %1300 = vset.pattern.permute.xlu0 3
        %1301 = vperm.xlu0 %1300, %v453
        %v1302 = vpop.permute.xlu0 %1301
        %1304 = vset.pattern.permute.xlu0 3
        %1305 = vperm.xlu0 %1304, %v454
        %v1306 = vpop.permute.xlu0 %1305
        %1308 = vset.pattern.permute.xlu0 3
        %1309 = vperm.xlu0 %1308, %v455
        %v1310 = vpop.permute.xlu0 %1309
        %1312 = vset.pattern.permute.xlu0 3
        %1313 = vperm.xlu0 %1312, %v456
        %v1314 = vpop.permute.xlu0 %1313
        %1316 = vset.pattern.permute.xlu0 3
        %1317 = vperm.xlu0 %1316, %v457
        %v1318 = vpop.permute.xlu0 %1317
        %1320 = vset.pattern.permute.xlu0 3
        %1321 = vperm.xlu0 %1320, %v458
        %v1322 = vpop.permute.xlu0 %1321
        %1324 = vset.pattern.permute.xlu0 3
        %1325 = vperm.xlu0 %1324, %v459
        %v1326 = vpop.permute.xlu0 %1325
        %v1328 = vmul.f32 %v526, %v1202
        %v1329 = vmul.f32 %v525, %v1206
        %v1330 = vmul.f32 %v524, %v1210
        %v1331 = vmul.f32 %v523, %v1214
        %v1332 = vmul.f32 %v522, %v1218
        %v1333 = vmul.f32 %v521, %v1222
        %v1334 = vmul.f32 %v520, %v1226
        %v1335 = vmul.f32 %v519, %v1230
        %v1336 = vmul.f32 %v518, %v1234
        %v1337 = vmul.f32 %v517, %v1238
        %v1338 = vmul.f32 %v516, %v1242
        %v1339 = vmul.f32 %v515, %v1246
        %v1340 = vmul.f32 %v514, %v1250
        %v1341 = vmul.f32 %v513, %v1254
        %v1342 = vmul.f32 %v512, %v1258
        %v1343 = vmul.f32 %v511, %v1262
        %v1344 = vmul.f32 %v510, %v1266
        %v1345 = vmul.f32 %v509, %v1270
        %v1346 = vmul.f32 %v508, %v1274
        %v1347 = vmul.f32 %v507, %v1278
        %v1348 = vmul.f32 %v506, %v1282
        %v1349 = vmul.f32 %v505, %v1286
        %v1350 = vmul.f32 %v504, %v1290
        %v1351 = vmul.f32 %v503, %v1294
        %v1352 = vmul.f32 %v502, %v1298
        %v1353 = vmul.f32 %v501, %v1302
        %v1354 = vmul.f32 %v500, %v1306
        %v1355 = vmul.f32 %v499, %v1310
        %v1356 = vmul.f32 %v498, %v1314
        %v1357 = vmul.f32 %v497, %v1318
        %v1358 = vmul.f32 %v496, %v1322
        %v1359 = vmul.f32 %v495, %v1326
        %v1360 = vpack.c.bf16 %v1328, %v1328
        %v1361 = vpack.c.bf16 %v1329, %v1329
        %v1362 = vpack.c.bf16 %v1330, %v1330
        %v1363 = vpack.c.bf16 %v1331, %v1331
        %v1364 = vpack.c.bf16 %v1332, %v1332
        %v1365 = vpack.c.bf16 %v1333, %v1333
        %v1366 = vpack.c.bf16 %v1334, %v1334
        %v1367 = vpack.c.bf16 %v1335, %v1335
        %v1368 = vpack.c.bf16 %v1336, %v1336
        %v1369 = vpack.c.bf16 %v1337, %v1337
        %v1370 = vpack.c.bf16 %v1338, %v1338
        %v1371 = vpack.c.bf16 %v1339, %v1339
        %v1372 = vpack.c.bf16 %v1340, %v1340
        %v1373 = vpack.c.bf16 %v1341, %v1341
        %v1374 = vpack.c.bf16 %v1342, %v1342
        %v1375 = vpack.c.bf16 %v1343, %v1343
        %v1376 = vpack.c.bf16 %v1344, %v1344
        %v1377 = vpack.c.bf16 %v1345, %v1345
        %v1378 = vpack.c.bf16 %v1346, %v1346
        %v1379 = vpack.c.bf16 %v1347, %v1347
        %v1380 = vpack.c.bf16 %v1348, %v1348
        %v1381 = vpack.c.bf16 %v1349, %v1349
        %v1382 = vpack.c.bf16 %v1350, %v1350
        %v1383 = vpack.c.bf16 %v1351, %v1351
        %v1384 = vpack.c.bf16 %v1352, %v1352
        %v1385 = vpack.c.bf16 %v1353, %v1353
        %v1386 = vpack.c.bf16 %v1354, %v1354
        %v1387 = vpack.c.bf16 %v1355, %v1355
        %v1388 = vpack.c.bf16 %v1356, %v1356
        %v1389 = vpack.c.bf16 %v1357, %v1357
        %v1390 = vpack.c.bf16 %v1358, %v1358
        %v1391 = vpack.c.bf16 %v1359, %v1359
        %v1392 = vpack.c.bf16 %v396, %v396
        %v1393 = vpack.c.bf16 %v397, %v397
        %v1394 = vpack.c.bf16 %v398, %v398
        %v1395 = vpack.c.bf16 %v399, %v399
        %v1396 = vpack.c.bf16 %v400, %v400
        %v1397 = vpack.c.bf16 %v401, %v401
        %v1398 = vpack.c.bf16 %v402, %v402
        %v1399 = vpack.c.bf16 %v403, %v403
        %v1400 = vpack.c.bf16 %v404, %v404
        %v1401 = vpack.c.bf16 %v405, %v405
        %v1402 = vpack.c.bf16 %v406, %v406
        %v1403 = vpack.c.bf16 %v407, %v407
        %v1404 = vpack.c.bf16 %v408, %v408
        %v1405 = vpack.c.bf16 %v409, %v409
        %v1406 = vpack.c.bf16 %v410, %v410
        %v1407 = vpack.c.bf16 %v411, %v411
        %v1408 = vpack.c.bf16 %v412, %v412
        %v1409 = vpack.c.bf16 %v413, %v413
        %v1410 = vpack.c.bf16 %v414, %v414
        %v1411 = vpack.c.bf16 %v415, %v415
        %v1412 = vpack.c.bf16 %v416, %v416
        %v1413 = vpack.c.bf16 %v417, %v417
        %v1414 = vpack.c.bf16 %v418, %v418
        %v1415 = vpack.c.bf16 %v419, %v419
        %v1416 = vpack.c.bf16 %v420, %v420
        %v1417 = vpack.c.bf16 %v421, %v421
        %v1418 = vpack.c.bf16 %v422, %v422
        %v1419 = vpack.c.bf16 %v423, %v423
        %v1420 = vpack.c.bf16 %v424, %v424
        %v1421 = vpack.c.bf16 %v425, %v425
        %v1422 = vpack.c.bf16 %v426, %v426
        %v1423 = vpack.c.bf16 %v427, %v427
        %1424 = vset.pattern.permute.xlu0 5
        %1425 = vperm.xlu0 %1424, %v428
        %v1426 = vpop.permute.xlu0 %1425
        %1428 = vset.pattern.permute.xlu0 5
        %1429 = vperm.xlu0 %1428, %v429
        %v1430 = vpop.permute.xlu0 %1429
        %1432 = vset.pattern.permute.xlu0 5
        %1433 = vperm.xlu0 %1432, %v430
        %v1434 = vpop.permute.xlu0 %1433
        %1436 = vset.pattern.permute.xlu0 5
        %1437 = vperm.xlu0 %1436, %v431
        %v1438 = vpop.permute.xlu0 %1437
        %1440 = vset.pattern.permute.xlu0 5
        %1441 = vperm.xlu0 %1440, %v432
        %v1442 = vpop.permute.xlu0 %1441
        %1444 = vset.pattern.permute.xlu0 5
        %1445 = vperm.xlu0 %1444, %v433
        %v1446 = vpop.permute.xlu0 %1445
        %1448 = vset.pattern.permute.xlu0 5
        %1449 = vperm.xlu0 %1448, %v434
        %v1450 = vpop.permute.xlu0 %1449
        %1452 = vset.pattern.permute.xlu0 5
        %1453 = vperm.xlu0 %1452, %v435
        %v1454 = vpop.permute.xlu0 %1453
        %1456 = vset.pattern.permute.xlu0 5
        %1457 = vperm.xlu0 %1456, %v436
        %v1458 = vpop.permute.xlu0 %1457
        %1460 = vset.pattern.permute.xlu0 5
        %1461 = vperm.xlu0 %1460, %v437
        %v1462 = vpop.permute.xlu0 %1461
        %1464 = vset.pattern.permute.xlu0 5
        %1465 = vperm.xlu0 %1464, %v438
        %v1466 = vpop.permute.xlu0 %1465
        %1468 = vset.pattern.permute.xlu0 5
        %1469 = vperm.xlu0 %1468, %v439
        %v1470 = vpop.permute.xlu0 %1469
        %1472 = vset.pattern.permute.xlu0 5
        %1473 = vperm.xlu0 %1472, %v440
        %v1474 = vpop.permute.xlu0 %1473
        %1476 = vset.pattern.permute.xlu0 5
        %1477 = vperm.xlu0 %1476, %v441
        %v1478 = vpop.permute.xlu0 %1477
        %1480 = vset.pattern.permute.xlu0 5
        %1481 = vperm.xlu0 %1480, %v442
        %v1482 = vpop.permute.xlu0 %1481
        %1484 = vset.pattern.permute.xlu0 5
        %1485 = vperm.xlu0 %1484, %v443
        %v1486 = vpop.permute.xlu0 %1485
        %1488 = vset.pattern.permute.xlu0 5
        %1489 = vperm.xlu0 %1488, %v444
        %v1490 = vpop.permute.xlu0 %1489
        %1492 = vset.pattern.permute.xlu0 5
        %1493 = vperm.xlu0 %1492, %v445
        %v1494 = vpop.permute.xlu0 %1493
        %1496 = vset.pattern.permute.xlu0 5
        %1497 = vperm.xlu0 %1496, %v446
        %v1498 = vpop.permute.xlu0 %1497
        %1500 = vset.pattern.permute.xlu0 5
        %1501 = vperm.xlu0 %1500, %v447
        %v1502 = vpop.permute.xlu0 %1501
        %1504 = vset.pattern.permute.xlu0 5
        %1505 = vperm.xlu0 %1504, %v448
        %v1506 = vpop.permute.xlu0 %1505
        %1508 = vset.pattern.permute.xlu0 5
        %1509 = vperm.xlu0 %1508, %v449
        %v1510 = vpop.permute.xlu0 %1509
        %1512 = vset.pattern.permute.xlu0 5
        %1513 = vperm.xlu0 %1512, %v450
        %v1514 = vpop.permute.xlu0 %1513
        %1516 = vset.pattern.permute.xlu0 5
        %1517 = vperm.xlu0 %1516, %v451
        %v1518 = vpop.permute.xlu0 %1517
        %1520 = vset.pattern.permute.xlu0 5
        %1521 = vperm.xlu0 %1520, %v452
        %v1522 = vpop.permute.xlu0 %1521
        %1524 = vset.pattern.permute.xlu0 5
        %1525 = vperm.xlu0 %1524, %v453
        %v1526 = vpop.permute.xlu0 %1525
        %1528 = vset.pattern.permute.xlu0 5
        %1529 = vperm.xlu0 %1528, %v454
        %v1530 = vpop.permute.xlu0 %1529
        %1532 = vset.pattern.permute.xlu0 5
        %1533 = vperm.xlu0 %1532, %v455
        %v1534 = vpop.permute.xlu0 %1533
        %1536 = vset.pattern.permute.xlu0 5
        %1537 = vperm.xlu0 %1536, %v456
        %v1538 = vpop.permute.xlu0 %1537
        %1540 = vset.pattern.permute.xlu0 5
        %1541 = vperm.xlu0 %1540, %v457
        %v1542 = vpop.permute.xlu0 %1541
        %1544 = vset.pattern.permute.xlu0 5
        %1545 = vperm.xlu0 %1544, %v458
        %v1546 = vpop.permute.xlu0 %1545
        %1548 = vset.pattern.permute.xlu0 5
        %1549 = vperm.xlu0 %1548, %v459
        %v1550 = vpop.permute.xlu0 %1549
        %v1552 = vmul.f32 %v1006, %v1426
        %v1553 = vmul.f32 %v1005, %v1430
        %v1554 = vmul.f32 %v1004, %v1434
        %v1555 = vmul.f32 %v1003, %v1438
        %v1556 = vmul.f32 %v1002, %v1442
        %v1557 = vmul.f32 %v1001, %v1446
        %v1558 = vmul.f32 %v1000, %v1450
        %v1559 = vmul.f32 %v999, %v1454
        %v1560 = vmul.f32 %v998, %v1458
        %v1561 = vmul.f32 %v997, %v1462
        %v1562 = vmul.f32 %v996, %v1466
        %v1563 = vmul.f32 %v995, %v1470
        %v1564 = vmul.f32 %v994, %v1474
        %v1565 = vmul.f32 %v993, %v1478
        %v1566 = vmul.f32 %v992, %v1482
        %v1567 = vmul.f32 %v991, %v1486
        %v1568 = vmul.f32 %v990, %v1490
        %v1569 = vmul.f32 %v989, %v1494
        %v1570 = vmul.f32 %v988, %v1498
        %v1571 = vmul.f32 %v987, %v1502
        %v1572 = vmul.f32 %v986, %v1506
        %v1573 = vmul.f32 %v985, %v1510
        %v1574 = vmul.f32 %v984, %v1514
        %v1575 = vmul.f32 %v983, %v1518
        %v1576 = vmul.f32 %v982, %v1522
        %v1577 = vmul.f32 %v981, %v1526
        %v1578 = vmul.f32 %v980, %v1530
        %v1579 = vmul.f32 %v979, %v1534
        %v1580 = vmul.f32 %v978, %v1538
        %v1581 = vmul.f32 %v977, %v1542
        %v1582 = vmul.f32 %v976, %v1546
        %v1583 = vmul.f32 %v1007, %v1550
        %v1584 = vpack.c.bf16 %v1552, %v1552
        %v1585 = vpack.c.bf16 %v1553, %v1553
        %v1586 = vpack.c.bf16 %v1554, %v1554
        %v1587 = vpack.c.bf16 %v1555, %v1555
        %v1588 = vpack.c.bf16 %v1556, %v1556
        %v1589 = vpack.c.bf16 %v1557, %v1557
        %v1590 = vpack.c.bf16 %v1558, %v1558
        %v1591 = vpack.c.bf16 %v1559, %v1559
        %v1592 = vpack.c.bf16 %v1560, %v1560
        %v1593 = vpack.c.bf16 %v1561, %v1561
        %v1594 = vpack.c.bf16 %v1562, %v1562
        %v1595 = vpack.c.bf16 %v1563, %v1563
        %v1596 = vpack.c.bf16 %v1564, %v1564
        %v1597 = vpack.c.bf16 %v1565, %v1565
        %v1598 = vpack.c.bf16 %v1566, %v1566
        %v1599 = vpack.c.bf16 %v1567, %v1567
        %v1600 = vpack.c.bf16 %v1568, %v1568
        %v1601 = vpack.c.bf16 %v1569, %v1569
        %v1602 = vpack.c.bf16 %v1570, %v1570
        %v1603 = vpack.c.bf16 %v1571, %v1571
        %v1604 = vpack.c.bf16 %v1572, %v1572
        %v1605 = vpack.c.bf16 %v1573, %v1573
        %v1606 = vpack.c.bf16 %v1574, %v1574
        %v1607 = vpack.c.bf16 %v1575, %v1575
        %v1608 = vpack.c.bf16 %v1576, %v1576
        %v1609 = vpack.c.bf16 %v1577, %v1577
        %v1610 = vpack.c.bf16 %v1578, %v1578
        %v1611 = vpack.c.bf16 %v1579, %v1579
        %v1612 = vpack.c.bf16 %v1580, %v1580
        %v1613 = vpack.c.bf16 %v1581, %v1581
        %v1614 = vpack.c.bf16 %v1582, %v1582
        %v1615 = vpack.c.bf16 %v1583, %v1583
        %1616 = vset.pattern.permute.xlu0 6
        %1617 = vperm.xlu0 %1616, %v428
        %v1618 = vpop.permute.xlu0 %1617
        %1620 = vset.pattern.permute.xlu0 6
        %1621 = vperm.xlu0 %1620, %v429
        %v1622 = vpop.permute.xlu0 %1621
        %1624 = vset.pattern.permute.xlu0 6
        %1625 = vperm.xlu0 %1624, %v430
        %v1626 = vpop.permute.xlu0 %1625
        %1628 = vset.pattern.permute.xlu0 6
        %1629 = vperm.xlu0 %1628, %v431
        %v1630 = vpop.permute.xlu0 %1629
        %1632 = vset.pattern.permute.xlu0 6
        %1633 = vperm.xlu0 %1632, %v432
        %v1634 = vpop.permute.xlu0 %1633
        %1636 = vset.pattern.permute.xlu0 6
        %1637 = vperm.xlu0 %1636, %v433
        %v1638 = vpop.permute.xlu0 %1637
        %1640 = vset.pattern.permute.xlu0 6
        %1641 = vperm.xlu0 %1640, %v434
        %v1642 = vpop.permute.xlu0 %1641
        %1644 = vset.pattern.permute.xlu0 6
        %1645 = vperm.xlu0 %1644, %v435
        %v1646 = vpop.permute.xlu0 %1645
        %1648 = vset.pattern.permute.xlu0 6
        %1649 = vperm.xlu0 %1648, %v436
        %v1650 = vpop.permute.xlu0 %1649
        %1652 = vset.pattern.permute.xlu0 6
        %1653 = vperm.xlu0 %1652, %v437
        %v1654 = vpop.permute.xlu0 %1653
        %1656 = vset.pattern.permute.xlu0 6
        %1657 = vperm.xlu0 %1656, %v438
        %v1658 = vpop.permute.xlu0 %1657
        %1660 = vset.pattern.permute.xlu0 6
        %1661 = vperm.xlu0 %1660, %v439
        %v1662 = vpop.permute.xlu0 %1661
        %1664 = vset.pattern.permute.xlu0 6
        %1665 = vperm.xlu0 %1664, %v440
        %v1666 = vpop.permute.xlu0 %1665
        %1668 = vset.pattern.permute.xlu0 6
        %1669 = vperm.xlu0 %1668, %v441
        %v1670 = vpop.permute.xlu0 %1669
        %1672 = vset.pattern.permute.xlu0 6
        %1673 = vperm.xlu0 %1672, %v442
        %v1674 = vpop.permute.xlu0 %1673
        %1676 = vset.pattern.permute.xlu0 6
        %1677 = vperm.xlu0 %1676, %v443
        %v1678 = vpop.permute.xlu0 %1677
        %1680 = vset.pattern.permute.xlu0 6
        %1681 = vperm.xlu0 %1680, %v444
        %v1682 = vpop.permute.xlu0 %1681
        %1684 = vset.pattern.permute.xlu0 6
        %1685 = vperm.xlu0 %1684, %v445
        %v1686 = vpop.permute.xlu0 %1685
        %1688 = vset.pattern.permute.xlu0 6
        %1689 = vperm.xlu0 %1688, %v446
        %v1690 = vpop.permute.xlu0 %1689
        %1692 = vset.pattern.permute.xlu0 6
        %1693 = vperm.xlu0 %1692, %v447
        %v1694 = vpop.permute.xlu0 %1693
        %1696 = vset.pattern.permute.xlu0 6
        %1697 = vperm.xlu0 %1696, %v448
        %v1698 = vpop.permute.xlu0 %1697
        %1700 = vset.pattern.permute.xlu0 6
        %1701 = vperm.xlu0 %1700, %v449
        %v1702 = vpop.permute.xlu0 %1701
        %1704 = vset.pattern.permute.xlu0 6
        %1705 = vperm.xlu0 %1704, %v450
        %v1706 = vpop.permute.xlu0 %1705
        %1708 = vset.pattern.permute.xlu0 6
        %1709 = vperm.xlu0 %1708, %v451
        %v1710 = vpop.permute.xlu0 %1709
        %1712 = vset.pattern.permute.xlu0 6
        %1713 = vperm.xlu0 %1712, %v452
        %v1714 = vpop.permute.xlu0 %1713
        %1716 = vset.pattern.permute.xlu0 6
        %1717 = vperm.xlu0 %1716, %v453
        %v1718 = vpop.permute.xlu0 %1717
        %1720 = vset.pattern.permute.xlu0 6
        %1721 = vperm.xlu0 %1720, %v454
        %v1722 = vpop.permute.xlu0 %1721
        %1724 = vset.pattern.permute.xlu0 6
        %1725 = vperm.xlu0 %1724, %v455
        %v1726 = vpop.permute.xlu0 %1725
        %1728 = vset.pattern.permute.xlu0 6
        %1729 = vperm.xlu0 %1728, %v456
        %v1730 = vpop.permute.xlu0 %1729
        %1732 = vset.pattern.permute.xlu0 6
        %1733 = vperm.xlu0 %1732, %v457
        %v1734 = vpop.permute.xlu0 %1733
        %1736 = vset.pattern.permute.xlu0 6
        %1737 = vperm.xlu0 %1736, %v458
        %v1738 = vpop.permute.xlu0 %1737
        %1740 = vset.pattern.permute.xlu0 6
        %1741 = vperm.xlu0 %1740, %v459
        %v1742 = vpop.permute.xlu0 %1741
        %v1744 = vmul.f32 %v524, %v1618
        %v1745 = vmul.f32 %v523, %v1622
        %v1746 = vmul.f32 %v522, %v1626
        %v1747 = vmul.f32 %v521, %v1630
        %v1748 = vmul.f32 %v520, %v1634
        %v1749 = vmul.f32 %v519, %v1638
        %v1750 = vmul.f32 %v518, %v1642
        %v1751 = vmul.f32 %v517, %v1646
        %v1752 = vmul.f32 %v516, %v1650
        %v1753 = vmul.f32 %v515, %v1654
        %v1754 = vmul.f32 %v514, %v1658
        %v1755 = vmul.f32 %v513, %v1662
        %v1756 = vmul.f32 %v512, %v1666
        %v1757 = vmul.f32 %v511, %v1670
        %v1758 = vmul.f32 %v510, %v1674
        %v1759 = vmul.f32 %v509, %v1678
        %v1760 = vmul.f32 %v508, %v1682
        %v1761 = vmul.f32 %v507, %v1686
        %v1762 = vmul.f32 %v506, %v1690
        %v1763 = vmul.f32 %v505, %v1694
        %v1764 = vmul.f32 %v504, %v1698
        %v1765 = vmul.f32 %v503, %v1702
        %v1766 = vmul.f32 %v502, %v1706
        %v1767 = vmul.f32 %v501, %v1710
        %v1768 = vmul.f32 %v500, %v1714
        %v1769 = vmul.f32 %v499, %v1718
        %v1770 = vmul.f32 %v498, %v1722
        %v1771 = vmul.f32 %v497, %v1726
        %v1772 = vmul.f32 %v496, %v1730
        %v1773 = vmul.f32 %v495, %v1734
        %v1774 = vmul.f32 %v526, %v1738
        %v1775 = vmul.f32 %v525, %v1742
        %v1776 = vpack.c.bf16 %v1744, %v1744
        %v1777 = vpack.c.bf16 %v1745, %v1745
        %v1778 = vpack.c.bf16 %v1746, %v1746
        %v1779 = vpack.c.bf16 %v1747, %v1747
        %v1780 = vpack.c.bf16 %v1748, %v1748
        %v1781 = vpack.c.bf16 %v1749, %v1749
        %v1782 = vpack.c.bf16 %v1750, %v1750
        %v1783 = vpack.c.bf16 %v1751, %v1751
        %v1784 = vpack.c.bf16 %v1752, %v1752
        %v1785 = vpack.c.bf16 %v1753, %v1753
        %v1786 = vpack.c.bf16 %v1754, %v1754
        %v1787 = vpack.c.bf16 %v1755, %v1755
        %v1788 = vpack.c.bf16 %v1756, %v1756
        %v1789 = vpack.c.bf16 %v1757, %v1757
        %v1790 = vpack.c.bf16 %v1758, %v1758
        %v1791 = vpack.c.bf16 %v1759, %v1759
        %v1792 = vpack.c.bf16 %v1760, %v1760
        %v1793 = vpack.c.bf16 %v1761, %v1761
        %v1794 = vpack.c.bf16 %v1762, %v1762
        %v1795 = vpack.c.bf16 %v1763, %v1763
        %v1796 = vpack.c.bf16 %v1764, %v1764
        %v1797 = vpack.c.bf16 %v1765, %v1765
        %v1798 = vpack.c.bf16 %v1766, %v1766
        %v1799 = vpack.c.bf16 %v1767, %v1767
        %v1800 = vpack.c.bf16 %v1768, %v1768
        %v1801 = vpack.c.bf16 %v1769, %v1769
        %v1802 = vpack.c.bf16 %v1770, %v1770
        %v1803 = vpack.c.bf16 %v1771, %v1771
        %v1804 = vpack.c.bf16 %v1772, %v1772
        %v1805 = vpack.c.bf16 %v1773, %v1773
        %v1806 = vpack.c.bf16 %v1774, %v1774
        %v1807 = vpack.c.bf16 %v1775, %v1775
        %1808 = vset.pattern.permute.xlu0 7
        %1809 = vperm.xlu0 %1808, %v428
        %v1810 = vpop.permute.xlu0 %1809
        %1812 = vset.pattern.permute.xlu0 7
        %1813 = vperm.xlu0 %1812, %v429
        %v1814 = vpop.permute.xlu0 %1813
        %1816 = vset.pattern.permute.xlu0 7
        %1817 = vperm.xlu0 %1816, %v430
        %v1818 = vpop.permute.xlu0 %1817
        %1820 = vset.pattern.permute.xlu0 7
        %1821 = vperm.xlu0 %1820, %v431
        %v1822 = vpop.permute.xlu0 %1821
        %1824 = vset.pattern.permute.xlu0 7
        %1825 = vperm.xlu0 %1824, %v432
        %v1826 = vpop.permute.xlu0 %1825
        %1828 = vset.pattern.permute.xlu0 7
        %1829 = vperm.xlu0 %1828, %v433
        %v1830 = vpop.permute.xlu0 %1829
        %1832 = vset.pattern.permute.xlu0 7
        %1833 = vperm.xlu0 %1832, %v434
        %v1834 = vpop.permute.xlu0 %1833
        %1836 = vset.pattern.permute.xlu0 7
        %1837 = vperm.xlu0 %1836, %v435
        %v1838 = vpop.permute.xlu0 %1837
        %1840 = vset.pattern.permute.xlu0 7
        %1841 = vperm.xlu0 %1840, %v436
        %v1842 = vpop.permute.xlu0 %1841
        %1844 = vset.pattern.permute.xlu0 7
        %1845 = vperm.xlu0 %1844, %v437
        %v1846 = vpop.permute.xlu0 %1845
        %1848 = vset.pattern.permute.xlu0 7
        %1849 = vperm.xlu0 %1848, %v438
        %v1850 = vpop.permute.xlu0 %1849
        %1852 = vset.pattern.permute.xlu0 7
        %1853 = vperm.xlu0 %1852, %v439
        %v1854 = vpop.permute.xlu0 %1853
        %1856 = vset.pattern.permute.xlu0 7
        %1857 = vperm.xlu0 %1856, %v440
        %v1858 = vpop.permute.xlu0 %1857
        %1860 = vset.pattern.permute.xlu0 7
        %1861 = vperm.xlu0 %1860, %v441
        %v1862 = vpop.permute.xlu0 %1861
        %1864 = vset.pattern.permute.xlu0 7
        %1865 = vperm.xlu0 %1864, %v442
        %v1866 = vpop.permute.xlu0 %1865
        %1868 = vset.pattern.permute.xlu0 7
        %1869 = vperm.xlu0 %1868, %v443
        %v1870 = vpop.permute.xlu0 %1869
        %1872 = vset.pattern.permute.xlu0 7
        %1873 = vperm.xlu0 %1872, %v444
        %v1874 = vpop.permute.xlu0 %1873
        %1876 = vset.pattern.permute.xlu0 7
        %1877 = vperm.xlu0 %1876, %v445
        %v1878 = vpop.permute.xlu0 %1877
        %1880 = vset.pattern.permute.xlu0 7
        %1881 = vperm.xlu0 %1880, %v446
        %v1882 = vpop.permute.xlu0 %1881
        %1884 = vset.pattern.permute.xlu0 7
        %1885 = vperm.xlu0 %1884, %v447
        %v1886 = vpop.permute.xlu0 %1885
        %1888 = vset.pattern.permute.xlu0 7
        %1889 = vperm.xlu0 %1888, %v448
        %v1890 = vpop.permute.xlu0 %1889
        %1892 = vset.pattern.permute.xlu0 7
        %1893 = vperm.xlu0 %1892, %v449
        %v1894 = vpop.permute.xlu0 %1893
        %1896 = vset.pattern.permute.xlu0 7
        %1897 = vperm.xlu0 %1896, %v450
        %v1898 = vpop.permute.xlu0 %1897
        %1900 = vset.pattern.permute.xlu0 7
        %1901 = vperm.xlu0 %1900, %v451
        %v1902 = vpop.permute.xlu0 %1901
        %1904 = vset.pattern.permute.xlu0 7
        %1905 = vperm.xlu0 %1904, %v452
        %v1906 = vpop.permute.xlu0 %1905
        %1908 = vset.pattern.permute.xlu0 7
        %1909 = vperm.xlu0 %1908, %v453
        %v1910 = vpop.permute.xlu0 %1909
        %1912 = vset.pattern.permute.xlu0 7
        %1913 = vperm.xlu0 %1912, %v454
        %v1914 = vpop.permute.xlu0 %1913
        %1916 = vset.pattern.permute.xlu0 7
        %1917 = vperm.xlu0 %1916, %v455
        %v1918 = vpop.permute.xlu0 %1917
        %1920 = vset.pattern.permute.xlu0 7
        %1921 = vperm.xlu0 %1920, %v456
        %v1922 = vpop.permute.xlu0 %1921
        %1924 = vset.pattern.permute.xlu0 7
        %1925 = vperm.xlu0 %1924, %v457
        %v1926 = vpop.permute.xlu0 %1925
        %1928 = vset.pattern.permute.xlu0 7
        %1929 = vperm.xlu0 %1928, %v458
        %v1930 = vpop.permute.xlu0 %1929
        %1932 = vset.pattern.permute.xlu0 7
        %1933 = vperm.xlu0 %1932, %v459
        %v1934 = vpop.permute.xlu0 %1933
        %v1936 = vmul.f32 %v398, %v1810
        %v1937 = vmul.f32 %v399, %v1814
        %v1938 = vmul.f32 %v400, %v1818
        %v1939 = vmul.f32 %v401, %v1822
        %v1940 = vmul.f32 %v402, %v1826
        %v1941 = vmul.f32 %v403, %v1830
        %v1942 = vmul.f32 %v404, %v1834
        %v1943 = vmul.f32 %v405, %v1838
        %v1944 = vmul.f32 %v406, %v1842
        %v1945 = vmul.f32 %v407, %v1846
        %v1946 = vmul.f32 %v408, %v1850
        %v1947 = vmul.f32 %v409, %v1854
        %v1948 = vmul.f32 %v410, %v1858
        %v1949 = vmul.f32 %v411, %v1862
        %v1950 = vmul.f32 %v412, %v1866
        %v1951 = vmul.f32 %v413, %v1870
        %v1952 = vmul.f32 %v414, %v1874
        %v1953 = vmul.f32 %v415, %v1878
        %v1954 = vmul.f32 %v416, %v1882
        %v1955 = vmul.f32 %v417, %v1886
        %v1956 = vmul.f32 %v418, %v1890
        %v1957 = vmul.f32 %v419, %v1894
        %v1958 = vmul.f32 %v420, %v1898
        %v1959 = vmul.f32 %v421, %v1902
        %v1960 = vmul.f32 %v422, %v1906
        %v1961 = vmul.f32 %v423, %v1910
        %v1962 = vmul.f32 %v424, %v1914
        %v1963 = vmul.f32 %v425, %v1918
        %v1964 = vmul.f32 %v426, %v1922
        %v1965 = vmul.f32 %v427, %v1926
        %v1966 = vmul.f32 %v396, %v1930
        %v1967 = vmul.f32 %v397, %v1934
        %v1968 = vpack.c.bf16 %v1936, %v1936
        %v1969 = vpack.c.bf16 %v1937, %v1937
        %v1970 = vpack.c.bf16 %v1938, %v1938
        %v1971 = vpack.c.bf16 %v1939, %v1939
        %v1972 = vpack.c.bf16 %v1940, %v1940
        %v1973 = vpack.c.bf16 %v1941, %v1941
        %v1974 = vpack.c.bf16 %v1942, %v1942
        %v1975 = vpack.c.bf16 %v1943, %v1943
        %v1976 = vpack.c.bf16 %v1944, %v1944
        %v1977 = vpack.c.bf16 %v1945, %v1945
        %v1978 = vpack.c.bf16 %v1946, %v1946
        %v1979 = vpack.c.bf16 %v1947, %v1947
        %v1980 = vpack.c.bf16 %v1948, %v1948
        %v1981 = vpack.c.bf16 %v1949, %v1949
        %v1982 = vpack.c.bf16 %v1950, %v1950
        %v1983 = vpack.c.bf16 %v1951, %v1951
        %v1984 = vpack.c.bf16 %v1952, %v1952
        %v1985 = vpack.c.bf16 %v1953, %v1953
        %v1986 = vpack.c.bf16 %v1954, %v1954
        %v1987 = vpack.c.bf16 %v1955, %v1955
        %v1988 = vpack.c.bf16 %v1956, %v1956
        %v1989 = vpack.c.bf16 %v1957, %v1957
        %v1990 = vpack.c.bf16 %v1958, %v1958
        %v1991 = vpack.c.bf16 %v1959, %v1959
        %v1992 = vpack.c.bf16 %v1960, %v1960
        %v1993 = vpack.c.bf16 %v1961, %v1961
        %v1994 = vpack.c.bf16 %v1962, %v1962
        %v1995 = vpack.c.bf16 %v1963, %v1963
        %v1996 = vpack.c.bf16 %v1964, %v1964
        %v1997 = vpack.c.bf16 %v1965, %v1965
        %v1998 = vpack.c.bf16 %v1966, %v1966
        %v1999 = vpack.c.bf16 %v1967, %v1967
        %2000 = vset.pattern.permute.xlu0 8
        %2001 = vperm.xlu0 %2000, %v428
        %v2002 = vpop.permute.xlu0 %2001
        %2004 = vset.pattern.permute.xlu0 8
        %2005 = vperm.xlu0 %2004, %v429
        %v2006 = vpop.permute.xlu0 %2005
        %2008 = vset.pattern.permute.xlu0 8
        %2009 = vperm.xlu0 %2008, %v430
        %v2010 = vpop.permute.xlu0 %2009
        %2012 = vset.pattern.permute.xlu0 8
        %2013 = vperm.xlu0 %2012, %v431
        %v2014 = vpop.permute.xlu0 %2013
        %2016 = vset.pattern.permute.xlu0 8
        %2017 = vperm.xlu0 %2016, %v432
        %v2018 = vpop.permute.xlu0 %2017
        %2020 = vset.pattern.permute.xlu0 8
        %2021 = vperm.xlu0 %2020, %v433
        %v2022 = vpop.permute.xlu0 %2021
        %2024 = vset.pattern.permute.xlu0 8
        %2025 = vperm.xlu0 %2024, %v434
        %v2026 = vpop.permute.xlu0 %2025
        %2028 = vset.pattern.permute.xlu0 8
        %2029 = vperm.xlu0 %2028, %v435
        %v2030 = vpop.permute.xlu0 %2029
        %2032 = vset.pattern.permute.xlu0 8
        %2033 = vperm.xlu0 %2032, %v436
        %v2034 = vpop.permute.xlu0 %2033
        %2036 = vset.pattern.permute.xlu0 8
        %2037 = vperm.xlu0 %2036, %v437
        %v2038 = vpop.permute.xlu0 %2037
        %2040 = vset.pattern.permute.xlu0 8
        %2041 = vperm.xlu0 %2040, %v438
        %v2042 = vpop.permute.xlu0 %2041
        %2044 = vset.pattern.permute.xlu0 8
        %2045 = vperm.xlu0 %2044, %v439
        %v2046 = vpop.permute.xlu0 %2045
        %2048 = vset.pattern.permute.xlu0 8
        %2049 = vperm.xlu0 %2048, %v440
        %v2050 = vpop.permute.xlu0 %2049
        %2052 = vset.pattern.permute.xlu0 8
        %2053 = vperm.xlu0 %2052, %v441
        %v2054 = vpop.permute.xlu0 %2053
        %2056 = vset.pattern.permute.xlu0 8
        %2057 = vperm.xlu0 %2056, %v442
        %v2058 = vpop.permute.xlu0 %2057
        %2060 = vset.pattern.permute.xlu0 8
        %2061 = vperm.xlu0 %2060, %v443
        %v2062 = vpop.permute.xlu0 %2061
        %2064 = vset.pattern.permute.xlu0 8
        %2065 = vperm.xlu0 %2064, %v444
        %v2066 = vpop.permute.xlu0 %2065
        %2068 = vset.pattern.permute.xlu0 8
        %2069 = vperm.xlu0 %2068, %v445
        %v2070 = vpop.permute.xlu0 %2069
        %2072 = vset.pattern.permute.xlu0 8
        %2073 = vperm.xlu0 %2072, %v446
        %v2074 = vpop.permute.xlu0 %2073
        %2076 = vset.pattern.permute.xlu0 8
        %2077 = vperm.xlu0 %2076, %v447
        %v2078 = vpop.permute.xlu0 %2077
        %2080 = vset.pattern.permute.xlu0 8
        %2081 = vperm.xlu0 %2080, %v448
        %v2082 = vpop.permute.xlu0 %2081
        %2084 = vset.pattern.permute.xlu0 8
        %2085 = vperm.xlu0 %2084, %v449
        %v2086 = vpop.permute.xlu0 %2085
        %2088 = vset.pattern.permute.xlu0 8
        %2089 = vperm.xlu0 %2088, %v450
        %v2090 = vpop.permute.xlu0 %2089
        %2092 = vset.pattern.permute.xlu0 8
        %2093 = vperm.xlu0 %2092, %v451
        %v2094 = vpop.permute.xlu0 %2093
        %2096 = vset.pattern.permute.xlu0 8
        %2097 = vperm.xlu0 %2096, %v452
        %v2098 = vpop.permute.xlu0 %2097
        %2100 = vset.pattern.permute.xlu0 8
        %2101 = vperm.xlu0 %2100, %v453
        %v2102 = vpop.permute.xlu0 %2101
        %2104 = vset.pattern.permute.xlu0 8
        %2105 = vperm.xlu0 %2104, %v454
        %v2106 = vpop.permute.xlu0 %2105
        %2108 = vset.pattern.permute.xlu0 8
        %2109 = vperm.xlu0 %2108, %v455
        %v2110 = vpop.permute.xlu0 %2109
        %2112 = vset.pattern.permute.xlu0 8
        %2113 = vperm.xlu0 %2112, %v456
        %v2114 = vpop.permute.xlu0 %2113
        %2116 = vset.pattern.permute.xlu0 8
        %2117 = vperm.xlu0 %2116, %v457
        %v2118 = vpop.permute.xlu0 %2117
        %2120 = vset.pattern.permute.xlu0 8
        %2121 = vperm.xlu0 %2120, %v458
        %v2122 = vpop.permute.xlu0 %2121
        %2124 = vset.pattern.permute.xlu0 8
        %2125 = vperm.xlu0 %2124, %v459
        %v2126 = vpop.permute.xlu0 %2125
        %v2128 = vmul.f32 %v1004, %v2002
        %v2129 = vmul.f32 %v1003, %v2006
        %v2130 = vmul.f32 %v1002, %v2010
        %v2131 = vmul.f32 %v1001, %v2014
        %v2132 = vmul.f32 %v1000, %v2018
        %v2133 = vmul.f32 %v999, %v2022
        %v2134 = vmul.f32 %v998, %v2026
        %v2135 = vmul.f32 %v997, %v2030
        %v2136 = vmul.f32 %v996, %v2034
        %v2137 = vmul.f32 %v995, %v2038
        %v2138 = vmul.f32 %v994, %v2042
        %v2139 = vmul.f32 %v993, %v2046
        %v2140 = vmul.f32 %v992, %v2050
        %v2141 = vmul.f32 %v991, %v2054
        %v2142 = vmul.f32 %v990, %v2058
        %v2143 = vmul.f32 %v989, %v2062
        %v2144 = vmul.f32 %v988, %v2066
        %v2145 = vmul.f32 %v987, %v2070
        %v2146 = vmul.f32 %v986, %v2074
        %v2147 = vmul.f32 %v985, %v2078
        %v2148 = vmul.f32 %v984, %v2082
        %v2149 = vmul.f32 %v983, %v2086
        %v2150 = vmul.f32 %v982, %v2090
        %v2151 = vmul.f32 %v981, %v2094
        %v2152 = vmul.f32 %v980, %v2098
        %v2153 = vmul.f32 %v979, %v2102
        %v2154 = vmul.f32 %v978, %v2106
        %v2155 = vmul.f32 %v977, %v2110
        %v2156 = vmul.f32 %v976, %v2114
        %v2157 = vmul.f32 %v1007, %v2118
        %v2158 = vmul.f32 %v1006, %v2122
        %v2159 = vmul.f32 %v1005, %v2126
        %v2160 = vpack.c.bf16 %v2128, %v2128
        %v2161 = vpack.c.bf16 %v2129, %v2129
        %v2162 = vpack.c.bf16 %v2130, %v2130
        %v2163 = vpack.c.bf16 %v2131, %v2131
        %v2164 = vpack.c.bf16 %v2132, %v2132
        %v2165 = vpack.c.bf16 %v2133, %v2133
        %v2166 = vpack.c.bf16 %v2134, %v2134
        %v2167 = vpack.c.bf16 %v2135, %v2135
        %v2168 = vpack.c.bf16 %v2136, %v2136
        %v2169 = vpack.c.bf16 %v2137, %v2137
        %v2170 = vpack.c.bf16 %v2138, %v2138
        %v2171 = vpack.c.bf16 %v2139, %v2139
        %v2172 = vpack.c.bf16 %v2140, %v2140
        %v2173 = vpack.c.bf16 %v2141, %v2141
        %v2174 = vpack.c.bf16 %v2142, %v2142
        %v2175 = vpack.c.bf16 %v2143, %v2143
        %v2176 = vpack.c.bf16 %v2144, %v2144
        %v2177 = vpack.c.bf16 %v2145, %v2145
        %v2178 = vpack.c.bf16 %v2146, %v2146
        %v2179 = vpack.c.bf16 %v2147, %v2147
        %v2180 = vpack.c.bf16 %v2148, %v2148
        %v2181 = vpack.c.bf16 %v2149, %v2149
        %v2182 = vpack.c.bf16 %v2150, %v2150
        %v2183 = vpack.c.bf16 %v2151, %v2151
        %v2184 = vpack.c.bf16 %v2152, %v2152
        %v2185 = vpack.c.bf16 %v2153, %v2153
        %v2186 = vpack.c.bf16 %v2154, %v2154
        %v2187 = vpack.c.bf16 %v2155, %v2155
        %v2188 = vpack.c.bf16 %v2156, %v2156
        %v2189 = vpack.c.bf16 %v2157, %v2157
        %v2190 = vpack.c.bf16 %v2158, %v2158
        %v2191 = vpack.c.bf16 %v2159, %v2159
        %v2224 = vunpack.c.l.b16 %v719
        %v2225 = vunpack.c.l.b16 %v720
        %v2226 = vunpack.c.l.b16 %v721
        %v2227 = vunpack.c.l.b16 %v722
        %v2228 = vunpack.c.l.b16 %v723
        %v2229 = vunpack.c.l.b16 %v724
        %v2230 = vunpack.c.l.b16 %v725
        %v2231 = vunpack.c.l.b16 %v726
        %v2232 = vunpack.c.l.b16 %v727
        %v2233 = vunpack.c.l.b16 %v728
        %v2234 = vunpack.c.l.b16 %v729
        %v2235 = vunpack.c.l.b16 %v730
        %v2236 = vunpack.c.l.b16 %v731
        %v2237 = vunpack.c.l.b16 %v732
        %v2238 = vunpack.c.l.b16 %v733
        %v2239 = vunpack.c.l.b16 %v734
        %v2240 = vunpack.c.l.b16 %v735
        %v2241 = vunpack.c.l.b16 %v736
        %v2242 = vunpack.c.l.b16 %v737
        %v2243 = vunpack.c.l.b16 %v738
        %v2244 = vunpack.c.l.b16 %v739
        %v2245 = vunpack.c.l.b16 %v740
        %v2246 = vunpack.c.l.b16 %v741
        %v2247 = vunpack.c.l.b16 %v742
        %v2248 = vunpack.c.l.b16 %v743
        %v2249 = vunpack.c.l.b16 %v744
        %v2250 = vunpack.c.l.b16 %v745
        %v2251 = vunpack.c.l.b16 %v746
        %v2252 = vunpack.c.l.b16 %v747
        %v2253 = vunpack.c.l.b16 %v748
        %v2254 = vunpack.c.l.b16 %v749
        %v2255 = vunpack.c.l.b16 %v750
        %v2256 = vpack.c.b16 %v2225, %v2224
        %v2257 = vpack.c.b16 %v2227, %v2226
        %v2258 = vpack.c.b16 %v2229, %v2228
        %v2259 = vpack.c.b16 %v2231, %v2230
        %v2260 = vpack.c.b16 %v2233, %v2232
        %v2261 = vpack.c.b16 %v2235, %v2234
        %v2262 = vpack.c.b16 %v2237, %v2236
        %v2263 = vpack.c.b16 %v2239, %v2238
        %v2264 = vpack.c.b16 %v2241, %v2240
        %v2265 = vpack.c.b16 %v2243, %v2242
        %v2266 = vpack.c.b16 %v2245, %v2244
        %v2267 = vpack.c.b16 %v2247, %v2246
        %v2268 = vpack.c.b16 %v2249, %v2248
        %v2269 = vpack.c.b16 %v2251, %v2250
        %v2270 = vpack.c.b16 %v2253, %v2252
        %v2271 = vpack.c.b16 %v2255, %v2254
        %v2304 = vunpack.c.l.b16 %v911
        %v2305 = vunpack.c.l.b16 %v912
        %v2306 = vunpack.c.l.b16 %v913
        %v2307 = vunpack.c.l.b16 %v914
        %v2308 = vunpack.c.l.b16 %v915
        %v2309 = vunpack.c.l.b16 %v916
        %v2310 = vunpack.c.l.b16 %v917
        %v2311 = vunpack.c.l.b16 %v918
        %v2312 = vunpack.c.l.b16 %v919
        %v2313 = vunpack.c.l.b16 %v920
        %v2314 = vunpack.c.l.b16 %v921
        %v2315 = vunpack.c.l.b16 %v922
        %v2316 = vunpack.c.l.b16 %v923
        %v2317 = vunpack.c.l.b16 %v924
        %v2318 = vunpack.c.l.b16 %v925
        %v2319 = vunpack.c.l.b16 %v926
        %v2320 = vunpack.c.l.b16 %v927
        %v2321 = vunpack.c.l.b16 %v928
        %v2322 = vunpack.c.l.b16 %v929
        %v2323 = vunpack.c.l.b16 %v930
        %v2324 = vunpack.c.l.b16 %v931
        %v2325 = vunpack.c.l.b16 %v932
        %v2326 = vunpack.c.l.b16 %v933
        %v2327 = vunpack.c.l.b16 %v934
        %v2328 = vunpack.c.l.b16 %v935
        %v2329 = vunpack.c.l.b16 %v936
        %v2330 = vunpack.c.l.b16 %v937
        %v2331 = vunpack.c.l.b16 %v938
        %v2332 = vunpack.c.l.b16 %v939
        %v2333 = vunpack.c.l.b16 %v940
        %v2334 = vunpack.c.l.b16 %v941
        %v2335 = vunpack.c.l.b16 %v942
        %v2336 = vpack.c.b16 %v2305, %v2304
        %v2337 = vpack.c.b16 %v2307, %v2306
        %v2338 = vpack.c.b16 %v2309, %v2308
        %v2339 = vpack.c.b16 %v2311, %v2310
        %v2340 = vpack.c.b16 %v2313, %v2312
        %v2341 = vpack.c.b16 %v2315, %v2314
        %v2342 = vpack.c.b16 %v2317, %v2316
        %v2343 = vpack.c.b16 %v2319, %v2318
        %v2344 = vpack.c.b16 %v2321, %v2320
        %v2345 = vpack.c.b16 %v2323, %v2322
        %v2346 = vpack.c.b16 %v2325, %v2324
        %v2347 = vpack.c.b16 %v2327, %v2326
        %v2348 = vpack.c.b16 %v2329, %v2328
        %v2349 = vpack.c.b16 %v2331, %v2330
        %v2350 = vpack.c.b16 %v2333, %v2332
        %v2351 = vpack.c.b16 %v2335, %v2334
        %2352 = vrot.lane.b32.xlu0 %v2336, 32
        %v2353 = vpop.permute.xlu0 %2352
        %2354 = vrot.lane.b32.xlu0 %v2337, 32
        %v2355 = vpop.permute.xlu0 %2354
        %2356 = vrot.lane.b32.xlu0 %v2338, 32
        %v2357 = vpop.permute.xlu0 %2356
        %2358 = vrot.lane.b32.xlu0 %v2339, 32
        %v2359 = vpop.permute.xlu0 %2358
        %2360 = vrot.lane.b32.xlu0 %v2340, 32
        %v2361 = vpop.permute.xlu0 %2360
        %2362 = vrot.lane.b32.xlu0 %v2341, 32
        %v2363 = vpop.permute.xlu0 %2362
        %2364 = vrot.lane.b32.xlu0 %v2342, 32
        %v2365 = vpop.permute.xlu0 %2364
        %2366 = vrot.lane.b32.xlu0 %v2343, 32
        %v2367 = vpop.permute.xlu0 %2366
        %2368 = vrot.lane.b32.xlu0 %v2344, 32
        %v2369 = vpop.permute.xlu0 %2368
        %2370 = vrot.lane.b32.xlu0 %v2345, 32
        %v2371 = vpop.permute.xlu0 %2370
        %2372 = vrot.lane.b32.xlu0 %v2346, 32
        %v2373 = vpop.permute.xlu0 %2372
        %2374 = vrot.lane.b32.xlu0 %v2347, 32
        %v2375 = vpop.permute.xlu0 %2374
        %2376 = vrot.lane.b32.xlu0 %v2348, 32
        %v2377 = vpop.permute.xlu0 %2376
        %2378 = vrot.lane.b32.xlu0 %v2349, 32
        %v2379 = vpop.permute.xlu0 %2378
        %2380 = vrot.lane.b32.xlu0 %v2350, 32
        %v2381 = vpop.permute.xlu0 %2380
        %2382 = vrot.lane.b32.xlu0 %v2351, 32
        %v2383 = vpop.permute.xlu0 %2382
        %v2416 = vunpack.c.l.b16 %v1168
        %v2417 = vunpack.c.l.b16 %v1169
        %v2418 = vunpack.c.l.b16 %v1170
        %v2419 = vunpack.c.l.b16 %v1171
        %v2420 = vunpack.c.l.b16 %v1172
        %v2421 = vunpack.c.l.b16 %v1173
        %v2422 = vunpack.c.l.b16 %v1174
        %v2423 = vunpack.c.l.b16 %v1175
        %v2424 = vunpack.c.l.b16 %v1176
        %v2425 = vunpack.c.l.b16 %v1177
        %v2426 = vunpack.c.l.b16 %v1178
        %v2427 = vunpack.c.l.b16 %v1179
        %v2428 = vunpack.c.l.b16 %v1180
        %v2429 = vunpack.c.l.b16 %v1181
        %v2430 = vunpack.c.l.b16 %v1182
        %v2431 = vunpack.c.l.b16 %v1183
        %v2432 = vunpack.c.l.b16 %v1184
        %v2433 = vunpack.c.l.b16 %v1185
        %v2434 = vunpack.c.l.b16 %v1186
        %v2435 = vunpack.c.l.b16 %v1187
        %v2436 = vunpack.c.l.b16 %v1188
        %v2437 = vunpack.c.l.b16 %v1189
        %v2438 = vunpack.c.l.b16 %v1190
        %v2439 = vunpack.c.l.b16 %v1191
        %v2440 = vunpack.c.l.b16 %v1192
        %v2441 = vunpack.c.l.b16 %v1193
        %v2442 = vunpack.c.l.b16 %v1194
        %v2443 = vunpack.c.l.b16 %v1195
        %v2444 = vunpack.c.l.b16 %v1196
        %v2445 = vunpack.c.l.b16 %v1197
        %v2446 = vunpack.c.l.b16 %v1198
        %v2447 = vunpack.c.l.b16 %v1199
        %v2448 = vpack.c.b16 %v2417, %v2416
        %v2449 = vpack.c.b16 %v2419, %v2418
        %v2450 = vpack.c.b16 %v2421, %v2420
        %v2451 = vpack.c.b16 %v2423, %v2422
        %v2452 = vpack.c.b16 %v2425, %v2424
        %v2453 = vpack.c.b16 %v2427, %v2426
        %v2454 = vpack.c.b16 %v2429, %v2428
        %v2455 = vpack.c.b16 %v2431, %v2430
        %v2456 = vpack.c.b16 %v2433, %v2432
        %v2457 = vpack.c.b16 %v2435, %v2434
        %v2458 = vpack.c.b16 %v2437, %v2436
        %v2459 = vpack.c.b16 %v2439, %v2438
        %v2460 = vpack.c.b16 %v2441, %v2440
        %v2461 = vpack.c.b16 %v2443, %v2442
        %v2462 = vpack.c.b16 %v2445, %v2444
        %v2463 = vpack.c.b16 %v2447, %v2446
        %2464 = vrot.lane.b32.xlu0 %v2448, 64
        %v2465 = vpop.permute.xlu0 %2464
        %2466 = vrot.lane.b32.xlu0 %v2449, 64
        %v2467 = vpop.permute.xlu0 %2466
        %2468 = vrot.lane.b32.xlu0 %v2450, 64
        %v2469 = vpop.permute.xlu0 %2468
        %2470 = vrot.lane.b32.xlu0 %v2451, 64
        %v2471 = vpop.permute.xlu0 %2470
        %2472 = vrot.lane.b32.xlu0 %v2452, 64
        %v2473 = vpop.permute.xlu0 %2472
        %2474 = vrot.lane.b32.xlu0 %v2453, 64
        %v2475 = vpop.permute.xlu0 %2474
        %2476 = vrot.lane.b32.xlu0 %v2454, 64
        %v2477 = vpop.permute.xlu0 %2476
        %2478 = vrot.lane.b32.xlu0 %v2455, 64
        %v2479 = vpop.permute.xlu0 %2478
        %2480 = vrot.lane.b32.xlu0 %v2456, 64
        %v2481 = vpop.permute.xlu0 %2480
        %2482 = vrot.lane.b32.xlu0 %v2457, 64
        %v2483 = vpop.permute.xlu0 %2482
        %2484 = vrot.lane.b32.xlu0 %v2458, 64
        %v2485 = vpop.permute.xlu0 %2484
        %2486 = vrot.lane.b32.xlu0 %v2459, 64
        %v2487 = vpop.permute.xlu0 %2486
        %2488 = vrot.lane.b32.xlu0 %v2460, 64
        %v2489 = vpop.permute.xlu0 %2488
        %2490 = vrot.lane.b32.xlu0 %v2461, 64
        %v2491 = vpop.permute.xlu0 %2490
        %2492 = vrot.lane.b32.xlu0 %v2462, 64
        %v2493 = vpop.permute.xlu0 %2492
        %2494 = vrot.lane.b32.xlu0 %v2463, 64
        %v2495 = vpop.permute.xlu0 %2494
        %v2528 = vunpack.c.l.b16 %v1360
        %v2529 = vunpack.c.l.b16 %v1361
        %v2530 = vunpack.c.l.b16 %v1362
        %v2531 = vunpack.c.l.b16 %v1363
        %v2532 = vunpack.c.l.b16 %v1364
        %v2533 = vunpack.c.l.b16 %v1365
        %v2534 = vunpack.c.l.b16 %v1366
        %v2535 = vunpack.c.l.b16 %v1367
        %v2536 = vunpack.c.l.b16 %v1368
        %v2537 = vunpack.c.l.b16 %v1369
        %v2538 = vunpack.c.l.b16 %v1370
        %v2539 = vunpack.c.l.b16 %v1371
        %v2540 = vunpack.c.l.b16 %v1372
        %v2541 = vunpack.c.l.b16 %v1373
        %v2542 = vunpack.c.l.b16 %v1374
        %v2543 = vunpack.c.l.b16 %v1375
        %v2544 = vunpack.c.l.b16 %v1376
        %v2545 = vunpack.c.l.b16 %v1377
        %v2546 = vunpack.c.l.b16 %v1378
        %v2547 = vunpack.c.l.b16 %v1379
        %v2548 = vunpack.c.l.b16 %v1380
        %v2549 = vunpack.c.l.b16 %v1381
        %v2550 = vunpack.c.l.b16 %v1382
        %v2551 = vunpack.c.l.b16 %v1383
        %v2552 = vunpack.c.l.b16 %v1384
        %v2553 = vunpack.c.l.b16 %v1385
        %v2554 = vunpack.c.l.b16 %v1386
        %v2555 = vunpack.c.l.b16 %v1387
        %v2556 = vunpack.c.l.b16 %v1388
        %v2557 = vunpack.c.l.b16 %v1389
        %v2558 = vunpack.c.l.b16 %v1390
        %v2559 = vunpack.c.l.b16 %v1391
        %v2560 = vpack.c.b16 %v2529, %v2528
        %v2561 = vpack.c.b16 %v2531, %v2530
        %v2562 = vpack.c.b16 %v2533, %v2532
        %v2563 = vpack.c.b16 %v2535, %v2534
        %v2564 = vpack.c.b16 %v2537, %v2536
        %v2565 = vpack.c.b16 %v2539, %v2538
        %v2566 = vpack.c.b16 %v2541, %v2540
        %v2567 = vpack.c.b16 %v2543, %v2542
        %v2568 = vpack.c.b16 %v2545, %v2544
        %v2569 = vpack.c.b16 %v2547, %v2546
        %v2570 = vpack.c.b16 %v2549, %v2548
        %v2571 = vpack.c.b16 %v2551, %v2550
        %v2572 = vpack.c.b16 %v2553, %v2552
        %v2573 = vpack.c.b16 %v2555, %v2554
        %v2574 = vpack.c.b16 %v2557, %v2556
        %v2575 = vpack.c.b16 %v2559, %v2558
        %2576 = vrot.lane.b32.xlu0 %v2560, 96
        %v2577 = vpop.permute.xlu0 %2576
        %2578 = vrot.lane.b32.xlu0 %v2561, 96
        %v2579 = vpop.permute.xlu0 %2578
        %2580 = vrot.lane.b32.xlu0 %v2562, 96
        %v2581 = vpop.permute.xlu0 %2580
        %2582 = vrot.lane.b32.xlu0 %v2563, 96
        %v2583 = vpop.permute.xlu0 %2582
        %2584 = vrot.lane.b32.xlu0 %v2564, 96
        %v2585 = vpop.permute.xlu0 %2584
        %2586 = vrot.lane.b32.xlu0 %v2565, 96
        %v2587 = vpop.permute.xlu0 %2586
        %2588 = vrot.lane.b32.xlu0 %v2566, 96
        %v2589 = vpop.permute.xlu0 %2588
        %2590 = vrot.lane.b32.xlu0 %v2567, 96
        %v2591 = vpop.permute.xlu0 %2590
        %2592 = vrot.lane.b32.xlu0 %v2568, 96
        %v2593 = vpop.permute.xlu0 %2592
        %2594 = vrot.lane.b32.xlu0 %v2569, 96
        %v2595 = vpop.permute.xlu0 %2594
        %2596 = vrot.lane.b32.xlu0 %v2570, 96
        %v2597 = vpop.permute.xlu0 %2596
        %2598 = vrot.lane.b32.xlu0 %v2571, 96
        %v2599 = vpop.permute.xlu0 %2598
        %2600 = vrot.lane.b32.xlu0 %v2572, 96
        %v2601 = vpop.permute.xlu0 %2600
        %2602 = vrot.lane.b32.xlu0 %v2573, 96
        %v2603 = vpop.permute.xlu0 %2602
        %2604 = vrot.lane.b32.xlu0 %v2574, 96
        %v2605 = vpop.permute.xlu0 %2604
        %2606 = vrot.lane.b32.xlu0 %v2575, 96
        %v2607 = vpop.permute.xlu0 %2606
        %v2640 = vunpack.c.l.b16 %v1392
        %v2641 = vunpack.c.l.b16 %v1393
        %v2642 = vunpack.c.l.b16 %v1394
        %v2643 = vunpack.c.l.b16 %v1395
        %v2644 = vunpack.c.l.b16 %v1396
        %v2645 = vunpack.c.l.b16 %v1397
        %v2646 = vunpack.c.l.b16 %v1398
        %v2647 = vunpack.c.l.b16 %v1399
        %v2648 = vunpack.c.l.b16 %v1400
        %v2649 = vunpack.c.l.b16 %v1401
        %v2650 = vunpack.c.l.b16 %v1402
        %v2651 = vunpack.c.l.b16 %v1403
        %v2652 = vunpack.c.l.b16 %v1404
        %v2653 = vunpack.c.l.b16 %v1405
        %v2654 = vunpack.c.l.b16 %v1406
        %v2655 = vunpack.c.l.b16 %v1407
        %v2656 = vunpack.c.l.b16 %v1408
        %v2657 = vunpack.c.l.b16 %v1409
        %v2658 = vunpack.c.l.b16 %v1410
        %v2659 = vunpack.c.l.b16 %v1411
        %v2660 = vunpack.c.l.b16 %v1412
        %v2661 = vunpack.c.l.b16 %v1413
        %v2662 = vunpack.c.l.b16 %v1414
        %v2663 = vunpack.c.l.b16 %v1415
        %v2664 = vunpack.c.l.b16 %v1416
        %v2665 = vunpack.c.l.b16 %v1417
        %v2666 = vunpack.c.l.b16 %v1418
        %v2667 = vunpack.c.l.b16 %v1419
        %v2668 = vunpack.c.l.b16 %v1420
        %v2669 = vunpack.c.l.b16 %v1421
        %v2670 = vunpack.c.l.b16 %v1422
        %v2671 = vunpack.c.l.b16 %v1423
        %v2672 = vpack.c.b16 %v2641, %v2640
        %v2673 = vpack.c.b16 %v2643, %v2642
        %v2674 = vpack.c.b16 %v2645, %v2644
        %v2675 = vpack.c.b16 %v2647, %v2646
        %v2676 = vpack.c.b16 %v2649, %v2648
        %v2677 = vpack.c.b16 %v2651, %v2650
        %v2678 = vpack.c.b16 %v2653, %v2652
        %v2679 = vpack.c.b16 %v2655, %v2654
        %v2680 = vpack.c.b16 %v2657, %v2656
        %v2681 = vpack.c.b16 %v2659, %v2658
        %v2682 = vpack.c.b16 %v2661, %v2660
        %v2683 = vpack.c.b16 %v2663, %v2662
        %v2684 = vpack.c.b16 %v2665, %v2664
        %v2685 = vpack.c.b16 %v2667, %v2666
        %v2686 = vpack.c.b16 %v2669, %v2668
        %v2687 = vpack.c.b16 %v2671, %v2670
        %v2720 = vunpack.c.l.b16 %v1584
        %v2721 = vunpack.c.l.b16 %v1585
        %v2722 = vunpack.c.l.b16 %v1586
        %v2723 = vunpack.c.l.b16 %v1587
        %v2724 = vunpack.c.l.b16 %v1588
        %v2725 = vunpack.c.l.b16 %v1589
        %v2726 = vunpack.c.l.b16 %v1590
        %v2727 = vunpack.c.l.b16 %v1591
        %v2728 = vunpack.c.l.b16 %v1592
        %v2729 = vunpack.c.l.b16 %v1593
        %v2730 = vunpack.c.l.b16 %v1594
        %v2731 = vunpack.c.l.b16 %v1595
        %v2732 = vunpack.c.l.b16 %v1596
        %v2733 = vunpack.c.l.b16 %v1597
        %v2734 = vunpack.c.l.b16 %v1598
        %v2735 = vunpack.c.l.b16 %v1599
        %v2736 = vunpack.c.l.b16 %v1600
        %v2737 = vunpack.c.l.b16 %v1601
        %v2738 = vunpack.c.l.b16 %v1602
        %v2739 = vunpack.c.l.b16 %v1603
        %v2740 = vunpack.c.l.b16 %v1604
        %v2741 = vunpack.c.l.b16 %v1605
        %v2742 = vunpack.c.l.b16 %v1606
        %v2743 = vunpack.c.l.b16 %v1607
        %v2744 = vunpack.c.l.b16 %v1608
        %v2745 = vunpack.c.l.b16 %v1609
        %v2746 = vunpack.c.l.b16 %v1610
        %v2747 = vunpack.c.l.b16 %v1611
        %v2748 = vunpack.c.l.b16 %v1612
        %v2749 = vunpack.c.l.b16 %v1613
        %v2750 = vunpack.c.l.b16 %v1614
        %v2751 = vunpack.c.l.b16 %v1615
        %v2752 = vpack.c.b16 %v2721, %v2720
        %v2753 = vpack.c.b16 %v2723, %v2722
        %v2754 = vpack.c.b16 %v2725, %v2724
        %v2755 = vpack.c.b16 %v2727, %v2726
        %v2756 = vpack.c.b16 %v2729, %v2728
        %v2757 = vpack.c.b16 %v2731, %v2730
        %v2758 = vpack.c.b16 %v2733, %v2732
        %v2759 = vpack.c.b16 %v2735, %v2734
        %v2760 = vpack.c.b16 %v2737, %v2736
        %v2761 = vpack.c.b16 %v2739, %v2738
        %v2762 = vpack.c.b16 %v2741, %v2740
        %v2763 = vpack.c.b16 %v2743, %v2742
        %v2764 = vpack.c.b16 %v2745, %v2744
        %v2765 = vpack.c.b16 %v2747, %v2746
        %v2766 = vpack.c.b16 %v2749, %v2748
        %v2767 = vpack.c.b16 %v2751, %v2750
        %2768 = vrot.lane.b32.xlu0 %v2752, 32
        %v2769 = vpop.permute.xlu0 %2768
        %2770 = vrot.lane.b32.xlu0 %v2753, 32
        %v2771 = vpop.permute.xlu0 %2770
        %2772 = vrot.lane.b32.xlu0 %v2754, 32
        %v2773 = vpop.permute.xlu0 %2772
        %2774 = vrot.lane.b32.xlu0 %v2755, 32
        %v2775 = vpop.permute.xlu0 %2774
        %2776 = vrot.lane.b32.xlu0 %v2756, 32
        %v2777 = vpop.permute.xlu0 %2776
        %2778 = vrot.lane.b32.xlu0 %v2757, 32
        %v2779 = vpop.permute.xlu0 %2778
        %2780 = vrot.lane.b32.xlu0 %v2758, 32
        %v2781 = vpop.permute.xlu0 %2780
        %2782 = vrot.lane.b32.xlu0 %v2759, 32
        %v2783 = vpop.permute.xlu0 %2782
        %2784 = vrot.lane.b32.xlu0 %v2760, 32
        %v2785 = vpop.permute.xlu0 %2784
        %2786 = vrot.lane.b32.xlu0 %v2761, 32
        %v2787 = vpop.permute.xlu0 %2786
        %2788 = vrot.lane.b32.xlu0 %v2762, 32
        %v2789 = vpop.permute.xlu0 %2788
        %2790 = vrot.lane.b32.xlu0 %v2763, 32
        %v2791 = vpop.permute.xlu0 %2790
        %2792 = vrot.lane.b32.xlu0 %v2764, 32
        %v2793 = vpop.permute.xlu0 %2792
        %2794 = vrot.lane.b32.xlu0 %v2765, 32
        %v2795 = vpop.permute.xlu0 %2794
        %2796 = vrot.lane.b32.xlu0 %v2766, 32
        %v2797 = vpop.permute.xlu0 %2796
        %2798 = vrot.lane.b32.xlu0 %v2767, 32
        %v2799 = vpop.permute.xlu0 %2798
        %v2832 = vunpack.c.l.b16 %v1776
        %v2833 = vunpack.c.l.b16 %v1777
        %v2834 = vunpack.c.l.b16 %v1778
        %v2835 = vunpack.c.l.b16 %v1779
        %v2836 = vunpack.c.l.b16 %v1780
        %v2837 = vunpack.c.l.b16 %v1781
        %v2838 = vunpack.c.l.b16 %v1782
        %v2839 = vunpack.c.l.b16 %v1783
        %v2840 = vunpack.c.l.b16 %v1784
        %v2841 = vunpack.c.l.b16 %v1785
        %v2842 = vunpack.c.l.b16 %v1786
        %v2843 = vunpack.c.l.b16 %v1787
        %v2844 = vunpack.c.l.b16 %v1788
        %v2845 = vunpack.c.l.b16 %v1789
        %v2846 = vunpack.c.l.b16 %v1790
        %v2847 = vunpack.c.l.b16 %v1791
        %v2848 = vunpack.c.l.b16 %v1792
        %v2849 = vunpack.c.l.b16 %v1793
        %v2850 = vunpack.c.l.b16 %v1794
        %v2851 = vunpack.c.l.b16 %v1795
        %v2852 = vunpack.c.l.b16 %v1796
        %v2853 = vunpack.c.l.b16 %v1797
        %v2854 = vunpack.c.l.b16 %v1798
        %v2855 = vunpack.c.l.b16 %v1799
        %v2856 = vunpack.c.l.b16 %v1800
        %v2857 = vunpack.c.l.b16 %v1801
        %v2858 = vunpack.c.l.b16 %v1802
        %v2859 = vunpack.c.l.b16 %v1803
        %v2860 = vunpack.c.l.b16 %v1804
        %v2861 = vunpack.c.l.b16 %v1805
        %v2862 = vunpack.c.l.b16 %v1806
        %v2863 = vunpack.c.l.b16 %v1807
        %v2864 = vpack.c.b16 %v2833, %v2832
        %v2865 = vpack.c.b16 %v2835, %v2834
        %v2866 = vpack.c.b16 %v2837, %v2836
        %v2867 = vpack.c.b16 %v2839, %v2838
        %v2868 = vpack.c.b16 %v2841, %v2840
        %v2869 = vpack.c.b16 %v2843, %v2842
        %v2870 = vpack.c.b16 %v2845, %v2844
        %v2871 = vpack.c.b16 %v2847, %v2846
        %v2872 = vpack.c.b16 %v2849, %v2848
        %v2873 = vpack.c.b16 %v2851, %v2850
        %v2874 = vpack.c.b16 %v2853, %v2852
        %v2875 = vpack.c.b16 %v2855, %v2854
        %v2876 = vpack.c.b16 %v2857, %v2856
        %v2877 = vpack.c.b16 %v2859, %v2858
        %v2878 = vpack.c.b16 %v2861, %v2860
        %v2879 = vpack.c.b16 %v2863, %v2862
        %2880 = vrot.lane.b32.xlu0 %v2864, 64
        %v2881 = vpop.permute.xlu0 %2880
        %2882 = vrot.lane.b32.xlu0 %v2865, 64
        %v2883 = vpop.permute.xlu0 %2882
        %2884 = vrot.lane.b32.xlu0 %v2866, 64
        %v2885 = vpop.permute.xlu0 %2884
        %2886 = vrot.lane.b32.xlu0 %v2867, 64
        %v2887 = vpop.permute.xlu0 %2886
        %2888 = vrot.lane.b32.xlu0 %v2868, 64
        %v2889 = vpop.permute.xlu0 %2888
        %2890 = vrot.lane.b32.xlu0 %v2869, 64
        %v2891 = vpop.permute.xlu0 %2890
        %2892 = vrot.lane.b32.xlu0 %v2870, 64
        %v2893 = vpop.permute.xlu0 %2892
        %2894 = vrot.lane.b32.xlu0 %v2871, 64
        %v2895 = vpop.permute.xlu0 %2894
        %2896 = vrot.lane.b32.xlu0 %v2872, 64
        %v2897 = vpop.permute.xlu0 %2896
        %2898 = vrot.lane.b32.xlu0 %v2873, 64
        %v2899 = vpop.permute.xlu0 %2898
        %2900 = vrot.lane.b32.xlu0 %v2874, 64
        %v2901 = vpop.permute.xlu0 %2900
        %2902 = vrot.lane.b32.xlu0 %v2875, 64
        %v2903 = vpop.permute.xlu0 %2902
        %2904 = vrot.lane.b32.xlu0 %v2876, 64
        %v2905 = vpop.permute.xlu0 %2904
        %2906 = vrot.lane.b32.xlu0 %v2877, 64
        %v2907 = vpop.permute.xlu0 %2906
        %2908 = vrot.lane.b32.xlu0 %v2878, 64
        %v2909 = vpop.permute.xlu0 %2908
        %2910 = vrot.lane.b32.xlu0 %v2879, 64
        %v2911 = vpop.permute.xlu0 %2910
        %v2944 = vunpack.c.l.b16 %v1968
        %v2945 = vunpack.c.l.b16 %v1969
        %v2946 = vunpack.c.l.b16 %v1970
        %v2947 = vunpack.c.l.b16 %v1971
        %v2948 = vunpack.c.l.b16 %v1972
        %v2949 = vunpack.c.l.b16 %v1973
        %v2950 = vunpack.c.l.b16 %v1974
        %v2951 = vunpack.c.l.b16 %v1975
        %v2952 = vunpack.c.l.b16 %v1976
        %v2953 = vunpack.c.l.b16 %v1977
        %v2954 = vunpack.c.l.b16 %v1978
        %v2955 = vunpack.c.l.b16 %v1979
        %v2956 = vunpack.c.l.b16 %v1980
        %v2957 = vunpack.c.l.b16 %v1981
        %v2958 = vunpack.c.l.b16 %v1982
        %v2959 = vunpack.c.l.b16 %v1983
        %v2960 = vunpack.c.l.b16 %v1984
        %v2961 = vunpack.c.l.b16 %v1985
        %v2962 = vunpack.c.l.b16 %v1986
        %v2963 = vunpack.c.l.b16 %v1987
        %v2964 = vunpack.c.l.b16 %v1988
        %v2965 = vunpack.c.l.b16 %v1989
        %v2966 = vunpack.c.l.b16 %v1990
        %v2967 = vunpack.c.l.b16 %v1991
        %v2968 = vunpack.c.l.b16 %v1992
        %v2969 = vunpack.c.l.b16 %v1993
        %v2970 = vunpack.c.l.b16 %v1994
        %v2971 = vunpack.c.l.b16 %v1995
        %v2972 = vunpack.c.l.b16 %v1996
        %v2973 = vunpack.c.l.b16 %v1997
        %v2974 = vunpack.c.l.b16 %v1998
        %v2975 = vunpack.c.l.b16 %v1999
        %v2976 = vpack.c.b16 %v2945, %v2944
        %v2977 = vpack.c.b16 %v2947, %v2946
        %v2978 = vpack.c.b16 %v2949, %v2948
        %v2979 = vpack.c.b16 %v2951, %v2950
        %v2980 = vpack.c.b16 %v2953, %v2952
        %v2981 = vpack.c.b16 %v2955, %v2954
        %v2982 = vpack.c.b16 %v2957, %v2956
        %v2983 = vpack.c.b16 %v2959, %v2958
        %v2984 = vpack.c.b16 %v2961, %v2960
        %v2985 = vpack.c.b16 %v2963, %v2962
        %v2986 = vpack.c.b16 %v2965, %v2964
        %v2987 = vpack.c.b16 %v2967, %v2966
        %v2988 = vpack.c.b16 %v2969, %v2968
        %v2989 = vpack.c.b16 %v2971, %v2970
        %v2990 = vpack.c.b16 %v2973, %v2972
        %v2991 = vpack.c.b16 %v2975, %v2974
        %2992 = vrot.lane.b32.xlu0 %v2976, 96
        %v2993 = vpop.permute.xlu0 %2992
        %2994 = vrot.lane.b32.xlu0 %v2977, 96
        %v2995 = vpop.permute.xlu0 %2994
        %2996 = vrot.lane.b32.xlu0 %v2978, 96
        %v2997 = vpop.permute.xlu0 %2996
        %2998 = vrot.lane.b32.xlu0 %v2979, 96
        %v2999 = vpop.permute.xlu0 %2998
        %3000 = vrot.lane.b32.xlu0 %v2980, 96
        %v3001 = vpop.permute.xlu0 %3000
        %3002 = vrot.lane.b32.xlu0 %v2981, 96
        %v3003 = vpop.permute.xlu0 %3002
        %3004 = vrot.lane.b32.xlu0 %v2982, 96
        %v3005 = vpop.permute.xlu0 %3004
        %3006 = vrot.lane.b32.xlu0 %v2983, 96
        %v3007 = vpop.permute.xlu0 %3006
        %3008 = vrot.lane.b32.xlu0 %v2984, 96
        %v3009 = vpop.permute.xlu0 %3008
        %3010 = vrot.lane.b32.xlu0 %v2985, 96
        %v3011 = vpop.permute.xlu0 %3010
        %3012 = vrot.lane.b32.xlu0 %v2986, 96
        %v3013 = vpop.permute.xlu0 %3012
        %3014 = vrot.lane.b32.xlu0 %v2987, 96
        %v3015 = vpop.permute.xlu0 %3014
        %3016 = vrot.lane.b32.xlu0 %v2988, 96
        %v3017 = vpop.permute.xlu0 %3016
        %3018 = vrot.lane.b32.xlu0 %v2989, 96
        %v3019 = vpop.permute.xlu0 %3018
        %3020 = vrot.lane.b32.xlu0 %v2990, 96
        %v3021 = vpop.permute.xlu0 %3020
        %3022 = vrot.lane.b32.xlu0 %v2991, 96
        %v3023 = vpop.permute.xlu0 %3022
        %v3056 = vunpack.c.l.b16 %v2160
        %v3057 = vunpack.c.l.b16 %v2161
        %v3058 = vunpack.c.l.b16 %v2162
        %v3059 = vunpack.c.l.b16 %v2163
        %v3060 = vunpack.c.l.b16 %v2164
        %v3061 = vunpack.c.l.b16 %v2165
        %v3062 = vunpack.c.l.b16 %v2166
        %v3063 = vunpack.c.l.b16 %v2167
        %v3064 = vunpack.c.l.b16 %v2168
        %v3065 = vunpack.c.l.b16 %v2169
        %v3066 = vunpack.c.l.b16 %v2170
        %v3067 = vunpack.c.l.b16 %v2171
        %v3068 = vunpack.c.l.b16 %v2172
        %v3069 = vunpack.c.l.b16 %v2173
        %v3070 = vunpack.c.l.b16 %v2174
        %v3071 = vunpack.c.l.b16 %v2175
        %v3072 = vunpack.c.l.b16 %v2176
        %v3073 = vunpack.c.l.b16 %v2177
        %v3074 = vunpack.c.l.b16 %v2178
        %v3075 = vunpack.c.l.b16 %v2179
        %v3076 = vunpack.c.l.b16 %v2180
        %v3077 = vunpack.c.l.b16 %v2181
        %v3078 = vunpack.c.l.b16 %v2182
        %v3079 = vunpack.c.l.b16 %v2183
        %v3080 = vunpack.c.l.b16 %v2184
        %v3081 = vunpack.c.l.b16 %v2185
        %v3082 = vunpack.c.l.b16 %v2186
        %v3083 = vunpack.c.l.b16 %v2187
        %v3084 = vunpack.c.l.b16 %v2188
        %v3085 = vunpack.c.l.b16 %v2189
        %v3086 = vunpack.c.l.b16 %v2190
        %v3087 = vunpack.c.l.b16 %v2191
        %v3088 = vpack.c.b16 %v3057, %v3056
        %v3089 = vpack.c.b16 %v3059, %v3058
        %v3090 = vpack.c.b16 %v3061, %v3060
        %v3091 = vpack.c.b16 %v3063, %v3062
        %v3092 = vpack.c.b16 %v3065, %v3064
        %v3093 = vpack.c.b16 %v3067, %v3066
        %v3094 = vpack.c.b16 %v3069, %v3068
        %v3095 = vpack.c.b16 %v3071, %v3070
        %v3096 = vpack.c.b16 %v3073, %v3072
        %v3097 = vpack.c.b16 %v3075, %v3074
        %v3098 = vpack.c.b16 %v3077, %v3076
        %v3099 = vpack.c.b16 %v3079, %v3078
        %v3100 = vpack.c.b16 %v3081, %v3080
        %v3101 = vpack.c.b16 %v3083, %v3082
        %v3102 = vpack.c.b16 %v3085, %v3084
        %v3103 = vpack.c.b16 %v3087, %v3086
        %vm3104 = vcmask 261120
        %v3107 = vsel %vm3104, %v2256, %v2353
        %v3110 = vsel %vm3104, %v2257, %v2355
        %v3113 = vsel %vm3104, %v2258, %v2357
        %v3116 = vsel %vm3104, %v2259, %v2359
        %v3119 = vsel %vm3104, %v2260, %v2361
        %v3122 = vsel %vm3104, %v2261, %v2363
        %v3125 = vsel %vm3104, %v2262, %v2365
        %v3128 = vsel %vm3104, %v2263, %v2367
        %v3131 = vsel %vm3104, %v2264, %v2369
        %v3134 = vsel %vm3104, %v2265, %v2371
        %v3137 = vsel %vm3104, %v2266, %v2373
        %v3140 = vsel %vm3104, %v2267, %v2375
        %v3143 = vsel %vm3104, %v2268, %v2377
        %v3146 = vsel %vm3104, %v2269, %v2379
        %v3149 = vsel %vm3104, %v2270, %v2381
        %v3152 = vsel %vm3104, %v2271, %v2383
        %vm3153 = vcmask 523264
        %v3155 = vsel %vm3153, %v3107, %v2465
        %v3157 = vsel %vm3153, %v3110, %v2467
        %v3159 = vsel %vm3153, %v3113, %v2469
        %v3161 = vsel %vm3153, %v3116, %v2471
        %v3163 = vsel %vm3153, %v3119, %v2473
        %v3165 = vsel %vm3153, %v3122, %v2475
        %v3167 = vsel %vm3153, %v3125, %v2477
        %v3169 = vsel %vm3153, %v3128, %v2479
        %v3171 = vsel %vm3153, %v3131, %v2481
        %v3173 = vsel %vm3153, %v3134, %v2483
        %v3175 = vsel %vm3153, %v3137, %v2485
        %v3177 = vsel %vm3153, %v3140, %v2487
        %v3179 = vsel %vm3153, %v3143, %v2489
        %v3181 = vsel %vm3153, %v3146, %v2491
        %v3183 = vsel %vm3153, %v3149, %v2493
        %v3185 = vsel %vm3153, %v3152, %v2495
        %vm3186 = vcmask 785408
        %v3188 = vsel %vm3186, %v3155, %v2577
        %v3191 = vsel %vm3186, %v3157, %v2579
        %v3194 = vsel %vm3186, %v3159, %v2581
        %v3197 = vsel %vm3186, %v3161, %v2583
        %v3200 = vsel %vm3186, %v3163, %v2585
        %v3203 = vsel %vm3186, %v3165, %v2587
        %v3206 = vsel %vm3186, %v3167, %v2589
        %v3209 = vsel %vm3186, %v3169, %v2591
        %v3212 = vsel %vm3186, %v3171, %v2593
        %v3215 = vsel %vm3186, %v3173, %v2595
        %v3218 = vsel %vm3186, %v3175, %v2597
        %v3221 = vsel %vm3186, %v3177, %v2599
        %v3224 = vsel %vm3186, %v3179, %v2601
        %v3227 = vsel %vm3186, %v3181, %v2603
        %v3230 = vsel %vm3186, %v3183, %v2605
        %v3233 = vsel %vm3186, %v3185, %v2607
        %v3237 = vsel %vm3104, %v2672, %v2769
        %v3240 = vsel %vm3104, %v2673, %v2771
        %v3243 = vsel %vm3104, %v2674, %v2773
        %v3246 = vsel %vm3104, %v2675, %v2775
        %v3249 = vsel %vm3104, %v2676, %v2777
        %v3252 = vsel %vm3104, %v2677, %v2779
        %v3255 = vsel %vm3104, %v2678, %v2781
        %v3258 = vsel %vm3104, %v2679, %v2783
        %v3261 = vsel %vm3104, %v2680, %v2785
        %v3264 = vsel %vm3104, %v2681, %v2787
        %v3267 = vsel %vm3104, %v2682, %v2789
        %v3270 = vsel %vm3104, %v2683, %v2791
        %v3273 = vsel %vm3104, %v2684, %v2793
        %v3276 = vsel %vm3104, %v2685, %v2795
        %v3279 = vsel %vm3104, %v2686, %v2797
        %v3282 = vsel %vm3104, %v2687, %v2799
        %v3284 = vsel %vm3153, %v3237, %v2881
        %v3286 = vsel %vm3153, %v3240, %v2883
        %v3288 = vsel %vm3153, %v3243, %v2885
        %v3290 = vsel %vm3153, %v3246, %v2887
        %v3292 = vsel %vm3153, %v3249, %v2889
        %v3294 = vsel %vm3153, %v3252, %v2891
        %v3296 = vsel %vm3153, %v3255, %v2893
        %v3298 = vsel %vm3153, %v3258, %v2895
        %v3300 = vsel %vm3153, %v3261, %v2897
        %v3302 = vsel %vm3153, %v3264, %v2899
        %v3304 = vsel %vm3153, %v3267, %v2901
        %v3306 = vsel %vm3153, %v3270, %v2903
        %v3308 = vsel %vm3153, %v3273, %v2905
        %v3310 = vsel %vm3153, %v3276, %v2907
        %v3312 = vsel %vm3153, %v3279, %v2909
        %v3314 = vsel %vm3153, %v3282, %v2911
        %v3316 = vsel %vm3186, %v3284, %v2993
        %v3319 = vsel %vm3186, %v3286, %v2995
        %v3322 = vsel %vm3186, %v3288, %v2997
        %v3325 = vsel %vm3186, %v3290, %v2999
        %v3328 = vsel %vm3186, %v3292, %v3001
        %v3331 = vsel %vm3186, %v3294, %v3003
        %v3334 = vsel %vm3186, %v3296, %v3005
        %v3337 = vsel %vm3186, %v3298, %v3007
        %v3340 = vsel %vm3186, %v3300, %v3009
        %v3343 = vsel %vm3186, %v3302, %v3011
        %v3346 = vsel %vm3186, %v3304, %v3013
        %v3349 = vsel %vm3186, %v3306, %v3015
        %v3352 = vsel %vm3186, %v3308, %v3017
        %v3355 = vsel %vm3186, %v3310, %v3019
        %v3358 = vsel %vm3186, %v3312, %v3021
        %v3361 = vsel %vm3186, %v3314, %v3023
        %v3363 = vld [vmem:[%s4] sm:$0xf]
        %v3364 = vld [vmem:[%s4 + $0x4] sm:$0xf]
        %v3365 = vld [vmem:[%s4 + $0x8] sm:$0xf]
        %v3366 = vld [vmem:[%s4 + $0xc] sm:$0xf]
        %v3367 = vld [vmem:[%s4 + $0x10] sm:$0xf]
        %v3368 = vld [vmem:[%s4 + $0x14] sm:$0xf]
        %v3369 = vld [vmem:[%s4 + $0x18] sm:$0xf]
        %v3370 = vld [vmem:[%s4 + $0x1c] sm:$0xf]
        %v3371 = vld [vmem:[%s4 + $0x20] sm:$0xf]
        %v3372 = vld [vmem:[%s4 + $0x24] sm:$0xf]
        %v3373 = vld [vmem:[%s4 + $0x28] sm:$0xf]
        %v3374 = vld [vmem:[%s4 + $0x2c] sm:$0xf]
        %v3375 = vld [vmem:[%s4 + $0x30] sm:$0xf]
        %v3376 = vld [vmem:[%s4 + $0x34] sm:$0xf]
        %v3377 = vld [vmem:[%s4 + $0x38] sm:$0xf]
        %v3378 = vld [vmem:[%s4 + $0x3c] sm:$0xf]
        %v3379 = vld [vmem:[%s4 + $0x40] sm:$0xf]
        %v3380 = vld [vmem:[%s4 + $0x44] sm:$0xf]
        %v3381 = vld [vmem:[%s4 + $0x48] sm:$0xf]
        %v3382 = vld [vmem:[%s4 + $0x4c] sm:$0xf]
        %v3383 = vld [vmem:[%s4 + $0x50] sm:$0xf]
        %v3384 = vld [vmem:[%s4 + $0x54] sm:$0xf]
        %v3385 = vld [vmem:[%s4 + $0x58] sm:$0xf]
        %v3386 = vld [vmem:[%s4 + $0x5c] sm:$0xf]
        %v3387 = vld [vmem:[%s4 + $0x60] sm:$0xf]
        %v3388 = vld [vmem:[%s4 + $0x64] sm:$0xf]
        %v3389 = vld [vmem:[%s4 + $0x68] sm:$0xf]
        %v3390 = vld [vmem:[%s4 + $0x6c] sm:$0xf]
        %v3391 = vld [vmem:[%s4 + $0x70] sm:$0xf]
        %v3392 = vld [vmem:[%s4 + $0x74] sm:$0xf]
        %v3393 = vld [vmem:[%s4 + $0x78] sm:$0xf]
        %v3394 = vld [vmem:[%s4 + $0x7c] sm:$0xf]
        %v3395 = vld [vmem:[%s4 + $0x80] sm:$0xf]
        %v3396 = vld [vmem:[%s4 + $0x84] sm:$0xf]
        %v3397 = vld [vmem:[%s4 + $0x88] sm:$0xf]
        %v3398 = vld [vmem:[%s4 + $0x8c] sm:$0xf]
        %v3435 = vunpack.c.l.b16 %v3363
        %v3436 = vunpack.c.l.b16 %v3364
        %v3437 = vunpack.c.l.b16 %v3365
        %v3438 = vunpack.c.l.b16 %v3366
        %v3439 = vunpack.c.l.b16 %v3367
        %v3440 = vunpack.c.l.b16 %v3368
        %v3441 = vunpack.c.l.b16 %v3369
        %v3442 = vunpack.c.l.b16 %v3370
        %v3443 = vunpack.c.l.b16 %v3371
        %v3444 = vunpack.c.l.b16 %v3372
        %v3445 = vunpack.c.l.b16 %v3373
        %v3446 = vunpack.c.l.b16 %v3374
        %v3447 = vunpack.c.l.b16 %v3375
        %v3448 = vunpack.c.l.b16 %v3376
        %v3449 = vunpack.c.l.b16 %v3377
        %v3450 = vunpack.c.l.b16 %v3378
        %v3451 = vunpack.c.l.b16 %v3379
        %v3452 = vunpack.c.l.b16 %v3380
        %v3453 = vunpack.c.l.b16 %v3381
        %v3454 = vunpack.c.l.b16 %v3382
        %v3455 = vunpack.c.l.b16 %v3383
        %v3456 = vunpack.c.l.b16 %v3384
        %v3457 = vunpack.c.l.b16 %v3385
        %v3458 = vunpack.c.l.b16 %v3386
        %v3459 = vunpack.c.l.b16 %v3387
        %v3460 = vunpack.c.l.b16 %v3388
        %v3461 = vunpack.c.l.b16 %v3389
        %v3462 = vunpack.c.l.b16 %v3390
        %v3463 = vunpack.c.l.b16 %v3391
        %v3464 = vunpack.c.l.b16 %v3392
        %v3465 = vunpack.c.l.b16 %v3393
        %v3466 = vunpack.c.l.b16 %v3394
        %v3467 = vunpack.c.l.b16 %v3395
        %v3468 = vunpack.c.l.b16 %v3396
        %v3469 = vunpack.c.l.b16 %v3397
        %v3470 = vunpack.c.l.b16 %v3398
        %v3471 = vpack.c.b16 %v3436, %v3435
        %v3472 = vpack.c.b16 %v3438, %v3437
        %v3473 = vpack.c.b16 %v3440, %v3439
        %v3474 = vpack.c.b16 %v3442, %v3441
        %v3475 = vpack.c.b16 %v3444, %v3443
        %v3476 = vpack.c.b16 %v3446, %v3445
        %v3477 = vpack.c.b16 %v3448, %v3447
        %v3478 = vpack.c.b16 %v3450, %v3449
        %v3479 = vpack.c.b16 %v3452, %v3451
        %v3480 = vpack.c.b16 %v3454, %v3453
        %v3481 = vpack.c.b16 %v3456, %v3455
        %v3482 = vpack.c.b16 %v3458, %v3457
        %v3483 = vpack.c.b16 %v3460, %v3459
        %v3484 = vpack.c.b16 %v3462, %v3461
        %v3485 = vpack.c.b16 %v3464, %v3463
        %v3486 = vpack.c.b16 %v3466, %v3465
        %v3487 = vpack.c.b16 %v3468, %v3467
        %v3488 = vpack.c.b16 %v3470, %v3469
        %v3508 = vsel %vm3104, %v3088, 0
        %v3511 = vsel %vm3104, %v3089, 0
        %v3514 = vsel %vm3104, %v3090, 0
        %v3517 = vsel %vm3104, %v3091, 0
        %v3520 = vsel %vm3104, %v3092, 0
        %v3523 = vsel %vm3104, %v3093, 0
        %v3526 = vsel %vm3104, %v3094, 0
        %v3529 = vsel %vm3104, %v3095, 0
        %v3532 = vsel %vm3104, %v3096, 0
        %v3535 = vsel %vm3104, %v3097, 0
        %v3538 = vsel %vm3104, %v3098, 0
        %v3541 = vsel %vm3104, %v3099, 0
        %v3544 = vsel %vm3104, %v3100, 0
        %v3547 = vsel %vm3104, %v3101, 0
        %v3550 = vsel %vm3104, %v3102, 0
        %v3553 = vsel %vm3104, %v3103, 0
        %3555 = vmatpush.bf16.msra.mxu0 %v3478
        %3556 = vmatpush.bf16.msra.mxu0 %v3477
        %3557 = vmatpush.bf16.msra.mxu0 %v3476
        %3558 = vmatpush.bf16.msra.mxu0 %v3475
        %3559 = vmatpush.bf16.msra.mxu0 %v3474
        %3560 = vmatpush.bf16.msra.mxu0 %v3473
        %3561 = vmatpush.bf16.msra.mxu0 %v3472
        %3562 = vmatpush.bf16.msra.mxu0 %v3471
        %3563 = vmatmul.bf16.gmra.mxu0 %v3188
        %v3564 = vpop.f32.mrf.mxu0
        %v3565 = vadd.f32 0.0, %v3564
        %v3566 = vpop.f32.mrf.mxu0
        %v3567 = vadd.f32 0.0, %v3566
        %3568 = vmatmul.bf16.gmra.mxu0 %v3191
        %v3569 = vpop.f32.mrf.mxu0
        %v3570 = vadd.f32 0.0, %v3569
        %v3571 = vpop.f32.mrf.mxu0
        %v3572 = vadd.f32 0.0, %v3571
        %3573 = vmatmul.bf16.gmra.mxu0 %v3194
        %v3574 = vpop.f32.mrf.mxu0
        %v3575 = vadd.f32 0.0, %v3574
        %v3576 = vpop.f32.mrf.mxu0
        %v3577 = vadd.f32 0.0, %v3576
        %3578 = vmatmul.bf16.gmra.mxu0 %v3197
        %v3579 = vpop.f32.mrf.mxu0
        %v3580 = vadd.f32 0.0, %v3579
        %v3581 = vpop.f32.mrf.mxu0
        %v3582 = vadd.f32 0.0, %v3581
        %3583 = vmatmul.bf16.gmra.mxu0 %v3200
        %v3584 = vpop.f32.mrf.mxu0
        %v3585 = vadd.f32 0.0, %v3584
        %v3586 = vpop.f32.mrf.mxu0
        %v3587 = vadd.f32 0.0, %v3586
        %3588 = vmatmul.bf16.gmra.mxu0 %v3203
        %v3589 = vpop.f32.mrf.mxu0
        %v3590 = vadd.f32 0.0, %v3589
        %v3591 = vpop.f32.mrf.mxu0
        %v3592 = vadd.f32 0.0, %v3591
        %3593 = vmatmul.bf16.gmra.mxu0 %v3206
        %v3594 = vpop.f32.mrf.mxu0
        %v3595 = vadd.f32 0.0, %v3594
        %v3596 = vpop.f32.mrf.mxu0
        %v3597 = vadd.f32 0.0, %v3596
        %3598 = vmatmul.bf16.gmra.mxu0 %v3209
        %v3599 = vpop.f32.mrf.mxu0
        %v3600 = vadd.f32 0.0, %v3599
        %v3601 = vpop.f32.mrf.mxu0
        %v3602 = vadd.f32 0.0, %v3601
        %3603 = vmatmul.bf16.gmra.mxu0 %v3212
        %v3604 = vpop.f32.mrf.mxu0
        %v3605 = vadd.f32 0.0, %v3604
        %v3606 = vpop.f32.mrf.mxu0
        %v3607 = vadd.f32 0.0, %v3606
        %3608 = vmatmul.bf16.gmra.mxu0 %v3215
        %v3609 = vpop.f32.mrf.mxu0
        %v3610 = vadd.f32 0.0, %v3609
        %v3611 = vpop.f32.mrf.mxu0
        %v3612 = vadd.f32 0.0, %v3611
        %3613 = vmatmul.bf16.gmra.mxu0 %v3218
        %v3614 = vpop.f32.mrf.mxu0
        %v3615 = vadd.f32 0.0, %v3614
        %v3616 = vpop.f32.mrf.mxu0
        %v3617 = vadd.f32 0.0, %v3616
        %3618 = vmatmul.bf16.gmra.mxu0 %v3221
        %v3619 = vpop.f32.mrf.mxu0
        %v3620 = vadd.f32 0.0, %v3619
        %v3621 = vpop.f32.mrf.mxu0
        %v3622 = vadd.f32 0.0, %v3621
        %3623 = vmatmul.bf16.gmra.mxu0 %v3224
        %v3624 = vpop.f32.mrf.mxu0
        %v3625 = vadd.f32 0.0, %v3624
        %v3626 = vpop.f32.mrf.mxu0
        %v3627 = vadd.f32 0.0, %v3626
        %3628 = vmatmul.bf16.gmra.mxu0 %v3227
        %v3629 = vpop.f32.mrf.mxu0
        %v3630 = vadd.f32 0.0, %v3629
        %v3631 = vpop.f32.mrf.mxu0
        %v3632 = vadd.f32 0.0, %v3631
        %3633 = vmatmul.bf16.gmra.mxu0 %v3230
        %v3634 = vpop.f32.mrf.mxu0
        %v3635 = vadd.f32 0.0, %v3634
        %v3636 = vpop.f32.mrf.mxu0
        %v3637 = vadd.f32 0.0, %v3636
        %3638 = vmatmul.bf16.gmra.mxu0 %v3233
        %v3639 = vpop.f32.mrf.mxu0
        %v3640 = vadd.f32 0.0, %v3639
        %v3641 = vpop.f32.mrf.mxu0
        %v3642 = vadd.f32 0.0, %v3641
        %3643 = vdwg.mxu0
        %3644 = vmatpush.bf16.msra.mxu0 %v3486
        %3645 = vmatpush.bf16.msra.mxu0 %v3485
        %3646 = vmatpush.bf16.msra.mxu0 %v3484
        %3647 = vmatpush.bf16.msra.mxu0 %v3483
        %3648 = vmatpush.bf16.msra.mxu0 %v3482
        %3649 = vmatpush.bf16.msra.mxu0 %v3481
        %3650 = vmatpush.bf16.msra.mxu0 %v3480
        %3651 = vmatpush.bf16.msra.mxu0 %v3479
        %3652 = vmatmul.bf16.gmra.mxu0 %v3316
        %v3653 = vpop.f32.mrf.mxu0
        %v3654 = vadd.f32 %v3565, %v3653
        %v3655 = vpop.f32.mrf.mxu0
        %v3656 = vadd.f32 %v3567, %v3655
        %3657 = vmatmul.bf16.gmra.mxu0 %v3319
        %v3658 = vpop.f32.mrf.mxu0
        %v3659 = vadd.f32 %v3570, %v3658
        %v3660 = vpop.f32.mrf.mxu0
        %v3661 = vadd.f32 %v3572, %v3660
        %3662 = vmatmul.bf16.gmra.mxu0 %v3322
        %v3663 = vpop.f32.mrf.mxu0
        %v3664 = vadd.f32 %v3575, %v3663
        %v3665 = vpop.f32.mrf.mxu0
        %v3666 = vadd.f32 %v3577, %v3665
        %3667 = vmatmul.bf16.gmra.mxu0 %v3325
        %v3668 = vpop.f32.mrf.mxu0
        %v3669 = vadd.f32 %v3580, %v3668
        %v3670 = vpop.f32.mrf.mxu0
        %v3671 = vadd.f32 %v3582, %v3670
        %3672 = vmatmul.bf16.gmra.mxu0 %v3328
        %v3673 = vpop.f32.mrf.mxu0
        %v3674 = vadd.f32 %v3585, %v3673
        %v3675 = vpop.f32.mrf.mxu0
        %v3676 = vadd.f32 %v3587, %v3675
        %3677 = vmatmul.bf16.gmra.mxu0 %v3331
        %v3678 = vpop.f32.mrf.mxu0
        %v3679 = vadd.f32 %v3590, %v3678
        %v3680 = vpop.f32.mrf.mxu0
        %v3681 = vadd.f32 %v3592, %v3680
        %3682 = vmatmul.bf16.gmra.mxu0 %v3334
        %v3683 = vpop.f32.mrf.mxu0
        %v3684 = vadd.f32 %v3595, %v3683
        %v3685 = vpop.f32.mrf.mxu0
        %v3686 = vadd.f32 %v3597, %v3685
        %3687 = vmatmul.bf16.gmra.mxu0 %v3337
        %v3688 = vpop.f32.mrf.mxu0
        %v3689 = vadd.f32 %v3600, %v3688
        %v3690 = vpop.f32.mrf.mxu0
        %v3691 = vadd.f32 %v3602, %v3690
        %3692 = vmatmul.bf16.gmra.mxu0 %v3340
        %v3693 = vpop.f32.mrf.mxu0
        %v3694 = vadd.f32 %v3605, %v3693
        %v3695 = vpop.f32.mrf.mxu0
        %v3696 = vadd.f32 %v3607, %v3695
        %3697 = vmatmul.bf16.gmra.mxu0 %v3343
        %v3698 = vpop.f32.mrf.mxu0
        %v3699 = vadd.f32 %v3610, %v3698
        %v3700 = vpop.f32.mrf.mxu0
        %v3701 = vadd.f32 %v3612, %v3700
        %3702 = vmatmul.bf16.gmra.mxu0 %v3346
        %v3703 = vpop.f32.mrf.mxu0
        %v3704 = vadd.f32 %v3615, %v3703
        %v3705 = vpop.f32.mrf.mxu0
        %v3706 = vadd.f32 %v3617, %v3705
        %3707 = vmatmul.bf16.gmra.mxu0 %v3349
        %v3708 = vpop.f32.mrf.mxu0
        %v3709 = vadd.f32 %v3620, %v3708
        %v3710 = vpop.f32.mrf.mxu0
        %v3711 = vadd.f32 %v3622, %v3710
        %3712 = vmatmul.bf16.gmra.mxu0 %v3352
        %v3713 = vpop.f32.mrf.mxu0
        %v3714 = vadd.f32 %v3625, %v3713
        %v3715 = vpop.f32.mrf.mxu0
        %v3716 = vadd.f32 %v3627, %v3715
        %3717 = vmatmul.bf16.gmra.mxu0 %v3355
        %v3718 = vpop.f32.mrf.mxu0
        %v3719 = vadd.f32 %v3630, %v3718
        %v3720 = vpop.f32.mrf.mxu0
        %v3721 = vadd.f32 %v3632, %v3720
        %3722 = vmatmul.bf16.gmra.mxu0 %v3358
        %v3723 = vpop.f32.mrf.mxu0
        %v3724 = vadd.f32 %v3635, %v3723
        %v3725 = vpop.f32.mrf.mxu0
        %v3726 = vadd.f32 %v3637, %v3725
        %3727 = vmatmul.bf16.gmra.mxu0 %v3361
        %v3728 = vpop.f32.mrf.mxu0
        %v3729 = vadd.f32 %v3640, %v3728
        %v3730 = vpop.f32.mrf.mxu0
        %v3731 = vadd.f32 %v3642, %v3730
        %3732 = vdwg.mxu0
        %3733 = vmatpush.bf16.msra.mxu0 0
        %3734 = vmatpush.bf16.msra.mxu0 0
        %3735 = vmatpush.bf16.msra.mxu0 0
        %3736 = vmatpush.bf16.msra.mxu0 0
        %3737 = vmatpush.bf16.msra.mxu0 0
        %3738 = vmatpush.bf16.msra.mxu0 0
        %3739 = vmatpush.bf16.msra.mxu0 %v3488
        %3740 = vmatpush.bf16.msra.mxu0 %v3487
        %3741 = vmatmul.bf16.gmra.mxu0 %v3508
        %v3742 = vpop.f32.mrf.mxu0
        %v3743 = vadd.f32 %v3654, %v3742
        %v3744 = vpop.f32.mrf.mxu0
        %v3745 = vadd.f32 %v3656, %v3744
        %3746 = vmatmul.bf16.gmra.mxu0 %v3511
        %v3747 = vpop.f32.mrf.mxu0
        %v3748 = vadd.f32 %v3659, %v3747
        %v3749 = vpop.f32.mrf.mxu0
        %v3750 = vadd.f32 %v3661, %v3749
        %3751 = vmatmul.bf16.gmra.mxu0 %v3514
        %v3752 = vpop.f32.mrf.mxu0
        %v3753 = vadd.f32 %v3664, %v3752
        %v3754 = vpop.f32.mrf.mxu0
        %v3755 = vadd.f32 %v3666, %v3754
        %3756 = vmatmul.bf16.gmra.mxu0 %v3517
        %v3757 = vpop.f32.mrf.mxu0
        %v3758 = vadd.f32 %v3669, %v3757
        %v3759 = vpop.f32.mrf.mxu0
        %v3760 = vadd.f32 %v3671, %v3759
        %3761 = vmatmul.bf16.gmra.mxu0 %v3520
        %v3762 = vpop.f32.mrf.mxu0
        %v3763 = vadd.f32 %v3674, %v3762
        %v3764 = vpop.f32.mrf.mxu0
        %v3765 = vadd.f32 %v3676, %v3764
        %3766 = vmatmul.bf16.gmra.mxu0 %v3523
        %v3767 = vpop.f32.mrf.mxu0
        %v3768 = vadd.f32 %v3679, %v3767
        %v3769 = vpop.f32.mrf.mxu0
        %v3770 = vadd.f32 %v3681, %v3769
        %3771 = vmatmul.bf16.gmra.mxu0 %v3526
        %v3772 = vpop.f32.mrf.mxu0
        %v3773 = vadd.f32 %v3684, %v3772
        %v3774 = vpop.f32.mrf.mxu0
        %v3775 = vadd.f32 %v3686, %v3774
        %3776 = vmatmul.bf16.gmra.mxu0 %v3529
        %v3777 = vpop.f32.mrf.mxu0
        %v3778 = vadd.f32 %v3689, %v3777
        %v3779 = vpop.f32.mrf.mxu0
        %v3780 = vadd.f32 %v3691, %v3779
        %3781 = vmatmul.bf16.gmra.mxu0 %v3532
        %v3782 = vpop.f32.mrf.mxu0
        %v3783 = vadd.f32 %v3694, %v3782
        %v3784 = vpop.f32.mrf.mxu0
        %v3785 = vadd.f32 %v3696, %v3784
        %3786 = vmatmul.bf16.gmra.mxu0 %v3535
        %v3787 = vpop.f32.mrf.mxu0
        %v3788 = vadd.f32 %v3699, %v3787
        %v3789 = vpop.f32.mrf.mxu0
        %v3790 = vadd.f32 %v3701, %v3789
        %3791 = vmatmul.bf16.gmra.mxu0 %v3538
        %v3792 = vpop.f32.mrf.mxu0
        %v3793 = vadd.f32 %v3704, %v3792
        %v3794 = vpop.f32.mrf.mxu0
        %v3795 = vadd.f32 %v3706, %v3794
        %3796 = vmatmul.bf16.gmra.mxu0 %v3541
        %v3797 = vpop.f32.mrf.mxu0
        %v3798 = vadd.f32 %v3709, %v3797
        %v3799 = vpop.f32.mrf.mxu0
        %v3800 = vadd.f32 %v3711, %v3799
        %3801 = vmatmul.bf16.gmra.mxu0 %v3544
        %v3802 = vpop.f32.mrf.mxu0
        %v3803 = vadd.f32 %v3714, %v3802
        %v3804 = vpop.f32.mrf.mxu0
        %v3805 = vadd.f32 %v3716, %v3804
        %3806 = vmatmul.bf16.gmra.mxu0 %v3547
        %v3807 = vpop.f32.mrf.mxu0
        %v3808 = vadd.f32 %v3719, %v3807
        %v3809 = vpop.f32.mrf.mxu0
        %v3810 = vadd.f32 %v3721, %v3809
        %3811 = vmatmul.bf16.gmra.mxu0 %v3550
        %v3812 = vpop.f32.mrf.mxu0
        %v3813 = vadd.f32 %v3724, %v3812
        %v3814 = vpop.f32.mrf.mxu0
        %v3815 = vadd.f32 %v3726, %v3814
        %3816 = vmatmul.bf16.gmra.mxu0 %v3553
        %v3817 = vpop.f32.mrf.mxu0
        %v3818 = vadd.f32 %v3729, %v3817
        %v3819 = vpop.f32.mrf.mxu0
        %v3820 = vadd.f32 %v3731, %v3819
        %3821 = vdwg.mxu0
        %3822 = vst.msk [vmem:[%s275] sm:$0xff] %vm3104, %v3743
        %3823 = vst.msk [vmem:[%s275 + $0x8] sm:$0xff] %vm3104, %v3745
        %3824 = vst.msk [vmem:[%s275 + $0x10] sm:$0xff] %vm3104, %v3748
        %3825 = vst.msk [vmem:[%s275 + $0x18] sm:$0xff] %vm3104, %v3750
        %3826 = vst.msk [vmem:[%s275 + $0x20] sm:$0xff] %vm3104, %v3753
        %3827 = vst.msk [vmem:[%s275 + $0x28] sm:$0xff] %vm3104, %v3755
        %3828 = vst.msk [vmem:[%s275 + $0x30] sm:$0xff] %vm3104, %v3758
        %3829 = vst.msk [vmem:[%s275 + $0x38] sm:$0xff] %vm3104, %v3760
        %3830 = vst.msk [vmem:[%s275 + $0x40] sm:$0xff] %vm3104, %v3763
        %3831 = vst.msk [vmem:[%s275 + $0x48] sm:$0xff] %vm3104, %v3765
        %3832 = vst.msk [vmem:[%s275 + $0x50] sm:$0xff] %vm3104, %v3768
        %3833 = vst.msk [vmem:[%s275 + $0x58] sm:$0xff] %vm3104, %v3770
        %3834 = vst.msk [vmem:[%s275 + $0x60] sm:$0xff] %vm3104, %v3773
        %3835 = vst.msk [vmem:[%s275 + $0x68] sm:$0xff] %vm3104, %v3775
        %3836 = vst.msk [vmem:[%s275 + $0x70] sm:$0xff] %vm3104, %v3778
        %3837 = vst.msk [vmem:[%s275 + $0x78] sm:$0xff] %vm3104, %v3780
        %3838 = vst.msk [vmem:[%s275 + $0x80] sm:$0xff] %vm3104, %v3783
        %3839 = vst.msk [vmem:[%s275 + $0x88] sm:$0xff] %vm3104, %v3785
        %3840 = vst.msk [vmem:[%s275 + $0x90] sm:$0xff] %vm3104, %v3788
        %3841 = vst.msk [vmem:[%s275 + $0x98] sm:$0xff] %vm3104, %v3790
        %3842 = vst.msk [vmem:[%s275 + $0xa0] sm:$0xff] %vm3104, %v3793
        %3843 = vst.msk [vmem:[%s275 + $0xa8] sm:$0xff] %vm3104, %v3795
        %3844 = vst.msk [vmem:[%s275 + $0xb0] sm:$0xff] %vm3104, %v3798
        %3845 = vst.msk [vmem:[%s275 + $0xb8] sm:$0xff] %vm3104, %v3800
        %3846 = vst.msk [vmem:[%s275 + $0xc0] sm:$0xff] %vm3104, %v3803
        %3847 = vst.msk [vmem:[%s275 + $0xc8] sm:$0xff] %vm3104, %v3805
        %3848 = vst.msk [vmem:[%s275 + $0xd0] sm:$0xff] %vm3104, %v3808
        %3849 = vst.msk [vmem:[%s275 + $0xd8] sm:$0xff] %vm3104, %v3810
        %3850 = vst.msk [vmem:[%s275 + $0xe0] sm:$0xff] %vm3104, %v3813
        %3851 = vst.msk [vmem:[%s275 + $0xe8] sm:$0xff] %vm3104, %v3815
        %3852 = vst.msk [vmem:[%s275 + $0xf0] sm:$0xff] %vm3104, %v3818
        %3853 = vst.msk [vmem:[%s275 + $0xf8] sm:$0xff] %vm3104, %v3820
        %v3854 = vsel %vm3104, %v3743, 0.0
        %v3855 = vsel %vm3104, %v3745, 0.0
        %v3856 = vadd.f32 %v3854, %v3855
        %v3857 = vsel %vm3104, %v3748, 0.0
        %v3858 = vadd.f32 %v3856, %v3857
        %v3859 = vsel %vm3104, %v3750, 0.0
        %v3860 = vadd.f32 %v3858, %v3859
        %v3861 = vsel %vm3104, %v3753, 0.0
        %v3862 = vadd.f32 %v3860, %v3861
        %v3863 = vsel %vm3104, %v3755, 0.0
        %v3864 = vadd.f32 %v3862, %v3863
        %v3865 = vsel %vm3104, %v3758, 0.0
        %v3866 = vadd.f32 %v3864, %v3865
        %v3867 = vsel %vm3104, %v3760, 0.0
        %v3868 = vadd.f32 %v3866, %v3867
        %v3869 = vsel %vm3104, %v3763, 0.0
        %v3870 = vadd.f32 %v3868, %v3869
        %v3871 = vsel %vm3104, %v3765, 0.0
        %v3872 = vadd.f32 %v3870, %v3871
        %v3873 = vsel %vm3104, %v3768, 0.0
        %v3874 = vadd.f32 %v3872, %v3873
        %v3875 = vsel %vm3104, %v3770, 0.0
        %v3876 = vadd.f32 %v3874, %v3875
        %v3877 = vsel %vm3104, %v3773, 0.0
        %v3878 = vadd.f32 %v3876, %v3877
        %v3879 = vsel %vm3104, %v3775, 0.0
        %v3880 = vadd.f32 %v3878, %v3879
        %v3881 = vsel %vm3104, %v3778, 0.0
        %v3882 = vadd.f32 %v3880, %v3881
        %v3883 = vsel %vm3104, %v3780, 0.0
        %v3884 = vadd.f32 %v3882, %v3883
        %v3885 = vsel %vm3104, %v3783, 0.0
        %v3886 = vadd.f32 %v3884, %v3885
        %v3887 = vsel %vm3104, %v3785, 0.0
        %v3888 = vadd.f32 %v3886, %v3887
        %v3889 = vsel %vm3104, %v3788, 0.0
        %v3890 = vadd.f32 %v3888, %v3889
        %v3891 = vsel %vm3104, %v3790, 0.0
        %v3892 = vadd.f32 %v3890, %v3891
        %v3893 = vsel %vm3104, %v3793, 0.0
        %v3894 = vadd.f32 %v3892, %v3893
        %v3895 = vsel %vm3104, %v3795, 0.0
        %v3896 = vadd.f32 %v3894, %v3895
        %v3897 = vsel %vm3104, %v3798, 0.0
        %v3898 = vadd.f32 %v3896, %v3897
        %v3899 = vsel %vm3104, %v3800, 0.0
        %v3900 = vadd.f32 %v3898, %v3899
        %v3901 = vsel %vm3104, %v3803, 0.0
        %v3902 = vadd.f32 %v3900, %v3901
        %v3903 = vsel %vm3104, %v3805, 0.0
        %v3904 = vadd.f32 %v3902, %v3903
        %v3905 = vsel %vm3104, %v3808, 0.0
        %v3906 = vadd.f32 %v3904, %v3905
        %v3907 = vsel %vm3104, %v3810, 0.0
        %v3908 = vadd.f32 %v3906, %v3907
        %v3909 = vsel %vm3104, %v3813, 0.0
        %v3910 = vadd.f32 %v3908, %v3909
        %v3911 = vsel %vm3104, %v3815, 0.0
        %v3912 = vadd.f32 %v3910, %v3911
        %v3913 = vsel %vm3104, %v3818, 0.0
        %v3914 = vadd.f32 %v3912, %v3913
        %v3915 = vsel %vm3104, %v3820, 0.0
        %v3916 = vadd.f32 %v3914, %v3915
        %v3917 = vrot.slane %v3916, 4
        %v3918 = vadd.f32 %v3916, %v3917
        %v3919 = vrot.slane %v3918, 2
        %v3920 = vadd.f32 %v3918, %v3919
        %v3921 = vrot.slane %v3920, 1
        %v3922 = vadd.f32 %v3920, %v3921
        %v3923 = vmul.f32 %v3922, 0.00390625
        %v3924 = vsub.f32 %v3743, %v3923
        %v3925 = vsub.f32 %v3745, %v3923
        %v3926 = vsub.f32 %v3748, %v3923
        %v3927 = vsub.f32 %v3750, %v3923
        %v3928 = vsub.f32 %v3753, %v3923
        %v3929 = vsub.f32 %v3755, %v3923
        %v3930 = vsub.f32 %v3758, %v3923
        %v3931 = vsub.f32 %v3760, %v3923
        %v3932 = vsub.f32 %v3763, %v3923
        %v3933 = vsub.f32 %v3765, %v3923
        %v3934 = vsub.f32 %v3768, %v3923
        %v3935 = vsub.f32 %v3770, %v3923
        %v3936 = vsub.f32 %v3773, %v3923
        %v3937 = vsub.f32 %v3775, %v3923
        %v3938 = vsub.f32 %v3778, %v3923
        %v3939 = vsub.f32 %v3780, %v3923
        %v3940 = vsub.f32 %v3783, %v3923
        %v3941 = vsub.f32 %v3785, %v3923
        %v3942 = vsub.f32 %v3788, %v3923
        %v3943 = vsub.f32 %v3790, %v3923
        %v3944 = vsub.f32 %v3793, %v3923
        %v3945 = vsub.f32 %v3795, %v3923
        %v3946 = vsub.f32 %v3798, %v3923
        %v3947 = vsub.f32 %v3800, %v3923
        %v3948 = vsub.f32 %v3803, %v3923
        %v3949 = vsub.f32 %v3805, %v3923
        %v3950 = vsub.f32 %v3808, %v3923
        %v3951 = vsub.f32 %v3810, %v3923
        %v3952 = vsub.f32 %v3813, %v3923
        %v3953 = vsub.f32 %v3815, %v3923
        %v3954 = vsub.f32 %v3818, %v3923
        %v3955 = vsub.f32 %v3820, %v3923
        %v3956 = vmul.f32 %v3924, %v3924
        %v3957 = vmul.f32 %v3925, %v3925
        %v3958 = vmul.f32 %v3926, %v3926
        %v3959 = vmul.f32 %v3927, %v3927
        %v3960 = vmul.f32 %v3928, %v3928
        %v3961 = vmul.f32 %v3929, %v3929
        %v3962 = vmul.f32 %v3930, %v3930
        %v3963 = vmul.f32 %v3931, %v3931
        %v3964 = vmul.f32 %v3932, %v3932
        %v3965 = vmul.f32 %v3933, %v3933
        %v3966 = vmul.f32 %v3934, %v3934
        %v3967 = vmul.f32 %v3935, %v3935
        %v3968 = vmul.f32 %v3936, %v3936
        %v3969 = vmul.f32 %v3937, %v3937
        %v3970 = vmul.f32 %v3938, %v3938
        %v3971 = vmul.f32 %v3939, %v3939
        %v3972 = vmul.f32 %v3940, %v3940
        %v3973 = vmul.f32 %v3941, %v3941
        %v3974 = vmul.f32 %v3942, %v3942
        %v3975 = vmul.f32 %v3943, %v3943
        %v3976 = vmul.f32 %v3944, %v3944
        %v3977 = vmul.f32 %v3945, %v3945
        %v3978 = vmul.f32 %v3946, %v3946
        %v3979 = vmul.f32 %v3947, %v3947
        %v3980 = vmul.f32 %v3948, %v3948
        %v3981 = vmul.f32 %v3949, %v3949
        %v3982 = vmul.f32 %v3950, %v3950
        %v3983 = vmul.f32 %v3951, %v3951
        %v3984 = vmul.f32 %v3952, %v3952
        %v3985 = vmul.f32 %v3953, %v3953
        %v3986 = vmul.f32 %v3954, %v3954
        %v3987 = vmul.f32 %v3955, %v3955
        %v3988 = vsel %vm3104, %v3956, 0.0
        %v3989 = vsel %vm3104, %v3957, 0.0
        %v3990 = vadd.f32 %v3988, %v3989
        %v3991 = vsel %vm3104, %v3958, 0.0
        %v3992 = vadd.f32 %v3990, %v3991
        %v3993 = vsel %vm3104, %v3959, 0.0
        %v3994 = vadd.f32 %v3992, %v3993
        %v3995 = vsel %vm3104, %v3960, 0.0
        %v3996 = vadd.f32 %v3994, %v3995
        %v3997 = vsel %vm3104, %v3961, 0.0
        %v3998 = vadd.f32 %v3996, %v3997
        %v3999 = vsel %vm3104, %v3962, 0.0
        %v4000 = vadd.f32 %v3998, %v3999
        %v4001 = vsel %vm3104, %v3963, 0.0
        %v4002 = vadd.f32 %v4000, %v4001
        %v4003 = vsel %vm3104, %v3964, 0.0
        %v4004 = vadd.f32 %v4002, %v4003
        %v4005 = vsel %vm3104, %v3965, 0.0
        %v4006 = vadd.f32 %v4004, %v4005
        %v4007 = vsel %vm3104, %v3966, 0.0
        %v4008 = vadd.f32 %v4006, %v4007
        %v4009 = vsel %vm3104, %v3967, 0.0
        %v4010 = vadd.f32 %v4008, %v4009
        %v4011 = vsel %vm3104, %v3968, 0.0
        %v4012 = vadd.f32 %v4010, %v4011
        %v4013 = vsel %vm3104, %v3969, 0.0
        %v4014 = vadd.f32 %v4012, %v4013
        %v4015 = vsel %vm3104, %v3970, 0.0
        %v4016 = vadd.f32 %v4014, %v4015
        %v4017 = vsel %vm3104, %v3971, 0.0
        %v4018 = vadd.f32 %v4016, %v4017
        %v4019 = vsel %vm3104, %v3972, 0.0
        %v4020 = vadd.f32 %v4018, %v4019
        %v4021 = vsel %vm3104, %v3973, 0.0
        %v4022 = vadd.f32 %v4020, %v4021
        %v4023 = vsel %vm3104, %v3974, 0.0
        %v4024 = vadd.f32 %v4022, %v4023
        %v4025 = vsel %vm3104, %v3975, 0.0
        %v4026 = vadd.f32 %v4024, %v4025
        %v4027 = vsel %vm3104, %v3976, 0.0
        %v4028 = vadd.f32 %v4026, %v4027
        %v4029 = vsel %vm3104, %v3977, 0.0
        %v4030 = vadd.f32 %v4028, %v4029
        %v4031 = vsel %vm3104, %v3978, 0.0
        %v4032 = vadd.f32 %v4030, %v4031
        %v4033 = vsel %vm3104, %v3979, 0.0
        %v4034 = vadd.f32 %v4032, %v4033
        %v4035 = vsel %vm3104, %v3980, 0.0
        %v4036 = vadd.f32 %v4034, %v4035
        %v4037 = vsel %vm3104, %v3981, 0.0
        %v4038 = vadd.f32 %v4036, %v4037
        %v4039 = vsel %vm3104, %v3982, 0.0
        %v4040 = vadd.f32 %v4038, %v4039
        %v4041 = vsel %vm3104, %v3983, 0.0
        %v4042 = vadd.f32 %v4040, %v4041
        %v4043 = vsel %vm3104, %v3984, 0.0
        %v4044 = vadd.f32 %v4042, %v4043
        %v4045 = vsel %vm3104, %v3985, 0.0
        %v4046 = vadd.f32 %v4044, %v4045
        %v4047 = vsel %vm3104, %v3986, 0.0
        %v4048 = vadd.f32 %v4046, %v4047
        %v4049 = vsel %vm3104, %v3987, 0.0
        %v4050 = vadd.f32 %v4048, %v4049
        %v4051 = vrot.slane %v4050, 4
        %v4052 = vadd.f32 %v4050, %v4051
        %v4053 = vrot.slane %v4052, 2
        %v4054 = vadd.f32 %v4052, %v4053
        %v4055 = vrot.slane %v4054, 1
        %v4056 = vadd.f32 %v4054, %v4055
        %vm4057 = vcmask 1040384
        %v4058 = vsel %vm4057, %v3922, %v4056
        %vm4059 = vcmask 254976
        %4060 = vst.msk [vmem:[%s279] sm:$0x3] %vm4059, %v4058
        %p4061 = scmp.lt.s32.totalorder %s19, 1
        %s4062 = scalar_select %p4061, %s19, 1
        %s4063 = smul.addr %s4062, 32
        %s4064 = smul.addr %s4063, 8
        %s4065 = scalar_lea.vmem %s5, %s4064
        %p4066 = scmp.lt.s32.totalorder %s19, 1
        %s4067 = scalar_select %p4066, %s19, 1
        %s4068 = smul.addr %s4067, 2
        %s4069 = scalar_lea.vmem %s6, %s4068
        // Predicated region
        $region45: #{bottleneck_pallas.5} parent=39 // pred_check
          %p4070 = pneg %p147
        $region46: #{bottleneck_pallas.5} parent=39 // pred_check_branch
          %4072 = sbr.rel (%p4070) target = $region48
        $region47: #{bottleneck_pallas.5} parent=39 // pred_region
          _
        $region48: #{bottleneck_pallas.5} parent=39 // pred_fallthru
          _
        // Predicated region
        $region49: #{bottleneck_pallas.5} parent=39 // pred_check
          %p4073 = pneg %p173
        $region50: #{bottleneck_pallas.5} parent=39 // pred_check_branch
          %4075 = sbr.rel (%p4073) target = $region52
        $region51: #{bottleneck_pallas.5} parent=39 // pred_region
          _
        $region52: #{bottleneck_pallas.5} parent=39 // pred_fallthru
          _
      $region40: #{bottleneck_pallas.5} parent=5 // pred_fallthru
        _
      %p4076 = scmp.le.s32.totalorder 2, %s14
      // Predicated region
      $region53: #{bottleneck_pallas.5} parent=5 // pred_check
        %p4077 = pneg %p4076
      $region54: #{bottleneck_pallas.5} parent=5 // pred_check_branch
        %4079 = sbr.rel (%p4077) target = $region56
      $region55: #{bottleneck_pallas.5} parent=5 // pred_region
        %s4080 = ssub.s32 %s14, 2
        // Predicated region
        $region57: #{bottleneck_pallas.5} parent=55 // pred_check
          %p4081 = pneg %p153
        $region58: #{bottleneck_pallas.5} parent=55 // pred_check_branch
          %4083 = sbr.rel (%p4081) target = $region60
        $region59: #{bottleneck_pallas.5} parent=55 // pred_region
          %p4084 = scmp.lt.s32.totalorder %s20, 1
          %s4085 = scalar_select %p4084, %s20, 1
          %s4086 = smul.addr %s4085, 32
          %s4087 = smul.addr %s4086, 8
          %s4088 = scalar_lea.vmem %s5, %s4087
        $region60: #{bottleneck_pallas.5} parent=55 // pred_fallthru
          _
        // Predicated region
        $region61: #{bottleneck_pallas.5} parent=55 // pred_check
          %p4089 = pneg %p179
        $region62: #{bottleneck_pallas.5} parent=55 // pred_check_branch
          %4091 = sbr.rel (%p4089) target = $region64
        $region63: #{bottleneck_pallas.5} parent=55 // pred_region
          %p4092 = scmp.lt.s32.totalorder %s20, 1
          %s4093 = scalar_select %p4092, %s20, 1
          %s4094 = smul.addr %s4093, 2
          %s4095 = scalar_lea.vmem %s6, %s4094
        $region64: #{bottleneck_pallas.5} parent=55 // pred_fallthru
          _
      $region56: #{bottleneck_pallas.5} parent=5 // pred_fallthru
        _
    $region6: #{bottleneck_pallas.5} parent=1 // loop_footer
      %s18 = sadd.s32 1, %s14
    $region7: #{bottleneck_pallas.5} parent=1 // loop_footer_branch
      %13 = sbr.rel target = $region3
    $region8: #{bottleneck_pallas.5} parent=1 // loop_exit
      _
    %4096 = vsyncpa [#allocation3], 1
    %s4097 = scalar_lea.sflag [#allocation3], 1
    %4098 = vsyncpa %s4097, 1

</llo_original>
